<compile_context>
chip_gen: v7x
topology: tpu7x:2x2x1
jax: 0.10.0
libtpu: 0.0.40
codegen_flags: <defaults>
</compile_context>

<pallas_src>
import jax
import jax.numpy as jnp
from jax.experimental import pallas as pl
from jax.experimental.pallas import tpu as pltpu

_LANES = 128
_SUBLANES = 8


def _round_up(x, m):
    return ((x + m - 1) // m) * m


def _cdiv(a, b):
    return (a + b - 1) // b


def _physical_vmem_cap_bytes():
    """Per-generation VMEM ceiling (leave headroom for compiler scratch)."""
    try:
        info = pltpu.get_tpu_info()
        phys = int(getattr(info, "vmem_capacity_bytes", 64 << 20))
    except Exception:
        phys = 64 << 20                       # conservative (v7x-sized) fallback
    return int(phys * 3 // 4)                 # ~48 MiB on v7x, ~96 MiB on v5e/v6e


def _make_mlp_kernel(n_stack: int, out_rows: int):
    """Kernel: first Linear+ReLU, n_stack (Wp x Wp) Linear+ReLU, output Linear.

    Output is stored TRANSPOSED as an (out_rows, tile_b) lane-dense slab
    (batch on the lane axis) to cut output HBM traffic ~16x; the transpose
    rides the idle XLU slot.
    """
    if n_stack > 0:
        def kernel(x_ref, w0_ref, b0_ref, wh_ref, bh_ref, wout_ref, bout_ref, ot_ref):
            h = jnp.dot(x_ref[...].astype(jnp.bfloat16), w0_ref[...],
                        preferred_element_type=jnp.float32) + b0_ref[...]
            h = jnp.maximum(h, 0.0)
            for i in range(n_stack):              # static unroll; wh_ref[i] static index
                h = jnp.dot(h.astype(jnp.bfloat16), wh_ref[i],
                            preferred_element_type=jnp.float32) + bh_ref[i]
                h = jnp.maximum(h, 0.0)
            o = jnp.dot(h.astype(jnp.bfloat16), wout_ref[...],
                        preferred_element_type=jnp.float32) + bout_ref[...]
            ot_ref[...] = jnp.transpose(o)[:out_rows, :].astype(ot_ref.dtype)
        return kernel

    def kernel(x_ref, w0_ref, b0_ref, wout_ref, bout_ref, ot_ref):
        h = jnp.dot(x_ref[...].astype(jnp.bfloat16), w0_ref[...],
                    preferred_element_type=jnp.float32) + b0_ref[...]
        h = jnp.maximum(h, 0.0)
        o = jnp.dot(h.astype(jnp.bfloat16), wout_ref[...],
                    preferred_element_type=jnp.float32) + bout_ref[...]
        ot_ref[...] = jnp.transpose(o)[:out_rows, :].astype(ot_ref.dtype)
    return kernel


def ff_ensemble_members_forward(x, members, *, tile_b=None, min_lane_pad=_LANES):
    """Evaluate M FFEnsembleMember forward passes in one Pallas call.

    Members are packed along the lane axis: first-layer weights concatenated
    along N, hidden layers block-diagonal, output layer block-diagonal, so a
    single chain of lane-dense matmuls evaluates every member.  Zero padding
    columns stay exactly zero through relu(0 + 0), so results are unchanged.

    Args:
      x: (B, input_feat_len) float32, shared input.
      members: list of (hidden_params, out_w, out_b) where hidden_params is a
        list of (W, b) with W: (in, out) (i.e. transposed nn.Linear weight),
        out_w: (width, num_objectives), out_b: (num_objectives,) or (1, num_objectives).
      tile_b: batch tile (multiple of 128); default balances tiles and keeps
        grid >= 2 for v7x megacore.  Sweepable (512 / 1024 / 2048 all fit VMEM).
      min_lane_pad: lower bound on packed hidden width.  Use 256 on v6e/v7x
        when >= 12 width-20 members are packed, to fill the 256-wide MXU.

    Returns:
      (M, B, num_objectives) float32.
    """
    # TODO(synk): auto-select min_lane_pad=256 on 256-wide-MXU chips (v6e/v7x)
    # once the MXU-dim field of pltpu.get_tpu_info() is relied upon.
    B, F = x.shape
    M = len(members)
    hidden0 = members[0][0]
    width = hidden0[0][0].shape[1]
    num_obj = members[0][1].shape[-1]
    n_hidden = len(hidden0)
    n_stack = n_hidden - 1                        # (width x width) layers after the first

    total_w = M * width
    total_out = M * num_obj
    w_pad = max(_round_up(total_w, _LANES), int(min_lane_pad))   # lane-dense hidden width
    out_pad = _round_up(total_out, _LANES)                       # lane-dense matmul N
    out_rows = _round_up(total_out, _SUBLANES)                   # small transposed store

    # ---- batch tiling: lane-aligned (batch becomes the output lane axis),
    #      balanced so the tail tile is nearly full, and >= 2 tiles whenever
    #      possible so "parallel" can shard across v7x's two TensorCores. ----
    if tile_b is None:
        n_tiles = max(2, _cdiv(B, 1024))
        tile_b = _round_up(_cdiv(B, n_tiles), _LANES)
    tile_b = max(_LANES, _round_up(int(tile_b), _LANES))
    b_pad = _round_up(B, tile_b)
    if b_pad != B:
        x = jnp.pad(x, ((0, b_pad - B), (0, 0)))
    grid = (b_pad // tile_b,)

    # ---- pack / pad params: weights -> bf16, biases stay f32 ----
    def pad2(a, rows, cols):
        a = jnp.asarray(a, jnp.float32)
        return jnp.pad(a, ((0, rows - a.shape[0]), (0, cols - a.shape[1])))

    def bias_row(b, n):
        return jnp.reshape(jnp.asarray(b, jnp.float32), (1, n))

    # First Linear: concatenate the M (F, width) weights along N.
    w0p = pad2(jnp.concatenate([m[0][0][0] for m in members], axis=1),
               F, w_pad).astype(jnp.bfloat16)                               # (F, Wp)
    b0p = pad2(jnp.concatenate([bias_row(m[0][0][1], width) for m in members], axis=1),
               1, w_pad)                                                    # (1, Wp)

    args = [x, w0p, b0p]
    in_specs = [
        pl.BlockSpec((tile_b, F), lambda i: (i, 0)),
        pl.BlockSpec((F, w_pad), lambda i: (0, 0)),
        pl.BlockSpec((1, w_pad), lambda i: (0, 0)),
    ]

    if n_stack > 0:
        # Hidden Linears: block-diagonal (M*width, M*width) per layer, stacked.
        whp = jnp.stack([
            pad2(jax.scipy.linalg.block_diag(*[m[0][l][0] for m in members]),
                 w_pad, w_pad)
            for l in range(1, n_hidden)]).astype(jnp.bfloat16)              # (L, Wp, Wp)
        bhp = jnp.stack([
            pad2(jnp.concatenate([bias_row(m[0][l][1], width) for m in members], axis=1),
                 1, w_pad)
            for l in range(1, n_hidden)])                                   # (L, 1, Wp)
        args += [whp, bhp]
        in_specs += [
            pl.BlockSpec((n_stack, w_pad, w_pad), lambda i: (0, 0, 0)),
            pl.BlockSpec((n_stack, 1, w_pad), lambda i: (0, 0, 0)),
        ]

    # Output Linear: block-diagonal (M*width, M*num_obj).
    woutp = pad2(jax.scipy.linalg.block_diag(*[m[1] for m in members]),
                 w_pad, out_pad).astype(jnp.bfloat16)                       # (Wp, Op)
    boutp = pad2(jnp.concatenate([bias_row(m[2], num_obj) for m in members], axis=1),
                 1, out_pad)                                                # (1, Op)
    args += [woutp, boutp]
    in_specs += [
        pl.BlockSpec((w_pad, out_pad), lambda i: (0, 0)),
        pl.BlockSpec((1, out_pad), lambda i: (0, 0)),
    ]

    # Transposed output: (out_rows, b_pad), block (out_rows, tile_b), lane-dense.
    out_spec = pl.BlockSpec((out_rows, tile_b), lambda i: (0, i))

    # ---- explicit VMEM budget: double-buffered tiles + resident params
    #      + intermediate estimate, capped per generation ----
    param_bytes = sum(int(a.size) * a.dtype.itemsize for a in args[1:])
    inter_bytes = 6 * tile_b * max(w_pad, out_pad) * 4      # h, bf16 copies, transpose
    vmem_bytes = (2 * tile_b * F * 4                         # x tile, double-buffered
                  + 2 * out_rows * tile_b * 4                # output tile, double-buffered
                  + 2 * param_bytes                          # resident weights/biases
                  + inter_bytes + (4 << 20))                 # headroom
    vmem_bytes = int(min(_physical_vmem_cap_bytes(), max(vmem_bytes, 32 << 20)))

    kernel = _make_mlp_kernel(n_stack, out_rows)

    out_t = pl.pallas_call(
        kernel,
        out_shape=jax.ShapeDtypeStruct((out_rows, b_pad), jnp.float32),
        grid=grid,
        in_specs=in_specs,
        out_specs=out_spec,
        compiler_params=pltpu.CompilerParams(
            dimension_semantics=("parallel",),
            vmem_limit_bytes=vmem_bytes),
    )(*args)

    # (out_rows, b_pad) -> (B, M*num_obj) -> (M, B, num_obj)
    out = jnp.transpose(out_t[:total_out, :B])
    return jnp.transpose(out.reshape(B, M, num_obj), (1, 0, 2))


def ff_ensemble_member_forward(x, hidden_params, out_w, out_b, *, tile_b=None):
    """Forward of a single FFEnsembleMember (matches the PyTorch module)."""
    out = ff_ensemble_members_forward(x, [(hidden_params, out_w, out_b)], tile_b=tile_b)
    return out[0]


def init_member_params(key, *, num_objectives=1, input_feat_len=128, num_layers=10, width=20):
    """Deterministic init mirroring the module's layer shapes.

    nn.Linear(in, out) has weight (out, in); we store the transpose (in, out)
    so the kernel computes x @ W directly.
    """
    hidden_params = []
    in_dim = input_feat_len
    for _ in range(num_layers - 1):   # first Linear + (num_layers - 2) hidden Linears
        key, kw, kb = jax.random.split(key, 3)
        bound = 1.0 / (in_dim ** 0.5)
        w = jax.random.uniform(kw, (in_dim, width), jnp.float32, -bound, bound)
        b = jax.random.uniform(kb, (1, width), jnp.float32, -bound, bound)
        hidden_params.append((w, b))
        in_dim = width
    key, kw, kb = jax.random.split(key, 3)
    bound = 1.0 / (width ** 0.5)
    out_w = jax.random.uniform(kw, (width, num_objectives), jnp.float32, -bound, bound)
    out_b = jax.random.uniform(kb, (1, num_objectives), jnp.float32, -bound, bound)
    return hidden_params, out_w, out_b


def reference_forward_f32(x, hidden_params, out_w, out_b):
    h = x
    for w, b in hidden_params:
        h = jnp.maximum(h @ w + jnp.reshape(b, (1, -1)), 0.0)
    return h @ out_w + jnp.reshape(out_b, (1, -1))


def reference_forward_bf16(x, hidden_params, out_w, out_b):
    """Same arithmetic as the kernel: bf16 matmul operands, f32 accumulation."""
    h = x
    for w, b in hidden_params:
        h = jnp.dot(h.astype(jnp.bfloat16), jnp.asarray(w).astype(jnp.bfloat16),
                    preferred_element_type=jnp.float32) + jnp.reshape(b, (1, -1))
        h = jnp.maximum(h, 0.0)
    return (jnp.dot(h.astype(jnp.bfloat16), jnp.asarray(out_w).astype(jnp.bfloat16),
                    preferred_element_type=jnp.float32) + jnp.reshape(out_b, (1, -1)))


if __name__ == "__main__":
    # Module defaults for layer structure; 6 width-20 members fill the 128-lane pad.
    num_objectives = 1
    input_feat_len = 128
    num_layers = 10     # 9 relu-Linears (1 x 128->20, 8 x 20->20) + output Linear
    width = 20
    batch = 512
    num_members = 6

    key = jax.random.PRNGKey(0)
    key, kx = jax.random.split(key)
    x = jax.random.normal(kx, (batch, input_feat_len), jnp.float32)

    members = []
    for _ in range(num_members):
        key, km = jax.random.split(key)
        members.append(init_member_params(
            km, num_objectives=num_objectives, input_feat_len=input_feat_len,
            num_layers=num_layers, width=width))

    # Packed path: 6 members in one pallas_call (block-diagonal, lane-dense weights).
    packed_out = ff_ensemble_members_forward(x, members)
    packed_out = jax.block_until_ready(packed_out)
    assert packed_out.shape == (num_members, batch, num_objectives)

    # Single-member path (the original module's forward). Same kernel shapes.
    hp0, ow0, ob0 = members[0]
    single_out = ff_ensemble_member_forward(x, hp0, ow0, ob0)
    single_out = jax.block_until_ready(single_out)
    assert single_out.shape == (batch, num_objectives)

    # Correctness: every packed member matches its own per-member reference.
    for m, (hp, ow, ob) in enumerate(members):
        ref_bf16 = reference_forward_bf16(x, hp, ow, ob)
        ref_f32 = reference_forward_f32(x, hp, ow, ob)
        assert jnp.allclose(packed_out[m], ref_bf16, atol=2e-3, rtol=2e-2), \
            f"member {m}: mismatch vs bf16 reference"
        assert jnp.allclose(packed_out[m], ref_f32, atol=5e-2, rtol=5e-2), \
            f"member {m}: mismatch vs f32 reference"
    assert jnp.allclose(single_out, packed_out[0], atol=1e-5, rtol=1e-5), \
        "single-member path mismatch vs packed member 0"

    print("KERNEL_OK")
</pallas_src>

<mosaic_0001>
module attributes {stable_mosaic.version = 11 : i64} {
  func.func @kernel(%arg0: i32, %arg1: memref<256x128xf32, #tpu.memory_space<vmem>>, %arg2: memref<128x128xbf16, #tpu.memory_space<vmem>>, %arg3: memref<1x128xf32, #tpu.memory_space<vmem>>, %arg4: memref<8x128x128xbf16, #tpu.memory_space<vmem>>, %arg5: memref<8x1x128xf32, #tpu.memory_space<vmem>>, %arg6: memref<128x128xbf16, #tpu.memory_space<vmem>>, %arg7: memref<1x128xf32, #tpu.memory_space<vmem>>, %arg8: memref<8x256xf32, #tpu.memory_space<vmem>>) attributes {dimension_semantics = [#tpu.dimension_semantics<parallel>], iteration_bounds = array<i64: 2>, scalar_prefetch = 0 : i64, scratch_operands = 0 : i64, tpu.core_type = #tpu.core_type<tc>, window_params = [{transform_indices = @transform_0, window_bounds = array<i64: 256, 128>}, {pipeline_mode = #tpu.pipeline_mode<synchronous>, transform_indices = @transform_1, window_bounds = array<i64: 128, 128>}, {pipeline_mode = #tpu.pipeline_mode<synchronous>, transform_indices = @transform_2, window_bounds = array<i64: 1, 128>}, {pipeline_mode = #tpu.pipeline_mode<synchronous>, transform_indices = @transform_3, window_bounds = array<i64: 8, 128, 128>}, {pipeline_mode = #tpu.pipeline_mode<synchronous>, transform_indices = @transform_4, window_bounds = array<i64: 8, 1, 128>}, {pipeline_mode = #tpu.pipeline_mode<synchronous>, transform_indices = @transform_5, window_bounds = array<i64: 128, 128>}, {pipeline_mode = #tpu.pipeline_mode<synchronous>, transform_indices = @transform_6, window_bounds = array<i64: 1, 128>}, {transform_indices = @transform_7, window_bounds = array<i64: 8, 256>}]} {
    %c0 = arith.constant 0 : index
    %c0_0 = arith.constant 0 : index
    %0 = vector.load %arg1[%c0, %c0_0] : memref<256x128xf32, #tpu.memory_space<vmem>>, vector<256x128xf32>
    %1 = arith.truncf %0 : vector<256x128xf32> to vector<256x128xbf16>
    %c0_1 = arith.constant 0 : index
    %c0_2 = arith.constant 0 : index
    %2 = vector.load %arg2[%c0_1, %c0_2] : memref<128x128xbf16, #tpu.memory_space<vmem>>, vector<128x128xbf16>
    %cst = arith.constant dense<0.000000e+00> : vector<256x128xf32>
    %3 = tpu.matmul %1, %2, %cst {dimension_numbers = #tpu.dot_dimension_numbers<[1], [0], [0], [1], [0, 0, 1, 1], [], []>} : vector<256x128xbf16>, vector<128x128xbf16>, vector<256x128xf32> -> vector<256x128xf32>
    %c0_3 = arith.constant 0 : index
    %c0_4 = arith.constant 0 : index
    %4 = vector.load %arg3[%c0_3, %c0_4] : memref<1x128xf32, #tpu.memory_space<vmem>>, vector<1x128xf32>
    %5 = vector.broadcast %4 : vector<1x128xf32> to vector<256x128xf32>
    %6 = arith.addf %3, %5 : vector<256x128xf32>
    %cst_5 = arith.constant 0.000000e+00 : f32
    %7 = vector.broadcast %cst_5 : f32 to vector<256x128xf32>
    %8 = arith.maximumf %6, %7 : vector<256x128xf32>
    %9 = arith.truncf %8 : vector<256x128xf32> to vector<256x128xbf16>
    %c0_6 = arith.constant 0 : index
    %c0_7 = arith.constant 0 : index
    %c0_8 = arith.constant 0 : index
    %10 = vector.load %arg4[%c0_6, %c0_7, %c0_8] : memref<8x128x128xbf16, #tpu.memory_space<vmem>>, vector<1x128x128xbf16>
    %11 = vector.shape_cast %10 : vector<1x128x128xbf16> to vector<128x128xbf16>
    %cst_9 = arith.constant dense<0.000000e+00> : vector<256x128xf32>
    %12 = tpu.matmul %9, %11, %cst_9 {dimension_numbers = #tpu.dot_dimension_numbers<[1], [0], [0], [1], [0, 0, 1, 1], [], []>} : vector<256x128xbf16>, vector<128x128xbf16>, vector<256x128xf32> -> vector<256x128xf32>
    %c0_10 = arith.constant 0 : index
    %c0_11 = arith.constant 0 : index
    %c0_12 = arith.constant 0 : index
    %13 = vector.load %arg5[%c0_10, %c0_11, %c0_12] : memref<8x1x128xf32, #tpu.memory_space<vmem>>, vector<1x1x128xf32>
    %14 = vector.shape_cast %13 : vector<1x1x128xf32> to vector<1x128xf32>
    %15 = vector.broadcast %14 : vector<1x128xf32> to vector<256x128xf32>
    %16 = arith.addf %12, %15 : vector<256x128xf32>
    %cst_13 = arith.constant 0.000000e+00 : f32
    %17 = vector.broadcast %cst_13 : f32 to vector<256x128xf32>
    %18 = arith.maximumf %16, %17 : vector<256x128xf32>
    %19 = arith.truncf %18 : vector<256x128xf32> to vector<256x128xbf16>
    %c1 = arith.constant 1 : index
    %c0_14 = arith.constant 0 : index
    %c0_15 = arith.constant 0 : index
    %20 = vector.load %arg4[%c1, %c0_14, %c0_15] : memref<8x128x128xbf16, #tpu.memory_space<vmem>>, vector<1x128x128xbf16>
    %21 = vector.shape_cast %20 : vector<1x128x128xbf16> to vector<128x128xbf16>
    %cst_16 = arith.constant dense<0.000000e+00> : vector<256x128xf32>
    %22 = tpu.matmul %19, %21, %cst_16 {dimension_numbers = #tpu.dot_dimension_numbers<[1], [0], [0], [1], [0, 0, 1, 1], [], []>} : vector<256x128xbf16>, vector<128x128xbf16>, vector<256x128xf32> -> vector<256x128xf32>
    %c1_17 = arith.constant 1 : index
    %c0_18 = arith.constant 0 : index
    %c0_19 = arith.constant 0 : index
    %23 = vector.load %arg5[%c1_17, %c0_18, %c0_19] : memref<8x1x128xf32, #tpu.memory_space<vmem>>, vector<1x1x128xf32>
    %24 = vector.shape_cast %23 : vector<1x1x128xf32> to vector<1x128xf32>
    %25 = vector.broadcast %24 : vector<1x128xf32> to vector<256x128xf32>
    %26 = arith.addf %22, %25 : vector<256x128xf32>
    %cst_20 = arith.constant 0.000000e+00 : f32
    %27 = vector.broadcast %cst_20 : f32 to vector<256x128xf32>
    %28 = arith.maximumf %26, %27 : vector<256x128xf32>
    %29 = arith.truncf %28 : vector<256x128xf32> to vector<256x128xbf16>
    %c2 = arith.constant 2 : index
    %c0_21 = arith.constant 0 : index
    %c0_22 = arith.constant 0 : index
    %30 = vector.load %arg4[%c2, %c0_21, %c0_22] : memref<8x128x128xbf16, #tpu.memory_space<vmem>>, vector<1x128x128xbf16>
    %31 = vector.shape_cast %30 : vector<1x128x128xbf16> to vector<128x128xbf16>
    %cst_23 = arith.constant dense<0.000000e+00> : vector<256x128xf32>
    %32 = tpu.matmul %29, %31, %cst_23 {dimension_numbers = #tpu.dot_dimension_numbers<[1], [0], [0], [1], [0, 0, 1, 1], [], []>} : vector<256x128xbf16>, vector<128x128xbf16>, vector<256x128xf32> -> vector<256x128xf32>
    %c2_24 = arith.constant 2 : index
    %c0_25 = arith.constant 0 : index
    %c0_26 = arith.constant 0 : index
    %33 = vector.load %arg5[%c2_24, %c0_25, %c0_26] : memref<8x1x128xf32, #tpu.memory_space<vmem>>, vector<1x1x128xf32>
    %34 = vector.shape_cast %33 : vector<1x1x128xf32> to vector<1x128xf32>
    %35 = vector.broadcast %34 : vector<1x128xf32> to vector<256x128xf32>
    %36 = arith.addf %32, %35 : vector<256x128xf32>
    %cst_27 = arith.constant 0.000000e+00 : f32
    %37 = vector.broadcast %cst_27 : f32 to vector<256x128xf32>
    %38 = arith.maximumf %36, %37 : vector<256x128xf32>
    %39 = arith.truncf %38 : vector<256x128xf32> to vector<256x128xbf16>
    %c3 = arith.constant 3 : index
    %c0_28 = arith.constant 0 : index
    %c0_29 = arith.constant 0 : index
    %40 = vector.load %arg4[%c3, %c0_28, %c0_29] : memref<8x128x128xbf16, #tpu.memory_space<vmem>>, vector<1x128x128xbf16>
    %41 = vector.shape_cast %40 : vector<1x128x128xbf16> to vector<128x128xbf16>
    %cst_30 = arith.constant dense<0.000000e+00> : vector<256x128xf32>
    %42 = tpu.matmul %39, %41, %cst_30 {dimension_numbers = #tpu.dot_dimension_numbers<[1], [0], [0], [1], [0, 0, 1, 1], [], []>} : vector<256x128xbf16>, vector<128x128xbf16>, vector<256x128xf32> -> vector<256x128xf32>
    %c3_31 = arith.constant 3 : index
    %c0_32 = arith.constant 0 : index
    %c0_33 = arith.constant 0 : index
    %43 = vector.load %arg5[%c3_31, %c0_32, %c0_33] : memref<8x1x128xf32, #tpu.memory_space<vmem>>, vector<1x1x128xf32>
    %44 = vector.shape_cast %43 : vector<1x1x128xf32> to vector<1x128xf32>
    %45 = vector.broadcast %44 : vector<1x128xf32> to vector<256x128xf32>
    %46 = arith.addf %42, %45 : vector<256x128xf32>
    %cst_34 = arith.constant 0.000000e+00 : f32
    %47 = vector.broadcast %cst_34 : f32 to vector<256x128xf32>
    %48 = arith.maximumf %46, %47 : vector<256x128xf32>
    %49 = arith.truncf %48 : vector<256x128xf32> to vector<256x128xbf16>
    %c4 = arith.constant 4 : index
    %c0_35 = arith.constant 0 : index
    %c0_36 = arith.constant 0 : index
    %50 = vector.load %arg4[%c4, %c0_35, %c0_36] : memref<8x128x128xbf16, #tpu.memory_space<vmem>>, vector<1x128x128xbf16>
    %51 = vector.shape_cast %50 : vector<1x128x128xbf16> to vector<128x128xbf16>
    %cst_37 = arith.constant dense<0.000000e+00> : vector<256x128xf32>
    %52 = tpu.matmul %49, %51, %cst_37 {dimension_numbers = #tpu.dot_dimension_numbers<[1], [0], [0], [1], [0, 0, 1, 1], [], []>} : vector<256x128xbf16>, vector<128x128xbf16>, vector<256x128xf32> -> vector<256x128xf32>
    %c4_38 = arith.constant 4 : index
    %c0_39 = arith.constant 0 : index
    %c0_40 = arith.constant 0 : index
    %53 = vector.load %arg5[%c4_38, %c0_39, %c0_40] : memref<8x1x128xf32, #tpu.memory_space<vmem>>, vector<1x1x128xf32>
    %54 = vector.shape_cast %53 : vector<1x1x128xf32> to vector<1x128xf32>
    %55 = vector.broadcast %54 : vector<1x128xf32> to vector<256x128xf32>
    %56 = arith.addf %52, %55 : vector<256x128xf32>
    %cst_41 = arith.constant 0.000000e+00 : f32
    %57 = vector.broadcast %cst_41 : f32 to vector<256x128xf32>
    %58 = arith.maximumf %56, %57 : vector<256x128xf32>
    %59 = arith.truncf %58 : vector<256x128xf32> to vector<256x128xbf16>
    %c5 = arith.constant 5 : index
    %c0_42 = arith.constant 0 : index
    %c0_43 = arith.constant 0 : index
    %60 = vector.load %arg4[%c5, %c0_42, %c0_43] : memref<8x128x128xbf16, #tpu.memory_space<vmem>>, vector<1x128x128xbf16>
    %61 = vector.shape_cast %60 : vector<1x128x128xbf16> to vector<128x128xbf16>
    %cst_44 = arith.constant dense<0.000000e+00> : vector<256x128xf32>
    %62 = tpu.matmul %59, %61, %cst_44 {dimension_numbers = #tpu.dot_dimension_numbers<[1], [0], [0], [1], [0, 0, 1, 1], [], []>} : vector<256x128xbf16>, vector<128x128xbf16>, vector<256x128xf32> -> vector<256x128xf32>
    %c5_45 = arith.constant 5 : index
    %c0_46 = arith.constant 0 : index
    %c0_47 = arith.constant 0 : index
    %63 = vector.load %arg5[%c5_45, %c0_46, %c0_47] : memref<8x1x128xf32, #tpu.memory_space<vmem>>, vector<1x1x128xf32>
    %64 = vector.shape_cast %63 : vector<1x1x128xf32> to vector<1x128xf32>
    %65 = vector.broadcast %64 : vector<1x128xf32> to vector<256x128xf32>
    %66 = arith.addf %62, %65 : vector<256x128xf32>
    %cst_48 = arith.constant 0.000000e+00 : f32
    %67 = vector.broadcast %cst_48 : f32 to vector<256x128xf32>
    %68 = arith.maximumf %66, %67 : vector<256x128xf32>
    %69 = arith.truncf %68 : vector<256x128xf32> to vector<256x128xbf16>
    %c6 = arith.constant 6 : index
    %c0_49 = arith.constant 0 : index
    %c0_50 = arith.constant 0 : index
    %70 = vector.load %arg4[%c6, %c0_49, %c0_50] : memref<8x128x128xbf16, #tpu.memory_space<vmem>>, vector<1x128x128xbf16>
    %71 = vector.shape_cast %70 : vector<1x128x128xbf16> to vector<128x128xbf16>
    %cst_51 = arith.constant dense<0.000000e+00> : vector<256x128xf32>
    %72 = tpu.matmul %69, %71, %cst_51 {dimension_numbers = #tpu.dot_dimension_numbers<[1], [0], [0], [1], [0, 0, 1, 1], [], []>} : vector<256x128xbf16>, vector<128x128xbf16>, vector<256x128xf32> -> vector<256x128xf32>
    %c6_52 = arith.constant 6 : index
    %c0_53 = arith.constant 0 : index
    %c0_54 = arith.constant 0 : index
    %73 = vector.load %arg5[%c6_52, %c0_53, %c0_54] : memref<8x1x128xf32, #tpu.memory_space<vmem>>, vector<1x1x128xf32>
    %74 = vector.shape_cast %73 : vector<1x1x128xf32> to vector<1x128xf32>
    %75 = vector.broadcast %74 : vector<1x128xf32> to vector<256x128xf32>
    %76 = arith.addf %72, %75 : vector<256x128xf32>
    %cst_55 = arith.constant 0.000000e+00 : f32
    %77 = vector.broadcast %cst_55 : f32 to vector<256x128xf32>
    %78 = arith.maximumf %76, %77 : vector<256x128xf32>
    %79 = arith.truncf %78 : vector<256x128xf32> to vector<256x128xbf16>
    %c7 = arith.constant 7 : index
    %c0_56 = arith.constant 0 : index
    %c0_57 = arith.constant 0 : index
    %80 = vector.load %arg4[%c7, %c0_56, %c0_57] : memref<8x128x128xbf16, #tpu.memory_space<vmem>>, vector<1x128x128xbf16>
    %81 = vector.shape_cast %80 : vector<1x128x128xbf16> to vector<128x128xbf16>
    %cst_58 = arith.constant dense<0.000000e+00> : vector<256x128xf32>
    %82 = tpu.matmul %79, %81, %cst_58 {dimension_numbers = #tpu.dot_dimension_numbers<[1], [0], [0], [1], [0, 0, 1, 1], [], []>} : vector<256x128xbf16>, vector<128x128xbf16>, vector<256x128xf32> -> vector<256x128xf32>
    %c7_59 = arith.constant 7 : index
    %c0_60 = arith.constant 0 : index
    %c0_61 = arith.constant 0 : index
    %83 = vector.load %arg5[%c7_59, %c0_60, %c0_61] : memref<8x1x128xf32, #tpu.memory_space<vmem>>, vector<1x1x128xf32>
    %84 = vector.shape_cast %83 : vector<1x1x128xf32> to vector<1x128xf32>
    %85 = vector.broadcast %84 : vector<1x128xf32> to vector<256x128xf32>
    %86 = arith.addf %82, %85 : vector<256x128xf32>
    %cst_62 = arith.constant 0.000000e+00 : f32
    %87 = vector.broadcast %cst_62 : f32 to vector<256x128xf32>
    %88 = arith.maximumf %86, %87 : vector<256x128xf32>
    %89 = arith.truncf %88 : vector<256x128xf32> to vector<256x128xbf16>
    %c0_63 = arith.constant 0 : index
    %c0_64 = arith.constant 0 : index
    %90 = vector.load %arg6[%c0_63, %c0_64] : memref<128x128xbf16, #tpu.memory_space<vmem>>, vector<128x128xbf16>
    %cst_65 = arith.constant dense<0.000000e+00> : vector<256x128xf32>
    %91 = tpu.matmul %89, %90, %cst_65 {dimension_numbers = #tpu.dot_dimension_numbers<[1], [0], [0], [1], [0, 0, 1, 1], [], []>} : vector<256x128xbf16>, vector<128x128xbf16>, vector<256x128xf32> -> vector<256x128xf32>
    %c0_66 = arith.constant 0 : index
    %c0_67 = arith.constant 0 : index
    %92 = vector.load %arg7[%c0_66, %c0_67] : memref<1x128xf32, #tpu.memory_space<vmem>>, vector<1x128xf32>
    %93 = vector.broadcast %92 : vector<1x128xf32> to vector<256x128xf32>
    %94 = arith.addf %91, %93 : vector<256x128xf32>
    %95 = tpu.transpose %94, [1, 0] : vector<256x128xf32> -> vector<128x256xf32>
    %96 = vector.extract_strided_slice %95 {offsets = [0, 0], sizes = [8, 256], strides = [1, 1]} : vector<128x256xf32> to vector<8x256xf32>
    %c0_68 = arith.constant 0 : index
    %c0_69 = arith.constant 0 : index
    %97 = vector.load %arg8[%c0_68, %c0_69] : memref<8x256xf32, #tpu.memory_space<vmem>>, vector<8x256xf32>
    tpu.vector_store %arg8[%c0_68, %c0_69], %96 {strides = array<i32>} : memref<8x256xf32, #tpu.memory_space<vmem>>, vector<8x256xf32>,
    return
  }
  func.func @transform_0(%arg0: i32) -> (i32, i32) {
    %c0_i32 = arith.constant 0 : i32
    %c0_i32_0 = arith.constant 0 : i32
    return %arg0, %c0_i32 : i32, i32
  }
  func.func @transform_1(%arg0: i32) -> (i32, i32) {
    %c0_i32 = arith.constant 0 : i32
    %c0_i32_0 = arith.constant 0 : i32
    %c0_i32_1 = arith.constant 0 : i32
    return %c0_i32, %c0_i32_0 : i32, i32
  }
  func.func @transform_2(%arg0: i32) -> (i32, i32) {
    %c0_i32 = arith.constant 0 : i32
    %c0_i32_0 = arith.constant 0 : i32
    %c0_i32_1 = arith.constant 0 : i32
    return %c0_i32, %c0_i32_0 : i32, i32
  }
  func.func @transform_3(%arg0: i32) -> (i32, i32, i32) {
    %c0_i32 = arith.constant 0 : i32
    %c0_i32_0 = arith.constant 0 : i32
    %c0_i32_1 = arith.constant 0 : i32
    %c0_i32_2 = arith.constant 0 : i32
    return %c0_i32, %c0_i32_0, %c0_i32_1 : i32, i32, i32
  }
  func.func @transform_4(%arg0: i32) -> (i32, i32, i32) {
    %c0_i32 = arith.constant 0 : i32
    %c0_i32_0 = arith.constant 0 : i32
    %c0_i32_1 = arith.constant 0 : i32
    %c0_i32_2 = arith.constant 0 : i32
    return %c0_i32, %c0_i32_0, %c0_i32_1 : i32, i32, i32
  }
  func.func @transform_5(%arg0: i32) -> (i32, i32) {
    %c0_i32 = arith.constant 0 : i32
    %c0_i32_0 = arith.constant 0 : i32
    %c0_i32_1 = arith.constant 0 : i32
    return %c0_i32, %c0_i32_0 : i32, i32
  }
  func.func @transform_6(%arg0: i32) -> (i32, i32) {
    %c0_i32 = arith.constant 0 : i32
    %c0_i32_0 = arith.constant 0 : i32
    %c0_i32_1 = arith.constant 0 : i32
    return %c0_i32, %c0_i32_0 : i32, i32
  }
  func.func @transform_7(%arg0: i32) -> (i32, i32) {
    %c0_i32 = arith.constant 0 : i32
    %c0_i32_0 = arith.constant 0 : i32
    return %c0_i32, %arg0 : i32, i32
  }
}

</mosaic_0001>

<llo_original>
// kernel: tpu_custom_call.1
$region0: #{tpu_custom_call.1}
  #allocation0 [shape = 'u32[]', space=smem, size = 0x4, offset = 0x4, fixed_abs, tag = 'smem constant byte address 0x4 - core index']
  #allocation1 [shape = 'u32[144,128]{1,0:T(1,128)}', space=vmem, size = 0x12000, scoped, tag = 'internal scratch']
  %s0 = inlined_call_operand.hbm [shape: f32[512,128], index: 0, kind: input, shape index: {}]
  %s1 = inlined_call_operand.hbm [shape: bf16[128,128], index: 1, kind: input, shape index: {}]
  %s2 = inlined_call_operand.vmem [shape: f32[1,128], index: 2, kind: input, shape index: {}]
  %s3 = inlined_call_operand.hbm [shape: bf16[8,128,128], index: 3, kind: input, shape index: {}]
  %s4 = inlined_call_operand.vmem [shape: f32[8,1,128], index: 4, kind: input, shape index: {}]
  %s5 = inlined_call_operand.hbm [shape: bf16[128,128], index: 5, kind: input, shape index: {}]
  %s6 = inlined_call_operand.vmem [shape: f32[1,128], index: 6, kind: input, shape index: {}]
  %s7 = inlined_call_operand.hbm [shape: f32[8,512], index: 7, kind: output, shape index: {}]
  %s8 = sld [smem:[#allocation0]]
  $region77: #{tpu_custom_call.1} parent=0
    _
  %s10 = ssub.s32 1, %s8
  %s11 = scalar_select 0, %s10, %s8
  $region1: #{tpu_custom_call.1} parent=0
    #allocation2 [shape = 'u8[262144]{0}', space=vmem, size = 0x40000, scoped, tag = 'input window, operand 0']
    #allocation3 [shape = 's32[2]{0}', space=sflag, size = 0x8, scoped, tag = 'scoped memory for tpu_custom_call.1']
    #allocation4 [shape = 's32[2]{0}', space=sflag, size = 0x8, scoped, tag = 'scoped memory for tpu_custom_call.1']
    #allocation5 [shape = 'u8[32768]{0}', space=vmem, size = 0x8000, scoped, tag = 'input window, operand 1, single buffered']
    #allocation6 [shape = 's32[1]{0}', space=sflag, size = 0x4, scoped, tag = 'scoped memory for tpu_custom_call.1']
    #allocation7 [shape = 'u8[262144]{0}', space=vmem, size = 0x40000, scoped, tag = 'input window, operand 3, single buffered']
    #allocation8 [shape = 'u8[32768]{0}', space=vmem, size = 0x8000, scoped, tag = 'input window, operand 5, single buffered']
    #allocation9 [shape = 's32[1]{0}', space=sflag, size = 0x4, scoped, tag = 'scoped memory for tpu_custom_call.1']
    #allocation10 [shape = 'u8[16384]{0}', space=vmem, size = 0x4000, scoped, tag = 'output window, operand 0']
    %12 = vsyncpa [#allocation3], 0
    %s13 = scalar_lea.sflag [#allocation3], 1
    %14 = vsyncpa %s13, 0
    %15 = vsyncpa [#allocation6], 0
    %16 = vsyncpa [#allocation9], 0
    %17 = vsyncpa [#allocation4], 0
    %s18 = scalar_lea.sflag [#allocation4], 1
    %19 = vsyncpa %s18, 0
    loop: start=0, step=1, limit=4
    $region2: #{tpu_custom_call.1} parent=1 // loop_pre_header
      _
    $region3: #{tpu_custom_call.1} parent=1 // loop_header
      %s21 = sphi 0, %s25
      %p22 = scmp.ge.s32.totalorder %s21, 4
      %s31 = sphi 0, %s33
      %s34 = sphi 0, %s31
      %s35 = sphi 0, %s34
      %s51 = sphi 0, %s35
      %s55 = sphi 0, %s55
      %s57 = sphi 0, %s55
      %s58 = sphi 0, %s57
      %s72 = sphi 0, %s58
      %s76 = sphi 0, %s76
      %s78 = sphi 0, %s76
      %s79 = sphi 0, %s78
      %s93 = sphi 0, %s79
      %s97 = sphi 0, %s97
      %s99 = sphi 0, %s97
      %s100 = sphi 0, %s99
      %s114 = sphi 0, %s100
      %s118 = sphi 0, %s118
      %s120 = sphi 0, %s118
      %s121 = sphi 0, %s120
      %s135 = sphi 0, %s121
      %s139 = sphi 0, %s139
      %s141 = sphi 0, %s139
      %s142 = sphi 0, %s141
      %s156 = sphi 0, %s142
      %s160 = sphi 0, %s160
      %s162 = sphi 0, %s160
      %s163 = sphi 0, %s162
      %s177 = sphi 0, %s163
      %s183 = sphi 0, %s185
      %s186 = sphi 0, %s183
      %s187 = sphi 0, %s186
      %s203 = sphi 0, %s187
    $region4: #{tpu_custom_call.1} parent=1 // loop_header_branch
      %24 = sbr.rel (%p22) target = $region8
    $region5: #{tpu_custom_call.1} parent=1 // loop_body
      %s26 = ssub.s32 %s21, 1
      %s27 = ssub.s32 %s21, 2
      %s28 = sadd.s32 %s21, 1
      %s29 = ssub.s32 %s21, %s28
      %p30 = scmp.eq.s32.totalorder %s29, 0
      %s32 = sadd.s32 %s31, 1
      %s33 = scalar_select %p30, %s31, %s32
      %p36 = pneg %p30
      %p37 = scmp.eq.s32.totalorder %s21, 1
      %p38 = por %p36, %p37
      %p39 = scmp.ne.s32.totalorder %s31, %s34
      %p40 = scmp.eq.s32.totalorder %s21, 0
      %p41 = por %p39, %p40
      %p42 = scmp.ne.s32.totalorder %s31, %s34
      %p43 = scmp.eq.s32.totalorder %s26, 1
      %p44 = por %p42, %p43
      %p45 = scmp.ne.s32.totalorder %s34, %s35
      %p46 = scmp.eq.s32.totalorder %s26, 0
      %p47 = por %p45, %p46
      %p48 = scmp.ne.s32.totalorder %s34, %s35
      %p49 = scmp.eq.s32.totalorder %s27, 1
      %p50 = por %p48, %p49
      %p52 = scmp.ne.s32.totalorder %s35, %s51
      %p53 = scmp.eq.s32.totalorder %s27, 0
      %p54 = por %p52, %p53
      %s56 = sadd.s32 %s55, 1
      %p59 = scmp.eq.s32.totalorder %s21, 1
      %p60 = scmp.ne.s32.totalorder %s55, %s57
      %p61 = scmp.eq.s32.totalorder %s21, 0
      %p62 = por %p60, %p61
      %p63 = scmp.ne.s32.totalorder %s55, %s57
      %p64 = scmp.eq.s32.totalorder %s26, 1
      %p65 = por %p63, %p64
      %p66 = scmp.ne.s32.totalorder %s57, %s58
      %p67 = scmp.eq.s32.totalorder %s26, 0
      %p68 = por %p66, %p67
      %p69 = scmp.ne.s32.totalorder %s57, %s58
      %p70 = scmp.eq.s32.totalorder %s27, 1
      %p71 = por %p69, %p70
      %p73 = scmp.ne.s32.totalorder %s58, %s72
      %p74 = scmp.eq.s32.totalorder %s27, 0
      %p75 = por %p73, %p74
      %s77 = sadd.s32 %s76, 1
      %p80 = scmp.eq.s32.totalorder %s21, 1
      %p81 = scmp.ne.s32.totalorder %s76, %s78
      %p82 = scmp.eq.s32.totalorder %s21, 0
      %p83 = por %p81, %p82
      %p84 = scmp.ne.s32.totalorder %s76, %s78
      %p85 = scmp.eq.s32.totalorder %s26, 1
      %p86 = por %p84, %p85
      %p87 = scmp.ne.s32.totalorder %s78, %s79
      %p88 = scmp.eq.s32.totalorder %s26, 0
      %p89 = por %p87, %p88
      %p90 = scmp.ne.s32.totalorder %s78, %s79
      %p91 = scmp.eq.s32.totalorder %s27, 1
      %p92 = por %p90, %p91
      %p94 = scmp.ne.s32.totalorder %s79, %s93
      %p95 = scmp.eq.s32.totalorder %s27, 0
      %p96 = por %p94, %p95
      %s98 = sadd.s32 %s97, 1
      %p101 = scmp.eq.s32.totalorder %s21, 1
      %p102 = scmp.ne.s32.totalorder %s97, %s99
      %p103 = scmp.eq.s32.totalorder %s21, 0
      %p104 = por %p102, %p103
      %p105 = scmp.ne.s32.totalorder %s97, %s99
      %p106 = scmp.eq.s32.totalorder %s26, 1
      %p107 = por %p105, %p106
      %p108 = scmp.ne.s32.totalorder %s99, %s100
      %p109 = scmp.eq.s32.totalorder %s26, 0
      %p110 = por %p108, %p109
      %p111 = scmp.ne.s32.totalorder %s99, %s100
      %p112 = scmp.eq.s32.totalorder %s27, 1
      %p113 = por %p111, %p112
      %p115 = scmp.ne.s32.totalorder %s100, %s114
      %p116 = scmp.eq.s32.totalorder %s27, 0
      %p117 = por %p115, %p116
      %s119 = sadd.s32 %s118, 1
      %p122 = scmp.eq.s32.totalorder %s21, 1
      %p123 = scmp.ne.s32.totalorder %s118, %s120
      %p124 = scmp.eq.s32.totalorder %s21, 0
      %p125 = por %p123, %p124
      %p126 = scmp.ne.s32.totalorder %s118, %s120
      %p127 = scmp.eq.s32.totalorder %s26, 1
      %p128 = por %p126, %p127
      %p129 = scmp.ne.s32.totalorder %s120, %s121
      %p130 = scmp.eq.s32.totalorder %s26, 0
      %p131 = por %p129, %p130
      %p132 = scmp.ne.s32.totalorder %s120, %s121
      %p133 = scmp.eq.s32.totalorder %s27, 1
      %p134 = por %p132, %p133
      %p136 = scmp.ne.s32.totalorder %s121, %s135
      %p137 = scmp.eq.s32.totalorder %s27, 0
      %p138 = por %p136, %p137
      %s140 = sadd.s32 %s139, 1
      %p143 = scmp.eq.s32.totalorder %s21, 1
      %p144 = scmp.ne.s32.totalorder %s139, %s141
      %p145 = scmp.eq.s32.totalorder %s21, 0
      %p146 = por %p144, %p145
      %p147 = scmp.ne.s32.totalorder %s139, %s141
      %p148 = scmp.eq.s32.totalorder %s26, 1
      %p149 = por %p147, %p148
      %p150 = scmp.ne.s32.totalorder %s141, %s142
      %p151 = scmp.eq.s32.totalorder %s26, 0
      %p152 = por %p150, %p151
      %p153 = scmp.ne.s32.totalorder %s141, %s142
      %p154 = scmp.eq.s32.totalorder %s27, 1
      %p155 = por %p153, %p154
      %p157 = scmp.ne.s32.totalorder %s142, %s156
      %p158 = scmp.eq.s32.totalorder %s27, 0
      %p159 = por %p157, %p158
      %s161 = sadd.s32 %s160, 1
      %p164 = scmp.eq.s32.totalorder %s21, 1
      %p165 = scmp.ne.s32.totalorder %s160, %s162
      %p166 = scmp.eq.s32.totalorder %s21, 0
      %p167 = por %p165, %p166
      %p168 = scmp.ne.s32.totalorder %s160, %s162
      %p169 = scmp.eq.s32.totalorder %s26, 1
      %p170 = por %p168, %p169
      %p171 = scmp.ne.s32.totalorder %s162, %s163
      %p172 = scmp.eq.s32.totalorder %s26, 0
      %p173 = por %p171, %p172
      %p174 = scmp.ne.s32.totalorder %s162, %s163
      %p175 = scmp.eq.s32.totalorder %s27, 1
      %p176 = por %p174, %p175
      %p178 = scmp.ne.s32.totalorder %s163, %s177
      %p179 = scmp.eq.s32.totalorder %s27, 0
      %p180 = por %p178, %p179
      %s181 = ssub.s32 %s21, %s28
      %p182 = scmp.eq.s32.totalorder %s181, 0
      %s184 = sadd.s32 %s183, 1
      %s185 = scalar_select %p182, %s183, %s184
      %p188 = pneg %p182
      %p189 = scmp.eq.s32.totalorder %s21, 1
      %p190 = por %p188, %p189
      %p191 = scmp.ne.s32.totalorder %s183, %s186
      %p192 = scmp.eq.s32.totalorder %s21, 0
      %p193 = por %p191, %p192
      %p194 = scmp.ne.s32.totalorder %s183, %s186
      %p195 = scmp.eq.s32.totalorder %s26, 1
      %p196 = por %p194, %p195
      %p197 = scmp.ne.s32.totalorder %s186, %s187
      %p198 = scmp.eq.s32.totalorder %s26, 0
      %p199 = por %p197, %p198
      %p200 = scmp.ne.s32.totalorder %s186, %s187
      %p201 = scmp.eq.s32.totalorder %s27, 1
      %p202 = por %p200, %p201
      %p204 = scmp.ne.s32.totalorder %s187, %s203
      %p205 = scmp.eq.s32.totalorder %s27, 0
      %p206 = por %p204, %p205
      %p207 = scmp.le.s32.totalorder 1, %s21
      %p208 = scmp.lt.s32.totalorder %s21, 3
      %p209 = pnand %p207, %p208
      %p210 = pneg %p209
      // Predicated region
      $region9: #{tpu_custom_call.1} parent=5 // pred_check
        _
      $region10: #{tpu_custom_call.1} parent=5 // pred_check_branch
        %212 = sbr.rel (%p209) target = $region12
      $region11: #{tpu_custom_call.1} parent=5 // pred_region
        %s213 = ssub.s32 %s21, 1
        // Predicated region
        $region13: #{tpu_custom_call.1} parent=11 // pred_check
          %p214 = pneg %p68
        $region14: #{tpu_custom_call.1} parent=11 // pred_check_branch
          %216 = sbr.rel (%p214) target = $region16
        $region15: #{tpu_custom_call.1} parent=11 // pred_region
          %s218 = ssub.s32 1024, 1024
          %219 = vsyncadd [#allocation6], %s218
          %s220 = sshll.u32 [#allocation5], 4
          %s221 = int_to_ptr.vmem [resolvable:$true] %s220
          %226 = dma.hbm_to_vmem [thread:$0]  %s1, 1024, %s221, [#allocation6], 64, 64, 4
        $region16: #{tpu_custom_call.1} parent=11 // pred_fallthru
          _
        // Predicated region
        $region17: #{tpu_custom_call.1} parent=11 // pred_check
          %p227 = pneg %p89
        $region18: #{tpu_custom_call.1} parent=11 // pred_check_branch
          %229 = sbr.rel (%p227) target = $region20
        $region19: #{tpu_custom_call.1} parent=11 // pred_region
          _
        $region20: #{tpu_custom_call.1} parent=11 // pred_fallthru
          _
        // Predicated region
        $region21: #{tpu_custom_call.1} parent=11 // pred_check
          %p230 = pneg %p110
        $region22: #{tpu_custom_call.1} parent=11 // pred_check_branch
          %232 = sbr.rel (%p230) target = $region24
        $region23: #{tpu_custom_call.1} parent=11 // pred_region
          %s234 = ssub.s32 8192, 8192
          %235 = vsyncadd [#allocation6], %s234
          %s236 = sshll.u32 [#allocation7], 4
          %s237 = int_to_ptr.vmem [resolvable:$true] %s236
          %242 = dma.hbm_to_vmem [thread:$0]  %s3, 8192, %s237, [#allocation6], 64, 64, 4
        $region24: #{tpu_custom_call.1} parent=11 // pred_fallthru
          _
        // Predicated region
        $region25: #{tpu_custom_call.1} parent=11 // pred_check
          %p243 = pneg %p131
        $region26: #{tpu_custom_call.1} parent=11 // pred_check_branch
          %245 = sbr.rel (%p243) target = $region28
        $region27: #{tpu_custom_call.1} parent=11 // pred_region
          _
        $region28: #{tpu_custom_call.1} parent=11 // pred_fallthru
          _
        // Predicated region
        $region29: #{tpu_custom_call.1} parent=11 // pred_check
          %p246 = pneg %p152
        $region30: #{tpu_custom_call.1} parent=11 // pred_check_branch
          %248 = sbr.rel (%p246) target = $region32
        $region31: #{tpu_custom_call.1} parent=11 // pred_region
          %s250 = ssub.s32 1024, 1024
          %251 = vsyncadd [#allocation9], %s250
          %s252 = sshll.u32 [#allocation8], 4
          %s253 = int_to_ptr.vmem [resolvable:$true] %s252
          %258 = dma.hbm_to_vmem [thread:$0]  %s5, 1024, %s253, [#allocation9], 64, 64, 4
        $region32: #{tpu_custom_call.1} parent=11 // pred_fallthru
          _
        // Predicated region
        $region33: #{tpu_custom_call.1} parent=11 // pred_check
          %p259 = pneg %p173
        $region34: #{tpu_custom_call.1} parent=11 // pred_check_branch
          %261 = sbr.rel (%p259) target = $region36
        $region35: #{tpu_custom_call.1} parent=11 // pred_region
          _
        $region36: #{tpu_custom_call.1} parent=11 // pred_fallthru
          _
      $region12: #{tpu_custom_call.1} parent=5 // pred_fallthru
        _
      %p262 = scmp.lt.s32.totalorder %s21, 2
      // Predicated region
      $region37: #{tpu_custom_call.1} parent=5 // pred_check
        %p263 = pneg %p262
      $region38: #{tpu_custom_call.1} parent=5 // pred_check_branch
        %265 = sbr.rel (%p263) target = $region40
      $region39: #{tpu_custom_call.1} parent=5 // pred_region
        // Predicated region
        $region41: #{tpu_custom_call.1} parent=39 // pred_check
          %p266 = pneg %p41
        $region42: #{tpu_custom_call.1} parent=39 // pred_check_branch
          %268 = sbr.rel (%p266) target = $region44
        $region43: #{tpu_custom_call.1} parent=39 // pred_region
          %s269 = sand.u32 %s31, 1
          %s270 = scalar_lea.sflag [#allocation3], %s269
          %s271 = sand.u32 %s31, 1
          %s272 = smul.addr %s271, 256
          %s273 = scalar_lea.vmem [#allocation2], %s272
          %s274 = smul.u32 32, %s21
          %s276 = ssub.s32 4096, 4096
          %277 = vsyncadd %s270, %s276
          %s278 = smul.addr %s274, 128
          %s279 = scalar_lea.hbm %s0, %s278
          %s280 = sshll.u32 %s273, 4
          %s281 = int_to_ptr.vmem [resolvable:$true] %s280
          %286 = dma.hbm_to_vmem [thread:$0]  %s279, 4096, %s281, %s270, 128, 128, 8
        $region44: #{tpu_custom_call.1} parent=39 // pred_fallthru
          _
      $region40: #{tpu_custom_call.1} parent=5 // pred_fallthru
        _
      %p287 = scmp.le.s32.totalorder 1, %s21
      %p288 = scmp.lt.s32.totalorder %s21, 3
      %p289 = pnand %p287, %p288
      %p290 = pneg %p289
      // Predicated region
      $region45: #{tpu_custom_call.1} parent=5 // pred_check
        _
      $region46: #{tpu_custom_call.1} parent=5 // pred_check_branch
        %292 = sbr.rel (%p289) target = $region48
      $region47: #{tpu_custom_call.1} parent=5 // pred_region
        %s293 = ssub.s32 %s21, 1
        %s294 = sand.u32 %s34, 1
        %s295 = scalar_lea.sflag [#allocation3], %s294
        %s296 = sand.u32 %s34, 1
        %s297 = smul.addr %s296, 256
        %s298 = scalar_lea.vmem [#allocation2], %s297
        // Predicated region
        $region49: #{tpu_custom_call.1} parent=47 // pred_check
          %p299 = pneg %p47
        $region50: #{tpu_custom_call.1} parent=47 // pred_check_branch
          %301 = sbr.rel (%p299) target = $region52
        $region51: #{tpu_custom_call.1} parent=47 // pred_region
          %302 = dma.done %s295, 4096
        $region52: #{tpu_custom_call.1} parent=47 // pred_fallthru
          _
        // Predicated region
        $region53: #{tpu_custom_call.1} parent=47 // pred_check
          %p303 = pneg %p68
        $region54: #{tpu_custom_call.1} parent=47 // pred_check_branch
          %305 = sbr.rel (%p303) target = $region56
        $region55: #{tpu_custom_call.1} parent=47 // pred_region
          %306 = dma.done [#allocation6], 1024
        $region56: #{tpu_custom_call.1} parent=47 // pred_fallthru
          _
        // Predicated region
        $region57: #{tpu_custom_call.1} parent=47 // pred_check
          %p307 = pneg %p110
        $region58: #{tpu_custom_call.1} parent=47 // pred_check_branch
          %309 = sbr.rel (%p307) target = $region60
        $region59: #{tpu_custom_call.1} parent=47 // pred_region
          %310 = dma.done [#allocation6], 8192
        $region60: #{tpu_custom_call.1} parent=47 // pred_fallthru
          _
        // Predicated region
        $region61: #{tpu_custom_call.1} parent=47 // pred_check
          %p311 = pneg %p152
        $region62: #{tpu_custom_call.1} parent=47 // pred_check_branch
          %313 = sbr.rel (%p311) target = $region64
        $region63: #{tpu_custom_call.1} parent=47 // pred_region
          %314 = dma.done [#allocation9], 1024
        $region64: #{tpu_custom_call.1} parent=47 // pred_fallthru
          _
        %s315 = sand.u32 %s34, 1
        %s316 = scalar_lea.sflag [#allocation3], %s315
        %s317 = sand.u32 %s34, 1
        %s318 = smul.addr %s317, 256
        %s319 = scalar_lea.vmem [#allocation2], %s318
        %p320 = pneg %p47
        %p321 = pneg %p44
        %p322 = pneg %p68
        %p323 = pneg %p65
        %p324 = pneg %p89
        %p325 = pneg %p86
        %p326 = pneg %p110
        %p327 = pneg %p107
        %p328 = pneg %p131
        %p329 = pneg %p128
        %p330 = pneg %p152
        %p331 = pneg %p149
        %p332 = pneg %p173
        %p333 = pneg %p170
        %p334 = pneg %p199
        %p335 = pneg %p196
        %s336 = sand.u32 %s186, 1
        %s337 = scalar_lea.sflag [#allocation4], %s336
        %s338 = sand.u32 %s186, 1
        %s339 = smul.addr %s338, 16
        %s340 = scalar_lea.vmem [#allocation10], %s339
        %s341 = smul.u32 32, %s26
        %s342 = smul.u32 2, %s26
        %v344 = vld [vmem:[%s298] sm:$0xff]
        %v345 = vld [vmem:[%s298 + $0x8] sm:$0xff]
        %v346 = vld [vmem:[%s298 + $0x10] sm:$0xff]
        %v347 = vld [vmem:[%s298 + $0x18] sm:$0xff]
        %v348 = vld [vmem:[%s298 + $0x20] sm:$0xff]
        %v349 = vld [vmem:[%s298 + $0x28] sm:$0xff]
        %v350 = vld [vmem:[%s298 + $0x30] sm:$0xff]
        %v351 = vld [vmem:[%s298 + $0x38] sm:$0xff]
        %v352 = vld [vmem:[%s298 + $0x40] sm:$0xff]
        %v353 = vld [vmem:[%s298 + $0x48] sm:$0xff]
        %v354 = vld [vmem:[%s298 + $0x50] sm:$0xff]
        %v355 = vld [vmem:[%s298 + $0x58] sm:$0xff]
        %v356 = vld [vmem:[%s298 + $0x60] sm:$0xff]
        %v357 = vld [vmem:[%s298 + $0x68] sm:$0xff]
        %v358 = vld [vmem:[%s298 + $0x70] sm:$0xff]
        %v359 = vld [vmem:[%s298 + $0x78] sm:$0xff]
        %v360 = vld [vmem:[%s298 + $0x80] sm:$0xff]
        %v361 = vld [vmem:[%s298 + $0x88] sm:$0xff]
        %v362 = vld [vmem:[%s298 + $0x90] sm:$0xff]
        %v363 = vld [vmem:[%s298 + $0x98] sm:$0xff]
        %v364 = vld [vmem:[%s298 + $0xa0] sm:$0xff]
        %v365 = vld [vmem:[%s298 + $0xa8] sm:$0xff]
        %v366 = vld [vmem:[%s298 + $0xb0] sm:$0xff]
        %v367 = vld [vmem:[%s298 + $0xb8] sm:$0xff]
        %v368 = vld [vmem:[%s298 + $0xc0] sm:$0xff]
        %v369 = vld [vmem:[%s298 + $0xc8] sm:$0xff]
        %v370 = vld [vmem:[%s298 + $0xd0] sm:$0xff]
        %v371 = vld [vmem:[%s298 + $0xd8] sm:$0xff]
        %v372 = vld [vmem:[%s298 + $0xe0] sm:$0xff]
        %v373 = vld [vmem:[%s298 + $0xe8] sm:$0xff]
        %v374 = vld [vmem:[%s298 + $0xf0] sm:$0xff]
        %v375 = vld [vmem:[%s298 + $0xf8] sm:$0xff]
        %v376 = vpack.c.bf16 %v345, %v344
        %v377 = vpack.c.bf16 %v347, %v346
        %v378 = vpack.c.bf16 %v349, %v348
        %v379 = vpack.c.bf16 %v351, %v350
        %v380 = vpack.c.bf16 %v353, %v352
        %v381 = vpack.c.bf16 %v355, %v354
        %v382 = vpack.c.bf16 %v357, %v356
        %v383 = vpack.c.bf16 %v359, %v358
        %v384 = vpack.c.bf16 %v361, %v360
        %v385 = vpack.c.bf16 %v363, %v362
        %v386 = vpack.c.bf16 %v365, %v364
        %v387 = vpack.c.bf16 %v367, %v366
        %v388 = vpack.c.bf16 %v369, %v368
        %v389 = vpack.c.bf16 %v371, %v370
        %v390 = vpack.c.bf16 %v373, %v372
        %v391 = vpack.c.bf16 %v375, %v374
        %v392 = vld [vmem:[#allocation5] sm:$0xf]
        %v393 = vld [vmem:[#allocation5 + $0x4] sm:$0xf]
        %v394 = vld [vmem:[#allocation5 + $0x8] sm:$0xf]
        %v395 = vld [vmem:[#allocation5 + $0xc] sm:$0xf]
        %v396 = vld [vmem:[#allocation5 + $0x10] sm:$0xf]
        %v397 = vld [vmem:[#allocation5 + $0x14] sm:$0xf]
        %v398 = vld [vmem:[#allocation5 + $0x18] sm:$0xf]
        %v399 = vld [vmem:[#allocation5 + $0x1c] sm:$0xf]
        %v400 = vld [vmem:[#allocation5 + $0x20] sm:$0xf]
        %v401 = vld [vmem:[#allocation5 + $0x24] sm:$0xf]
        %v402 = vld [vmem:[#allocation5 + $0x28] sm:$0xf]
        %v403 = vld [vmem:[#allocation5 + $0x2c] sm:$0xf]
        %v404 = vld [vmem:[#allocation5 + $0x30] sm:$0xf]
        %v405 = vld [vmem:[#allocation5 + $0x34] sm:$0xf]
        %v406 = vld [vmem:[#allocation5 + $0x38] sm:$0xf]
        %v407 = vld [vmem:[#allocation5 + $0x3c] sm:$0xf]
        %v408 = vld [vmem:[%s2] sm:$0x1]
        %v410 = vlaneseq
        %v411 = vshrl.u32 %v410, 7
        %v412 = vsub.s32 0, %v411
        %v413 = vrot.slane %v408, %v412
        %v431 = vunpack.c.l.b16 %v392
        %v432 = vunpack.c.l.b16 %v393
        %v433 = vunpack.c.l.b16 %v394
        %v434 = vunpack.c.l.b16 %v395
        %v435 = vunpack.c.l.b16 %v396
        %v436 = vunpack.c.l.b16 %v397
        %v437 = vunpack.c.l.b16 %v398
        %v438 = vunpack.c.l.b16 %v399
        %v439 = vunpack.c.l.b16 %v400
        %v440 = vunpack.c.l.b16 %v401
        %v441 = vunpack.c.l.b16 %v402
        %v442 = vunpack.c.l.b16 %v403
        %v443 = vunpack.c.l.b16 %v404
        %v444 = vunpack.c.l.b16 %v405
        %v445 = vunpack.c.l.b16 %v406
        %v446 = vunpack.c.l.b16 %v407
        %v447 = vpack.c.b16 %v432, %v431
        %v448 = vpack.c.b16 %v434, %v433
        %v449 = vpack.c.b16 %v436, %v435
        %v450 = vpack.c.b16 %v438, %v437
        %v451 = vpack.c.b16 %v440, %v439
        %v452 = vpack.c.b16 %v442, %v441
        %v453 = vpack.c.b16 %v444, %v443
        %v454 = vpack.c.b16 %v446, %v445
        %463 = vmatprep.subr.bf16.mxu0 0
        %464 = vmatpush1.bf16.msra.mxu0 %v447
        %465 = vmatprep.subr.bf16.mxu0 0
        %466 = vmatpush1.bf16.msra.mxu0 %v448
        %467 = vmatprep.subr.bf16.mxu0 0
        %468 = vmatpush1.bf16.msra.mxu0 %v449
        %469 = vmatprep.subr.bf16.mxu0 0
        %470 = vmatpush1.bf16.msra.mxu0 %v450
        %471 = vmatprep.subr.bf16.mxu0 0
        %472 = vmatpush1.bf16.msra.mxu0 %v451
        %473 = vmatprep.subr.bf16.mxu0 0
        %474 = vmatpush1.bf16.msra.mxu0 %v452
        %475 = vmatprep.subr.bf16.mxu0 0
        %476 = vmatpush1.bf16.msra.mxu0 %v453
        %477 = vmatprep.subr.bf16.mxu0 0
        %478 = vmatpush1.bf16.msra.mxu0 %v454
        %479 = vmatprep.subr.bf16.mxu0 0
        %480 = vmatpush1.bf16.msra.mxu0 0
        %481 = vmatprep.subr.bf16.mxu0 0
        %482 = vmatpush1.bf16.msra.mxu0 0
        %483 = vmatprep.subr.bf16.mxu0 0
        %484 = vmatpush1.bf16.msra.mxu0 0
        %485 = vmatprep.subr.bf16.mxu0 0
        %486 = vmatpush1.bf16.msra.mxu0 0
        %487 = vmatprep.subr.bf16.mxu0 0
        %488 = vmatpush1.bf16.msra.mxu0 0
        %489 = vmatprep.subr.bf16.mxu0 0
        %490 = vmatpush1.bf16.msra.mxu0 0
        %491 = vmatprep.subr.bf16.mxu0 0
        %492 = vmatpush1.bf16.msra.mxu0 0
        %493 = vmatprep.subr.bf16.mxu0 0
        %494 = vmatpush1.bf16.msra.mxu0 0
        %495 = vmatprep.mubr.bf16.mxu0 0
        %496 = vmatmul.mubr.bf16.gmra.mrb[0].mxu0 %v376
        %v497 = vpop.f32.mrb[0].mxu0
        %v498 = vadd.f32 %v413, %v497
        %v499 = vpop.f32.mrb[0].mxu0
        %v500 = vpop.f32.mrb[0].mxu0
        %v501 = vadd.f32 %v413, %v500
        %v502 = vpop.f32.mrb[0].mxu0
        %503 = vmatprep.mubr.bf16.mxu0 0
        %504 = vmatmul.mubr.bf16.gmra.mrb[0].mxu0 %v377
        %v505 = vpop.f32.mrb[0].mxu0
        %v506 = vadd.f32 %v413, %v505
        %v507 = vpop.f32.mrb[0].mxu0
        %v508 = vpop.f32.mrb[0].mxu0
        %v509 = vadd.f32 %v413, %v508
        %v510 = vpop.f32.mrb[0].mxu0
        %511 = vmatprep.mubr.bf16.mxu0 0
        %512 = vmatmul.mubr.bf16.gmra.mrb[0].mxu0 %v378
        %v513 = vpop.f32.mrb[0].mxu0
        %v514 = vadd.f32 %v413, %v513
        %v515 = vpop.f32.mrb[0].mxu0
        %v516 = vpop.f32.mrb[0].mxu0
        %v517 = vadd.f32 %v413, %v516
        %v518 = vpop.f32.mrb[0].mxu0
        %519 = vmatprep.mubr.bf16.mxu0 0
        %520 = vmatmul.mubr.bf16.gmra.mrb[0].mxu0 %v379
        %v521 = vpop.f32.mrb[0].mxu0
        %v522 = vadd.f32 %v413, %v521
        %v523 = vpop.f32.mrb[0].mxu0
        %v524 = vpop.f32.mrb[0].mxu0
        %v525 = vadd.f32 %v413, %v524
        %v526 = vpop.f32.mrb[0].mxu0
        %527 = vmatprep.mubr.bf16.mxu0 0
        %528 = vmatmul.mubr.bf16.gmra.mrb[0].mxu0 %v380
        %v529 = vpop.f32.mrb[0].mxu0
        %v530 = vadd.f32 %v413, %v529
        %v531 = vpop.f32.mrb[0].mxu0
        %v532 = vpop.f32.mrb[0].mxu0
        %v533 = vadd.f32 %v413, %v532
        %v534 = vpop.f32.mrb[0].mxu0
        %535 = vmatprep.mubr.bf16.mxu0 0
        %536 = vmatmul.mubr.bf16.gmra.mrb[0].mxu0 %v381
        %v537 = vpop.f32.mrb[0].mxu0
        %v538 = vadd.f32 %v413, %v537
        %v539 = vpop.f32.mrb[0].mxu0
        %v540 = vpop.f32.mrb[0].mxu0
        %v541 = vadd.f32 %v413, %v540
        %v542 = vpop.f32.mrb[0].mxu0
        %543 = vmatprep.mubr.bf16.mxu0 0
        %544 = vmatmul.mubr.bf16.gmra.mrb[0].mxu0 %v382
        %v545 = vpop.f32.mrb[0].mxu0
        %v546 = vadd.f32 %v413, %v545
        %v547 = vpop.f32.mrb[0].mxu0
        %v548 = vpop.f32.mrb[0].mxu0
        %v549 = vadd.f32 %v413, %v548
        %v550 = vpop.f32.mrb[0].mxu0
        %551 = vmatprep.mubr.bf16.mxu0 0
        %552 = vmatmul.mubr.bf16.gmra.mrb[0].mxu0 %v383
        %v553 = vpop.f32.mrb[0].mxu0
        %v554 = vadd.f32 %v413, %v553
        %v555 = vpop.f32.mrb[0].mxu0
        %v556 = vpop.f32.mrb[0].mxu0
        %v557 = vadd.f32 %v413, %v556
        %v558 = vpop.f32.mrb[0].mxu0
        %559 = vmatprep.mubr.bf16.mxu0 0
        %560 = vmatmul.mubr.bf16.gmra.mrb[0].mxu0 %v384
        %v561 = vpop.f32.mrb[0].mxu0
        %v562 = vadd.f32 %v413, %v561
        %v563 = vpop.f32.mrb[0].mxu0
        %v564 = vpop.f32.mrb[0].mxu0
        %v565 = vadd.f32 %v413, %v564
        %v566 = vpop.f32.mrb[0].mxu0
        %567 = vmatprep.mubr.bf16.mxu0 0
        %568 = vmatmul.mubr.bf16.gmra.mrb[0].mxu0 %v385
        %v569 = vpop.f32.mrb[0].mxu0
        %v570 = vadd.f32 %v413, %v569
        %v571 = vpop.f32.mrb[0].mxu0
        %v572 = vpop.f32.mrb[0].mxu0
        %v573 = vadd.f32 %v413, %v572
        %v574 = vpop.f32.mrb[0].mxu0
        %575 = vmatprep.mubr.bf16.mxu0 0
        %576 = vmatmul.mubr.bf16.gmra.mrb[0].mxu0 %v386
        %v577 = vpop.f32.mrb[0].mxu0
        %v578 = vadd.f32 %v413, %v577
        %v579 = vpop.f32.mrb[0].mxu0
        %v580 = vpop.f32.mrb[0].mxu0
        %v581 = vadd.f32 %v413, %v580
        %v582 = vpop.f32.mrb[0].mxu0
        %583 = vmatprep.mubr.bf16.mxu0 0
        %584 = vmatmul.mubr.bf16.gmra.mrb[0].mxu0 %v387
        %v585 = vpop.f32.mrb[0].mxu0
        %v586 = vadd.f32 %v413, %v585
        %v587 = vpop.f32.mrb[0].mxu0
        %v588 = vpop.f32.mrb[0].mxu0
        %v589 = vadd.f32 %v413, %v588
        %v590 = vpop.f32.mrb[0].mxu0
        %591 = vmatprep.mubr.bf16.mxu0 0
        %592 = vmatmul.mubr.bf16.gmra.mrb[0].mxu0 %v388
        %v593 = vpop.f32.mrb[0].mxu0
        %v594 = vadd.f32 %v413, %v593
        %v595 = vpop.f32.mrb[0].mxu0
        %v596 = vpop.f32.mrb[0].mxu0
        %v597 = vadd.f32 %v413, %v596
        %v598 = vpop.f32.mrb[0].mxu0
        %599 = vmatprep.mubr.bf16.mxu0 0
        %600 = vmatmul.mubr.bf16.gmra.mrb[0].mxu0 %v389
        %v601 = vpop.f32.mrb[0].mxu0
        %v602 = vadd.f32 %v413, %v601
        %v603 = vpop.f32.mrb[0].mxu0
        %v604 = vpop.f32.mrb[0].mxu0
        %v605 = vadd.f32 %v413, %v604
        %v606 = vpop.f32.mrb[0].mxu0
        %607 = vmatprep.mubr.bf16.mxu0 0
        %608 = vmatmul.mubr.bf16.gmra.mrb[0].mxu0 %v390
        %v609 = vpop.f32.mrb[0].mxu0
        %v610 = vadd.f32 %v413, %v609
        %v611 = vpop.f32.mrb[0].mxu0
        %v612 = vpop.f32.mrb[0].mxu0
        %v613 = vadd.f32 %v413, %v612
        %v614 = vpop.f32.mrb[0].mxu0
        %615 = vmatprep.mubr.bf16.mxu0 0
        %616 = vmatmul.mubr.bf16.gmra.mrb[0].mxu0 %v391
        %v617 = vpop.f32.mrb[0].mxu0
        %v618 = vadd.f32 %v413, %v617
        %v619 = vpop.f32.mrb[0].mxu0
        %v620 = vpop.f32.mrb[0].mxu0
        %v621 = vadd.f32 %v413, %v620
        %v622 = vpop.f32.mrb[0].mxu0
        %623 = vdwg.mxu0
        %v624 = vmax.f32 %v498, 0.0
        %v625 = vmax.f32 %v501, 0.0
        %v626 = vmax.f32 %v506, 0.0
        %v627 = vmax.f32 %v509, 0.0
        %v628 = vmax.f32 %v514, 0.0
        %v629 = vmax.f32 %v517, 0.0
        %v630 = vmax.f32 %v522, 0.0
        %v631 = vmax.f32 %v525, 0.0
        %v632 = vmax.f32 %v530, 0.0
        %v633 = vmax.f32 %v533, 0.0
        %v634 = vmax.f32 %v538, 0.0
        %v635 = vmax.f32 %v541, 0.0
        %v636 = vmax.f32 %v546, 0.0
        %v637 = vmax.f32 %v549, 0.0
        %v638 = vmax.f32 %v554, 0.0
        %v639 = vmax.f32 %v557, 0.0
        %v640 = vmax.f32 %v562, 0.0
        %v641 = vmax.f32 %v565, 0.0
        %v642 = vmax.f32 %v570, 0.0
        %v643 = vmax.f32 %v573, 0.0
        %v644 = vmax.f32 %v578, 0.0
        %v645 = vmax.f32 %v581, 0.0
        %v646 = vmax.f32 %v586, 0.0
        %v647 = vmax.f32 %v589, 0.0
        %v648 = vmax.f32 %v594, 0.0
        %v649 = vmax.f32 %v597, 0.0
        %v650 = vmax.f32 %v602, 0.0
        %v651 = vmax.f32 %v605, 0.0
        %v652 = vmax.f32 %v610, 0.0
        %v653 = vmax.f32 %v613, 0.0
        %v654 = vmax.f32 %v618, 0.0
        %v655 = vmax.f32 %v621, 0.0
        %v656 = vpack.c.bf16 %v625, %v624
        %v657 = vpack.c.bf16 %v627, %v626
        %v658 = vpack.c.bf16 %v629, %v628
        %v659 = vpack.c.bf16 %v631, %v630
        %v660 = vpack.c.bf16 %v633, %v632
        %v661 = vpack.c.bf16 %v635, %v634
        %v662 = vpack.c.bf16 %v637, %v636
        %v663 = vpack.c.bf16 %v639, %v638
        %v664 = vpack.c.bf16 %v641, %v640
        %v665 = vpack.c.bf16 %v643, %v642
        %v666 = vpack.c.bf16 %v645, %v644
        %v667 = vpack.c.bf16 %v647, %v646
        %v668 = vpack.c.bf16 %v649, %v648
        %v669 = vpack.c.bf16 %v651, %v650
        %v670 = vpack.c.bf16 %v653, %v652
        %v671 = vpack.c.bf16 %v655, %v654
        %v672 = vld [vmem:[#allocation7] sm:$0xf]
        %v673 = vld [vmem:[#allocation7 + $0x4] sm:$0xf]
        %v674 = vld [vmem:[#allocation7 + $0x8] sm:$0xf]
        %v675 = vld [vmem:[#allocation7 + $0xc] sm:$0xf]
        %v676 = vld [vmem:[#allocation7 + $0x10] sm:$0xf]
        %v677 = vld [vmem:[#allocation7 + $0x14] sm:$0xf]
        %v678 = vld [vmem:[#allocation7 + $0x18] sm:$0xf]
        %v679 = vld [vmem:[#allocation7 + $0x1c] sm:$0xf]
        %v680 = vld [vmem:[#allocation7 + $0x20] sm:$0xf]
        %v681 = vld [vmem:[#allocation7 + $0x24] sm:$0xf]
        %v682 = vld [vmem:[#allocation7 + $0x28] sm:$0xf]
        %v683 = vld [vmem:[#allocation7 + $0x2c] sm:$0xf]
        %v684 = vld [vmem:[#allocation7 + $0x30] sm:$0xf]
        %v685 = vld [vmem:[#allocation7 + $0x34] sm:$0xf]
        %v686 = vld [vmem:[#allocation7 + $0x38] sm:$0xf]
        %v687 = vld [vmem:[#allocation7 + $0x3c] sm:$0xf]
        %v688 = vld [vmem:[%s4] sm:$0x1]
        %v690 = vlaneseq
        %v691 = vshrl.u32 %v690, 7
        %v692 = vsub.s32 0, %v691
        %v693 = vrot.slane %v688, %v692
        %v711 = vunpack.c.l.b16 %v672
        %v712 = vunpack.c.l.b16 %v673
        %v713 = vunpack.c.l.b16 %v674
        %v714 = vunpack.c.l.b16 %v675
        %v715 = vunpack.c.l.b16 %v676
        %v716 = vunpack.c.l.b16 %v677
        %v717 = vunpack.c.l.b16 %v678
        %v718 = vunpack.c.l.b16 %v679
        %v719 = vunpack.c.l.b16 %v680
        %v720 = vunpack.c.l.b16 %v681
        %v721 = vunpack.c.l.b16 %v682
        %v722 = vunpack.c.l.b16 %v683
        %v723 = vunpack.c.l.b16 %v684
        %v724 = vunpack.c.l.b16 %v685
        %v725 = vunpack.c.l.b16 %v686
        %v726 = vunpack.c.l.b16 %v687
        %v727 = vpack.c.b16 %v712, %v711
        %v728 = vpack.c.b16 %v714, %v713
        %v729 = vpack.c.b16 %v716, %v715
        %v730 = vpack.c.b16 %v718, %v717
        %v731 = vpack.c.b16 %v720, %v719
        %v732 = vpack.c.b16 %v722, %v721
        %v733 = vpack.c.b16 %v724, %v723
        %v734 = vpack.c.b16 %v726, %v725
        %743 = vmatprep.subr.bf16.mxu0 0
        %744 = vmatpush1.bf16.msra.mxu0 %v727
        %745 = vmatprep.subr.bf16.mxu0 0
        %746 = vmatpush1.bf16.msra.mxu0 %v728
        %747 = vmatprep.subr.bf16.mxu0 0
        %748 = vmatpush1.bf16.msra.mxu0 %v729
        %749 = vmatprep.subr.bf16.mxu0 0
        %750 = vmatpush1.bf16.msra.mxu0 %v730
        %751 = vmatprep.subr.bf16.mxu0 0
        %752 = vmatpush1.bf16.msra.mxu0 %v731
        %753 = vmatprep.subr.bf16.mxu0 0
        %754 = vmatpush1.bf16.msra.mxu0 %v732
        %755 = vmatprep.subr.bf16.mxu0 0
        %756 = vmatpush1.bf16.msra.mxu0 %v733
        %757 = vmatprep.subr.bf16.mxu0 0
        %758 = vmatpush1.bf16.msra.mxu0 %v734
        %759 = vmatprep.subr.bf16.mxu0 0
        %760 = vmatpush1.bf16.msra.mxu0 0
        %761 = vmatprep.subr.bf16.mxu0 0
        %762 = vmatpush1.bf16.msra.mxu0 0
        %763 = vmatprep.subr.bf16.mxu0 0
        %764 = vmatpush1.bf16.msra.mxu0 0
        %765 = vmatprep.subr.bf16.mxu0 0
        %766 = vmatpush1.bf16.msra.mxu0 0
        %767 = vmatprep.subr.bf16.mxu0 0
        %768 = vmatpush1.bf16.msra.mxu0 0
        %769 = vmatprep.subr.bf16.mxu0 0
        %770 = vmatpush1.bf16.msra.mxu0 0
        %771 = vmatprep.subr.bf16.mxu0 0
        %772 = vmatpush1.bf16.msra.mxu0 0
        %773 = vmatprep.subr.bf16.mxu0 0
        %774 = vmatpush1.bf16.msra.mxu0 0
        %775 = vmatprep.mubr.bf16.mxu0 0
        %776 = vmatmul.mubr.bf16.gmra.mrb[0].mxu0 %v656
        %v777 = vpop.f32.mrb[0].mxu0
        %v778 = vadd.f32 %v693, %v777
        %v779 = vpop.f32.mrb[0].mxu0
        %v780 = vpop.f32.mrb[0].mxu0
        %v781 = vadd.f32 %v693, %v780
        %v782 = vpop.f32.mrb[0].mxu0
        %783 = vmatprep.mubr.bf16.mxu0 0
        %784 = vmatmul.mubr.bf16.gmra.mrb[0].mxu0 %v657
        %v785 = vpop.f32.mrb[0].mxu0
        %v786 = vadd.f32 %v693, %v785
        %v787 = vpop.f32.mrb[0].mxu0
        %v788 = vpop.f32.mrb[0].mxu0
        %v789 = vadd.f32 %v693, %v788
        %v790 = vpop.f32.mrb[0].mxu0
        %791 = vmatprep.mubr.bf16.mxu0 0
        %792 = vmatmul.mubr.bf16.gmra.mrb[0].mxu0 %v658
        %v793 = vpop.f32.mrb[0].mxu0
        %v794 = vadd.f32 %v693, %v793
        %v795 = vpop.f32.mrb[0].mxu0
        %v796 = vpop.f32.mrb[0].mxu0
        %v797 = vadd.f32 %v693, %v796
        %v798 = vpop.f32.mrb[0].mxu0
        %799 = vmatprep.mubr.bf16.mxu0 0
        %800 = vmatmul.mubr.bf16.gmra.mrb[0].mxu0 %v659
        %v801 = vpop.f32.mrb[0].mxu0
        %v802 = vadd.f32 %v693, %v801
        %v803 = vpop.f32.mrb[0].mxu0
        %v804 = vpop.f32.mrb[0].mxu0
        %v805 = vadd.f32 %v693, %v804
        %v806 = vpop.f32.mrb[0].mxu0
        %807 = vmatprep.mubr.bf16.mxu0 0
        %808 = vmatmul.mubr.bf16.gmra.mrb[0].mxu0 %v660
        %v809 = vpop.f32.mrb[0].mxu0
        %v810 = vadd.f32 %v693, %v809
        %v811 = vpop.f32.mrb[0].mxu0
        %v812 = vpop.f32.mrb[0].mxu0
        %v813 = vadd.f32 %v693, %v812
        %v814 = vpop.f32.mrb[0].mxu0
        %815 = vmatprep.mubr.bf16.mxu0 0
        %816 = vmatmul.mubr.bf16.gmra.mrb[0].mxu0 %v661
        %v817 = vpop.f32.mrb[0].mxu0
        %v818 = vadd.f32 %v693, %v817
        %v819 = vpop.f32.mrb[0].mxu0
        %v820 = vpop.f32.mrb[0].mxu0
        %v821 = vadd.f32 %v693, %v820
        %v822 = vpop.f32.mrb[0].mxu0
        %823 = vmatprep.mubr.bf16.mxu0 0
        %824 = vmatmul.mubr.bf16.gmra.mrb[0].mxu0 %v662
        %v825 = vpop.f32.mrb[0].mxu0
        %v826 = vadd.f32 %v693, %v825
        %v827 = vpop.f32.mrb[0].mxu0
        %v828 = vpop.f32.mrb[0].mxu0
        %v829 = vadd.f32 %v693, %v828
        %v830 = vpop.f32.mrb[0].mxu0
        %831 = vmatprep.mubr.bf16.mxu0 0
        %832 = vmatmul.mubr.bf16.gmra.mrb[0].mxu0 %v663
        %v833 = vpop.f32.mrb[0].mxu0
        %v834 = vadd.f32 %v693, %v833
        %v835 = vpop.f32.mrb[0].mxu0
        %v836 = vpop.f32.mrb[0].mxu0
        %v837 = vadd.f32 %v693, %v836
        %v838 = vpop.f32.mrb[0].mxu0
        %839 = vmatprep.mubr.bf16.mxu0 0
        %840 = vmatmul.mubr.bf16.gmra.mrb[0].mxu0 %v664
        %v841 = vpop.f32.mrb[0].mxu0
        %v842 = vadd.f32 %v693, %v841
        %v843 = vpop.f32.mrb[0].mxu0
        %v844 = vpop.f32.mrb[0].mxu0
        %v845 = vadd.f32 %v693, %v844
        %v846 = vpop.f32.mrb[0].mxu0
        %847 = vmatprep.mubr.bf16.mxu0 0
        %848 = vmatmul.mubr.bf16.gmra.mrb[0].mxu0 %v665
        %v849 = vpop.f32.mrb[0].mxu0
        %v850 = vadd.f32 %v693, %v849
        %v851 = vpop.f32.mrb[0].mxu0
        %v852 = vpop.f32.mrb[0].mxu0
        %v853 = vadd.f32 %v693, %v852
        %v854 = vpop.f32.mrb[0].mxu0
        %855 = vmatprep.mubr.bf16.mxu0 0
        %856 = vmatmul.mubr.bf16.gmra.mrb[0].mxu0 %v666
        %v857 = vpop.f32.mrb[0].mxu0
        %v858 = vadd.f32 %v693, %v857
        %v859 = vpop.f32.mrb[0].mxu0
        %v860 = vpop.f32.mrb[0].mxu0
        %v861 = vadd.f32 %v693, %v860
        %v862 = vpop.f32.mrb[0].mxu0
        %863 = vmatprep.mubr.bf16.mxu0 0
        %864 = vmatmul.mubr.bf16.gmra.mrb[0].mxu0 %v667
        %v865 = vpop.f32.mrb[0].mxu0
        %v866 = vadd.f32 %v693, %v865
        %v867 = vpop.f32.mrb[0].mxu0
        %v868 = vpop.f32.mrb[0].mxu0
        %v869 = vadd.f32 %v693, %v868
        %v870 = vpop.f32.mrb[0].mxu0
        %871 = vmatprep.mubr.bf16.mxu0 0
        %872 = vmatmul.mubr.bf16.gmra.mrb[0].mxu0 %v668
        %v873 = vpop.f32.mrb[0].mxu0
        %v874 = vadd.f32 %v693, %v873
        %v875 = vpop.f32.mrb[0].mxu0
        %v876 = vpop.f32.mrb[0].mxu0
        %v877 = vadd.f32 %v693, %v876
        %v878 = vpop.f32.mrb[0].mxu0
        %879 = vmatprep.mubr.bf16.mxu0 0
        %880 = vmatmul.mubr.bf16.gmra.mrb[0].mxu0 %v669
        %v881 = vpop.f32.mrb[0].mxu0
        %v882 = vadd.f32 %v693, %v881
        %v883 = vpop.f32.mrb[0].mxu0
        %v884 = vpop.f32.mrb[0].mxu0
        %v885 = vadd.f32 %v693, %v884
        %v886 = vpop.f32.mrb[0].mxu0
        %887 = vmatprep.mubr.bf16.mxu0 0
        %888 = vmatmul.mubr.bf16.gmra.mrb[0].mxu0 %v670
        %v889 = vpop.f32.mrb[0].mxu0
        %v890 = vadd.f32 %v693, %v889
        %v891 = vpop.f32.mrb[0].mxu0
        %v892 = vpop.f32.mrb[0].mxu0
        %v893 = vadd.f32 %v693, %v892
        %v894 = vpop.f32.mrb[0].mxu0
        %895 = vmatprep.mubr.bf16.mxu0 0
        %896 = vmatmul.mubr.bf16.gmra.mrb[0].mxu0 %v671
        %v897 = vpop.f32.mrb[0].mxu0
        %v898 = vadd.f32 %v693, %v897
        %v899 = vpop.f32.mrb[0].mxu0
        %v900 = vpop.f32.mrb[0].mxu0
        %v901 = vadd.f32 %v693, %v900
        %v902 = vpop.f32.mrb[0].mxu0
        %903 = vdwg.mxu0
        %v904 = vmax.f32 %v778, 0.0
        %v905 = vmax.f32 %v781, 0.0
        %v906 = vmax.f32 %v786, 0.0
        %v907 = vmax.f32 %v789, 0.0
        %v908 = vmax.f32 %v794, 0.0
        %v909 = vmax.f32 %v797, 0.0
        %v910 = vmax.f32 %v802, 0.0
        %v911 = vmax.f32 %v805, 0.0
        %v912 = vmax.f32 %v810, 0.0
        %v913 = vmax.f32 %v813, 0.0
        %v914 = vmax.f32 %v818, 0.0
        %v915 = vmax.f32 %v821, 0.0
        %v916 = vmax.f32 %v826, 0.0
        %v917 = vmax.f32 %v829, 0.0
        %v918 = vmax.f32 %v834, 0.0
        %v919 = vmax.f32 %v837, 0.0
        %v920 = vmax.f32 %v842, 0.0
        %v921 = vmax.f32 %v845, 0.0
        %v922 = vmax.f32 %v850, 0.0
        %v923 = vmax.f32 %v853, 0.0
        %v924 = vmax.f32 %v858, 0.0
        %v925 = vmax.f32 %v861, 0.0
        %v926 = vmax.f32 %v866, 0.0
        %v927 = vmax.f32 %v869, 0.0
        %v928 = vmax.f32 %v874, 0.0
        %v929 = vmax.f32 %v877, 0.0
        %v930 = vmax.f32 %v882, 0.0
        %v931 = vmax.f32 %v885, 0.0
        %v932 = vmax.f32 %v890, 0.0
        %v933 = vmax.f32 %v893, 0.0
        %v934 = vmax.f32 %v898, 0.0
        %v935 = vmax.f32 %v901, 0.0
        %v936 = vpack.c.bf16 %v905, %v904
        %v937 = vpack.c.bf16 %v907, %v906
        %v938 = vpack.c.bf16 %v909, %v908
        %v939 = vpack.c.bf16 %v911, %v910
        %v940 = vpack.c.bf16 %v913, %v912
        %v941 = vpack.c.bf16 %v915, %v914
        %v942 = vpack.c.bf16 %v917, %v916
        %v943 = vpack.c.bf16 %v919, %v918
        %v944 = vpack.c.bf16 %v921, %v920
        %v945 = vpack.c.bf16 %v923, %v922
        %v946 = vpack.c.bf16 %v925, %v924
        %v947 = vpack.c.bf16 %v927, %v926
        %v948 = vpack.c.bf16 %v929, %v928
        %v949 = vpack.c.bf16 %v931, %v930
        %v950 = vpack.c.bf16 %v933, %v932
        %v951 = vpack.c.bf16 %v935, %v934
        %s952 = scalar_lea.vmem [#allocation7], 64
        %v953 = vld [vmem:[%s952] sm:$0xf]
        %v954 = vld [vmem:[%s952 + $0x4] sm:$0xf]
        %v955 = vld [vmem:[%s952 + $0x8] sm:$0xf]
        %v956 = vld [vmem:[%s952 + $0xc] sm:$0xf]
        %v957 = vld [vmem:[%s952 + $0x10] sm:$0xf]
        %v958 = vld [vmem:[%s952 + $0x14] sm:$0xf]
        %v959 = vld [vmem:[%s952 + $0x18] sm:$0xf]
        %v960 = vld [vmem:[%s952 + $0x1c] sm:$0xf]
        %v961 = vld [vmem:[%s952 + $0x20] sm:$0xf]
        %v962 = vld [vmem:[%s952 + $0x24] sm:$0xf]
        %v963 = vld [vmem:[%s952 + $0x28] sm:$0xf]
        %v964 = vld [vmem:[%s952 + $0x2c] sm:$0xf]
        %v965 = vld [vmem:[%s952 + $0x30] sm:$0xf]
        %v966 = vld [vmem:[%s952 + $0x34] sm:$0xf]
        %v967 = vld [vmem:[%s952 + $0x38] sm:$0xf]
        %v968 = vld [vmem:[%s952 + $0x3c] sm:$0xf]
        %s969 = scalar_lea.vmem %s4, 1
        %v970 = vld [vmem:[%s969] sm:$0x1]
        %v972 = vlaneseq
        %v973 = vshrl.u32 %v972, 7
        %v974 = vsub.s32 0, %v973
        %v975 = vrot.slane %v970, %v974
        %v993 = vunpack.c.l.b16 %v953
        %v994 = vunpack.c.l.b16 %v954
        %v995 = vunpack.c.l.b16 %v955
        %v996 = vunpack.c.l.b16 %v956
        %v997 = vunpack.c.l.b16 %v957
        %v998 = vunpack.c.l.b16 %v958
        %v999 = vunpack.c.l.b16 %v959
        %v1000 = vunpack.c.l.b16 %v960
        %v1001 = vunpack.c.l.b16 %v961
        %v1002 = vunpack.c.l.b16 %v962
        %v1003 = vunpack.c.l.b16 %v963
        %v1004 = vunpack.c.l.b16 %v964
        %v1005 = vunpack.c.l.b16 %v965
        %v1006 = vunpack.c.l.b16 %v966
        %v1007 = vunpack.c.l.b16 %v967
        %v1008 = vunpack.c.l.b16 %v968
        %v1009 = vpack.c.b16 %v994, %v993
        %v1010 = vpack.c.b16 %v996, %v995
        %v1011 = vpack.c.b16 %v998, %v997
        %v1012 = vpack.c.b16 %v1000, %v999
        %v1013 = vpack.c.b16 %v1002, %v1001
        %v1014 = vpack.c.b16 %v1004, %v1003
        %v1015 = vpack.c.b16 %v1006, %v1005
        %v1016 = vpack.c.b16 %v1008, %v1007
        %1025 = vmatprep.subr.bf16.mxu0 0
        %1026 = vmatpush1.bf16.msra.mxu0 %v1009
        %1027 = vmatprep.subr.bf16.mxu0 0
        %1028 = vmatpush1.bf16.msra.mxu0 %v1010
        %1029 = vmatprep.subr.bf16.mxu0 0
        %1030 = vmatpush1.bf16.msra.mxu0 %v1011
        %1031 = vmatprep.subr.bf16.mxu0 0
        %1032 = vmatpush1.bf16.msra.mxu0 %v1012
        %1033 = vmatprep.subr.bf16.mxu0 0
        %1034 = vmatpush1.bf16.msra.mxu0 %v1013
        %1035 = vmatprep.subr.bf16.mxu0 0
        %1036 = vmatpush1.bf16.msra.mxu0 %v1014
        %1037 = vmatprep.subr.bf16.mxu0 0
        %1038 = vmatpush1.bf16.msra.mxu0 %v1015
        %1039 = vmatprep.subr.bf16.mxu0 0
        %1040 = vmatpush1.bf16.msra.mxu0 %v1016
        %1041 = vmatprep.subr.bf16.mxu0 0
        %1042 = vmatpush1.bf16.msra.mxu0 0
        %1043 = vmatprep.subr.bf16.mxu0 0
        %1044 = vmatpush1.bf16.msra.mxu0 0
        %1045 = vmatprep.subr.bf16.mxu0 0
        %1046 = vmatpush1.bf16.msra.mxu0 0
        %1047 = vmatprep.subr.bf16.mxu0 0
        %1048 = vmatpush1.bf16.msra.mxu0 0
        %1049 = vmatprep.subr.bf16.mxu0 0
        %1050 = vmatpush1.bf16.msra.mxu0 0
        %1051 = vmatprep.subr.bf16.mxu0 0
        %1052 = vmatpush1.bf16.msra.mxu0 0
        %1053 = vmatprep.subr.bf16.mxu0 0
        %1054 = vmatpush1.bf16.msra.mxu0 0
        %1055 = vmatprep.subr.bf16.mxu0 0
        %1056 = vmatpush1.bf16.msra.mxu0 0
        %1057 = vmatprep.mubr.bf16.mxu0 0
        %1058 = vmatmul.mubr.bf16.gmra.mrb[0].mxu0 %v936
        %v1059 = vpop.f32.mrb[0].mxu0
        %v1060 = vadd.f32 %v975, %v1059
        %v1061 = vpop.f32.mrb[0].mxu0
        %v1062 = vpop.f32.mrb[0].mxu0
        %v1063 = vadd.f32 %v975, %v1062
        %v1064 = vpop.f32.mrb[0].mxu0
        %1065 = vmatprep.mubr.bf16.mxu0 0
        %1066 = vmatmul.mubr.bf16.gmra.mrb[0].mxu0 %v937
        %v1067 = vpop.f32.mrb[0].mxu0
        %v1068 = vadd.f32 %v975, %v1067
        %v1069 = vpop.f32.mrb[0].mxu0
        %v1070 = vpop.f32.mrb[0].mxu0
        %v1071 = vadd.f32 %v975, %v1070
        %v1072 = vpop.f32.mrb[0].mxu0
        %1073 = vmatprep.mubr.bf16.mxu0 0
        %1074 = vmatmul.mubr.bf16.gmra.mrb[0].mxu0 %v938
        %v1075 = vpop.f32.mrb[0].mxu0
        %v1076 = vadd.f32 %v975, %v1075
        %v1077 = vpop.f32.mrb[0].mxu0
        %v1078 = vpop.f32.mrb[0].mxu0
        %v1079 = vadd.f32 %v975, %v1078
        %v1080 = vpop.f32.mrb[0].mxu0
        %1081 = vmatprep.mubr.bf16.mxu0 0
        %1082 = vmatmul.mubr.bf16.gmra.mrb[0].mxu0 %v939
        %v1083 = vpop.f32.mrb[0].mxu0
        %v1084 = vadd.f32 %v975, %v1083
        %v1085 = vpop.f32.mrb[0].mxu0
        %v1086 = vpop.f32.mrb[0].mxu0
        %v1087 = vadd.f32 %v975, %v1086
        %v1088 = vpop.f32.mrb[0].mxu0
        %1089 = vmatprep.mubr.bf16.mxu0 0
        %1090 = vmatmul.mubr.bf16.gmra.mrb[0].mxu0 %v940
        %v1091 = vpop.f32.mrb[0].mxu0
        %v1092 = vadd.f32 %v975, %v1091
        %v1093 = vpop.f32.mrb[0].mxu0
        %v1094 = vpop.f32.mrb[0].mxu0
        %v1095 = vadd.f32 %v975, %v1094
        %v1096 = vpop.f32.mrb[0].mxu0
        %1097 = vmatprep.mubr.bf16.mxu0 0
        %1098 = vmatmul.mubr.bf16.gmra.mrb[0].mxu0 %v941
        %v1099 = vpop.f32.mrb[0].mxu0
        %v1100 = vadd.f32 %v975, %v1099
        %v1101 = vpop.f32.mrb[0].mxu0
        %v1102 = vpop.f32.mrb[0].mxu0
        %v1103 = vadd.f32 %v975, %v1102
        %v1104 = vpop.f32.mrb[0].mxu0
        %1105 = vmatprep.mubr.bf16.mxu0 0
        %1106 = vmatmul.mubr.bf16.gmra.mrb[0].mxu0 %v942
        %v1107 = vpop.f32.mrb[0].mxu0
        %v1108 = vadd.f32 %v975, %v1107
        %v1109 = vpop.f32.mrb[0].mxu0
        %v1110 = vpop.f32.mrb[0].mxu0
        %v1111 = vadd.f32 %v975, %v1110
        %v1112 = vpop.f32.mrb[0].mxu0
        %1113 = vmatprep.mubr.bf16.mxu0 0
        %1114 = vmatmul.mubr.bf16.gmra.mrb[0].mxu0 %v943
        %v1115 = vpop.f32.mrb[0].mxu0
        %v1116 = vadd.f32 %v975, %v1115
        %v1117 = vpop.f32.mrb[0].mxu0
        %v1118 = vpop.f32.mrb[0].mxu0
        %v1119 = vadd.f32 %v975, %v1118
        %v1120 = vpop.f32.mrb[0].mxu0
        %1121 = vmatprep.mubr.bf16.mxu0 0
        %1122 = vmatmul.mubr.bf16.gmra.mrb[0].mxu0 %v944
        %v1123 = vpop.f32.mrb[0].mxu0
        %v1124 = vadd.f32 %v975, %v1123
        %v1125 = vpop.f32.mrb[0].mxu0
        %v1126 = vpop.f32.mrb[0].mxu0
        %v1127 = vadd.f32 %v975, %v1126
        %v1128 = vpop.f32.mrb[0].mxu0
        %1129 = vmatprep.mubr.bf16.mxu0 0
        %1130 = vmatmul.mubr.bf16.gmra.mrb[0].mxu0 %v945
        %v1131 = vpop.f32.mrb[0].mxu0
        %v1132 = vadd.f32 %v975, %v1131
        %v1133 = vpop.f32.mrb[0].mxu0
        %v1134 = vpop.f32.mrb[0].mxu0
        %v1135 = vadd.f32 %v975, %v1134
        %v1136 = vpop.f32.mrb[0].mxu0
        %1137 = vmatprep.mubr.bf16.mxu0 0
        %1138 = vmatmul.mubr.bf16.gmra.mrb[0].mxu0 %v946
        %v1139 = vpop.f32.mrb[0].mxu0
        %v1140 = vadd.f32 %v975, %v1139
        %v1141 = vpop.f32.mrb[0].mxu0
        %v1142 = vpop.f32.mrb[0].mxu0
        %v1143 = vadd.f32 %v975, %v1142
        %v1144 = vpop.f32.mrb[0].mxu0
        %1145 = vmatprep.mubr.bf16.mxu0 0
        %1146 = vmatmul.mubr.bf16.gmra.mrb[0].mxu0 %v947
        %v1147 = vpop.f32.mrb[0].mxu0
        %v1148 = vadd.f32 %v975, %v1147
        %v1149 = vpop.f32.mrb[0].mxu0
        %v1150 = vpop.f32.mrb[0].mxu0
        %v1151 = vadd.f32 %v975, %v1150
        %v1152 = vpop.f32.mrb[0].mxu0
        %1153 = vmatprep.mubr.bf16.mxu0 0
        %1154 = vmatmul.mubr.bf16.gmra.mrb[0].mxu0 %v948
        %v1155 = vpop.f32.mrb[0].mxu0
        %v1156 = vadd.f32 %v975, %v1155
        %v1157 = vpop.f32.mrb[0].mxu0
        %v1158 = vpop.f32.mrb[0].mxu0
        %v1159 = vadd.f32 %v975, %v1158
        %v1160 = vpop.f32.mrb[0].mxu0
        %1161 = vmatprep.mubr.bf16.mxu0 0
        %1162 = vmatmul.mubr.bf16.gmra.mrb[0].mxu0 %v949
        %v1163 = vpop.f32.mrb[0].mxu0
        %v1164 = vadd.f32 %v975, %v1163
        %v1165 = vpop.f32.mrb[0].mxu0
        %v1166 = vpop.f32.mrb[0].mxu0
        %v1167 = vadd.f32 %v975, %v1166
        %v1168 = vpop.f32.mrb[0].mxu0
        %1169 = vmatprep.mubr.bf16.mxu0 0
        %1170 = vmatmul.mubr.bf16.gmra.mrb[0].mxu0 %v950
        %v1171 = vpop.f32.mrb[0].mxu0
        %v1172 = vadd.f32 %v975, %v1171
        %v1173 = vpop.f32.mrb[0].mxu0
        %v1174 = vpop.f32.mrb[0].mxu0
        %v1175 = vadd.f32 %v975, %v1174
        %v1176 = vpop.f32.mrb[0].mxu0
        %1177 = vmatprep.mubr.bf16.mxu0 0
        %1178 = vmatmul.mubr.bf16.gmra.mrb[0].mxu0 %v951
        %v1179 = vpop.f32.mrb[0].mxu0
        %v1180 = vadd.f32 %v975, %v1179
        %v1181 = vpop.f32.mrb[0].mxu0
        %v1182 = vpop.f32.mrb[0].mxu0
        %v1183 = vadd.f32 %v975, %v1182
        %v1184 = vpop.f32.mrb[0].mxu0
        %1185 = vdwg.mxu0
        %v1186 = vmax.f32 %v1060, 0.0
        %v1187 = vmax.f32 %v1063, 0.0
        %v1188 = vmax.f32 %v1068, 0.0
        %v1189 = vmax.f32 %v1071, 0.0
        %v1190 = vmax.f32 %v1076, 0.0
        %v1191 = vmax.f32 %v1079, 0.0
        %v1192 = vmax.f32 %v1084, 0.0
        %v1193 = vmax.f32 %v1087, 0.0
        %v1194 = vmax.f32 %v1092, 0.0
        %v1195 = vmax.f32 %v1095, 0.0
        %v1196 = vmax.f32 %v1100, 0.0
        %v1197 = vmax.f32 %v1103, 0.0
        %v1198 = vmax.f32 %v1108, 0.0
        %v1199 = vmax.f32 %v1111, 0.0
        %v1200 = vmax.f32 %v1116, 0.0
        %v1201 = vmax.f32 %v1119, 0.0
        %v1202 = vmax.f32 %v1124, 0.0
        %v1203 = vmax.f32 %v1127, 0.0
        %v1204 = vmax.f32 %v1132, 0.0
        %v1205 = vmax.f32 %v1135, 0.0
        %v1206 = vmax.f32 %v1140, 0.0
        %v1207 = vmax.f32 %v1143, 0.0
        %v1208 = vmax.f32 %v1148, 0.0
        %v1209 = vmax.f32 %v1151, 0.0
        %v1210 = vmax.f32 %v1156, 0.0
        %v1211 = vmax.f32 %v1159, 0.0
        %v1212 = vmax.f32 %v1164, 0.0
        %v1213 = vmax.f32 %v1167, 0.0
        %v1214 = vmax.f32 %v1172, 0.0
        %v1215 = vmax.f32 %v1175, 0.0
        %v1216 = vmax.f32 %v1180, 0.0
        %v1217 = vmax.f32 %v1183, 0.0
        %v1218 = vpack.c.bf16 %v1187, %v1186
        %v1219 = vpack.c.bf16 %v1189, %v1188
        %v1220 = vpack.c.bf16 %v1191, %v1190
        %v1221 = vpack.c.bf16 %v1193, %v1192
        %v1222 = vpack.c.bf16 %v1195, %v1194
        %v1223 = vpack.c.bf16 %v1197, %v1196
        %v1224 = vpack.c.bf16 %v1199, %v1198
        %v1225 = vpack.c.bf16 %v1201, %v1200
        %v1226 = vpack.c.bf16 %v1203, %v1202
        %v1227 = vpack.c.bf16 %v1205, %v1204
        %v1228 = vpack.c.bf16 %v1207, %v1206
        %v1229 = vpack.c.bf16 %v1209, %v1208
        %v1230 = vpack.c.bf16 %v1211, %v1210
        %v1231 = vpack.c.bf16 %v1213, %v1212
        %v1232 = vpack.c.bf16 %v1215, %v1214
        %v1233 = vpack.c.bf16 %v1217, %v1216
        %s1234 = scalar_lea.vmem [#allocation7], 128
        %v1235 = vld [vmem:[%s1234] sm:$0xf]
        %v1236 = vld [vmem:[%s1234 + $0x4] sm:$0xf]
        %v1237 = vld [vmem:[%s1234 + $0x8] sm:$0xf]
        %v1238 = vld [vmem:[%s1234 + $0xc] sm:$0xf]
        %v1239 = vld [vmem:[%s1234 + $0x10] sm:$0xf]
        %v1240 = vld [vmem:[%s1234 + $0x14] sm:$0xf]
        %v1241 = vld [vmem:[%s1234 + $0x18] sm:$0xf]
        %v1242 = vld [vmem:[%s1234 + $0x1c] sm:$0xf]
        %v1243 = vld [vmem:[%s1234 + $0x20] sm:$0xf]
        %v1244 = vld [vmem:[%s1234 + $0x24] sm:$0xf]
        %v1245 = vld [vmem:[%s1234 + $0x28] sm:$0xf]
        %v1246 = vld [vmem:[%s1234 + $0x2c] sm:$0xf]
        %v1247 = vld [vmem:[%s1234 + $0x30] sm:$0xf]
        %v1248 = vld [vmem:[%s1234 + $0x34] sm:$0xf]
        %v1249 = vld [vmem:[%s1234 + $0x38] sm:$0xf]
        %v1250 = vld [vmem:[%s1234 + $0x3c] sm:$0xf]
        %s1251 = scalar_lea.vmem %s4, 2
        %v1252 = vld [vmem:[%s1251] sm:$0x1]
        %v1254 = vlaneseq
        %v1255 = vshrl.u32 %v1254, 7
        %v1256 = vsub.s32 0, %v1255
        %v1257 = vrot.slane %v1252, %v1256
        %v1275 = vunpack.c.l.b16 %v1235
        %v1276 = vunpack.c.l.b16 %v1236
        %v1277 = vunpack.c.l.b16 %v1237
        %v1278 = vunpack.c.l.b16 %v1238
        %v1279 = vunpack.c.l.b16 %v1239
        %v1280 = vunpack.c.l.b16 %v1240
        %v1281 = vunpack.c.l.b16 %v1241
        %v1282 = vunpack.c.l.b16 %v1242
        %v1283 = vunpack.c.l.b16 %v1243
        %v1284 = vunpack.c.l.b16 %v1244
        %v1285 = vunpack.c.l.b16 %v1245
        %v1286 = vunpack.c.l.b16 %v1246
        %v1287 = vunpack.c.l.b16 %v1247
        %v1288 = vunpack.c.l.b16 %v1248
        %v1289 = vunpack.c.l.b16 %v1249
        %v1290 = vunpack.c.l.b16 %v1250
        %v1291 = vpack.c.b16 %v1276, %v1275
        %v1292 = vpack.c.b16 %v1278, %v1277
        %v1293 = vpack.c.b16 %v1280, %v1279
        %v1294 = vpack.c.b16 %v1282, %v1281
        %v1295 = vpack.c.b16 %v1284, %v1283
        %v1296 = vpack.c.b16 %v1286, %v1285
        %v1297 = vpack.c.b16 %v1288, %v1287
        %v1298 = vpack.c.b16 %v1290, %v1289
        %1307 = vmatprep.subr.bf16.mxu0 0
        %1308 = vmatpush1.bf16.msra.mxu0 %v1291
        %1309 = vmatprep.subr.bf16.mxu0 0
        %1310 = vmatpush1.bf16.msra.mxu0 %v1292
        %1311 = vmatprep.subr.bf16.mxu0 0
        %1312 = vmatpush1.bf16.msra.mxu0 %v1293
        %1313 = vmatprep.subr.bf16.mxu0 0
        %1314 = vmatpush1.bf16.msra.mxu0 %v1294
        %1315 = vmatprep.subr.bf16.mxu0 0
        %1316 = vmatpush1.bf16.msra.mxu0 %v1295
        %1317 = vmatprep.subr.bf16.mxu0 0
        %1318 = vmatpush1.bf16.msra.mxu0 %v1296
        %1319 = vmatprep.subr.bf16.mxu0 0
        %1320 = vmatpush1.bf16.msra.mxu0 %v1297
        %1321 = vmatprep.subr.bf16.mxu0 0
        %1322 = vmatpush1.bf16.msra.mxu0 %v1298
        %1323 = vmatprep.subr.bf16.mxu0 0
        %1324 = vmatpush1.bf16.msra.mxu0 0
        %1325 = vmatprep.subr.bf16.mxu0 0
        %1326 = vmatpush1.bf16.msra.mxu0 0
        %1327 = vmatprep.subr.bf16.mxu0 0
        %1328 = vmatpush1.bf16.msra.mxu0 0
        %1329 = vmatprep.subr.bf16.mxu0 0
        %1330 = vmatpush1.bf16.msra.mxu0 0
        %1331 = vmatprep.subr.bf16.mxu0 0
        %1332 = vmatpush1.bf16.msra.mxu0 0
        %1333 = vmatprep.subr.bf16.mxu0 0
        %1334 = vmatpush1.bf16.msra.mxu0 0
        %1335 = vmatprep.subr.bf16.mxu0 0
        %1336 = vmatpush1.bf16.msra.mxu0 0
        %1337 = vmatprep.subr.bf16.mxu0 0
        %1338 = vmatpush1.bf16.msra.mxu0 0
        %1339 = vmatprep.mubr.bf16.mxu0 0
        %1340 = vmatmul.mubr.bf16.gmra.mrb[0].mxu0 %v1218
        %v1341 = vpop.f32.mrb[0].mxu0
        %v1342 = vadd.f32 %v1257, %v1341
        %v1343 = vpop.f32.mrb[0].mxu0
        %v1344 = vpop.f32.mrb[0].mxu0
        %v1345 = vadd.f32 %v1257, %v1344
        %v1346 = vpop.f32.mrb[0].mxu0
        %1347 = vmatprep.mubr.bf16.mxu0 0
        %1348 = vmatmul.mubr.bf16.gmra.mrb[0].mxu0 %v1219
        %v1349 = vpop.f32.mrb[0].mxu0
        %v1350 = vadd.f32 %v1257, %v1349
        %v1351 = vpop.f32.mrb[0].mxu0
        %v1352 = vpop.f32.mrb[0].mxu0
        %v1353 = vadd.f32 %v1257, %v1352
        %v1354 = vpop.f32.mrb[0].mxu0
        %1355 = vmatprep.mubr.bf16.mxu0 0
        %1356 = vmatmul.mubr.bf16.gmra.mrb[0].mxu0 %v1220
        %v1357 = vpop.f32.mrb[0].mxu0
        %v1358 = vadd.f32 %v1257, %v1357
        %v1359 = vpop.f32.mrb[0].mxu0
        %v1360 = vpop.f32.mrb[0].mxu0
        %v1361 = vadd.f32 %v1257, %v1360
        %v1362 = vpop.f32.mrb[0].mxu0
        %1363 = vmatprep.mubr.bf16.mxu0 0
        %1364 = vmatmul.mubr.bf16.gmra.mrb[0].mxu0 %v1221
        %v1365 = vpop.f32.mrb[0].mxu0
        %v1366 = vadd.f32 %v1257, %v1365
        %v1367 = vpop.f32.mrb[0].mxu0
        %v1368 = vpop.f32.mrb[0].mxu0
        %v1369 = vadd.f32 %v1257, %v1368
        %v1370 = vpop.f32.mrb[0].mxu0
        %1371 = vmatprep.mubr.bf16.mxu0 0
        %1372 = vmatmul.mubr.bf16.gmra.mrb[0].mxu0 %v1222
        %v1373 = vpop.f32.mrb[0].mxu0
        %v1374 = vadd.f32 %v1257, %v1373
        %v1375 = vpop.f32.mrb[0].mxu0
        %v1376 = vpop.f32.mrb[0].mxu0
        %v1377 = vadd.f32 %v1257, %v1376
        %v1378 = vpop.f32.mrb[0].mxu0
        %1379 = vmatprep.mubr.bf16.mxu0 0
        %1380 = vmatmul.mubr.bf16.gmra.mrb[0].mxu0 %v1223
        %v1381 = vpop.f32.mrb[0].mxu0
        %v1382 = vadd.f32 %v1257, %v1381
        %v1383 = vpop.f32.mrb[0].mxu0
        %v1384 = vpop.f32.mrb[0].mxu0
        %v1385 = vadd.f32 %v1257, %v1384
        %v1386 = vpop.f32.mrb[0].mxu0
        %1387 = vmatprep.mubr.bf16.mxu0 0
        %1388 = vmatmul.mubr.bf16.gmra.mrb[0].mxu0 %v1224
        %v1389 = vpop.f32.mrb[0].mxu0
        %v1390 = vadd.f32 %v1257, %v1389
        %v1391 = vpop.f32.mrb[0].mxu0
        %v1392 = vpop.f32.mrb[0].mxu0
        %v1393 = vadd.f32 %v1257, %v1392
        %v1394 = vpop.f32.mrb[0].mxu0
        %1395 = vmatprep.mubr.bf16.mxu0 0
        %1396 = vmatmul.mubr.bf16.gmra.mrb[0].mxu0 %v1225
        %v1397 = vpop.f32.mrb[0].mxu0
        %v1398 = vadd.f32 %v1257, %v1397
        %v1399 = vpop.f32.mrb[0].mxu0
        %v1400 = vpop.f32.mrb[0].mxu0
        %v1401 = vadd.f32 %v1257, %v1400
        %v1402 = vpop.f32.mrb[0].mxu0
        %1403 = vmatprep.mubr.bf16.mxu0 0
        %1404 = vmatmul.mubr.bf16.gmra.mrb[0].mxu0 %v1226
        %v1405 = vpop.f32.mrb[0].mxu0
        %v1406 = vadd.f32 %v1257, %v1405
        %v1407 = vpop.f32.mrb[0].mxu0
        %v1408 = vpop.f32.mrb[0].mxu0
        %v1409 = vadd.f32 %v1257, %v1408
        %v1410 = vpop.f32.mrb[0].mxu0
        %1411 = vmatprep.mubr.bf16.mxu0 0
        %1412 = vmatmul.mubr.bf16.gmra.mrb[0].mxu0 %v1227
        %v1413 = vpop.f32.mrb[0].mxu0
        %v1414 = vadd.f32 %v1257, %v1413
        %v1415 = vpop.f32.mrb[0].mxu0
        %v1416 = vpop.f32.mrb[0].mxu0
        %v1417 = vadd.f32 %v1257, %v1416
        %v1418 = vpop.f32.mrb[0].mxu0
        %1419 = vmatprep.mubr.bf16.mxu0 0
        %1420 = vmatmul.mubr.bf16.gmra.mrb[0].mxu0 %v1228
        %v1421 = vpop.f32.mrb[0].mxu0
        %v1422 = vadd.f32 %v1257, %v1421
        %v1423 = vpop.f32.mrb[0].mxu0
        %v1424 = vpop.f32.mrb[0].mxu0
        %v1425 = vadd.f32 %v1257, %v1424
        %v1426 = vpop.f32.mrb[0].mxu0
        %1427 = vmatprep.mubr.bf16.mxu0 0
        %1428 = vmatmul.mubr.bf16.gmra.mrb[0].mxu0 %v1229
        %v1429 = vpop.f32.mrb[0].mxu0
        %v1430 = vadd.f32 %v1257, %v1429
        %v1431 = vpop.f32.mrb[0].mxu0
        %v1432 = vpop.f32.mrb[0].mxu0
        %v1433 = vadd.f32 %v1257, %v1432
        %v1434 = vpop.f32.mrb[0].mxu0
        %1435 = vmatprep.mubr.bf16.mxu0 0
        %1436 = vmatmul.mubr.bf16.gmra.mrb[0].mxu0 %v1230
        %v1437 = vpop.f32.mrb[0].mxu0
        %v1438 = vadd.f32 %v1257, %v1437
        %v1439 = vpop.f32.mrb[0].mxu0
        %v1440 = vpop.f32.mrb[0].mxu0
        %v1441 = vadd.f32 %v1257, %v1440
        %v1442 = vpop.f32.mrb[0].mxu0
        %1443 = vmatprep.mubr.bf16.mxu0 0
        %1444 = vmatmul.mubr.bf16.gmra.mrb[0].mxu0 %v1231
        %v1445 = vpop.f32.mrb[0].mxu0
        %v1446 = vadd.f32 %v1257, %v1445
        %v1447 = vpop.f32.mrb[0].mxu0
        %v1448 = vpop.f32.mrb[0].mxu0
        %v1449 = vadd.f32 %v1257, %v1448
        %v1450 = vpop.f32.mrb[0].mxu0
        %1451 = vmatprep.mubr.bf16.mxu0 0
        %1452 = vmatmul.mubr.bf16.gmra.mrb[0].mxu0 %v1232
        %v1453 = vpop.f32.mrb[0].mxu0
        %v1454 = vadd.f32 %v1257, %v1453
        %v1455 = vpop.f32.mrb[0].mxu0
        %v1456 = vpop.f32.mrb[0].mxu0
        %v1457 = vadd.f32 %v1257, %v1456
        %v1458 = vpop.f32.mrb[0].mxu0
        %1459 = vmatprep.mubr.bf16.mxu0 0
        %1460 = vmatmul.mubr.bf16.gmra.mrb[0].mxu0 %v1233
        %v1461 = vpop.f32.mrb[0].mxu0
        %v1462 = vadd.f32 %v1257, %v1461
        %v1463 = vpop.f32.mrb[0].mxu0
        %v1464 = vpop.f32.mrb[0].mxu0
        %v1465 = vadd.f32 %v1257, %v1464
        %v1466 = vpop.f32.mrb[0].mxu0
        %1467 = vdwg.mxu0
        %v1468 = vmax.f32 %v1342, 0.0
        %v1469 = vmax.f32 %v1345, 0.0
        %v1470 = vmax.f32 %v1350, 0.0
        %v1471 = vmax.f32 %v1353, 0.0
        %v1472 = vmax.f32 %v1358, 0.0
        %v1473 = vmax.f32 %v1361, 0.0
        %v1474 = vmax.f32 %v1366, 0.0
        %v1475 = vmax.f32 %v1369, 0.0
        %v1476 = vmax.f32 %v1374, 0.0
        %v1477 = vmax.f32 %v1377, 0.0
        %v1478 = vmax.f32 %v1382, 0.0
        %v1479 = vmax.f32 %v1385, 0.0
        %v1480 = vmax.f32 %v1390, 0.0
        %v1481 = vmax.f32 %v1393, 0.0
        %v1482 = vmax.f32 %v1398, 0.0
        %v1483 = vmax.f32 %v1401, 0.0
        %v1484 = vmax.f32 %v1406, 0.0
        %v1485 = vmax.f32 %v1409, 0.0
        %v1486 = vmax.f32 %v1414, 0.0
        %v1487 = vmax.f32 %v1417, 0.0
        %v1488 = vmax.f32 %v1422, 0.0
        %v1489 = vmax.f32 %v1425, 0.0
        %v1490 = vmax.f32 %v1430, 0.0
        %v1491 = vmax.f32 %v1433, 0.0
        %v1492 = vmax.f32 %v1438, 0.0
        %v1493 = vmax.f32 %v1441, 0.0
        %v1494 = vmax.f32 %v1446, 0.0
        %v1495 = vmax.f32 %v1449, 0.0
        %v1496 = vmax.f32 %v1454, 0.0
        %v1497 = vmax.f32 %v1457, 0.0
        %v1498 = vmax.f32 %v1462, 0.0
        %v1499 = vmax.f32 %v1465, 0.0
        %v1500 = vpack.c.bf16 %v1469, %v1468
        %v1501 = vpack.c.bf16 %v1471, %v1470
        %v1502 = vpack.c.bf16 %v1473, %v1472
        %v1503 = vpack.c.bf16 %v1475, %v1474
        %v1504 = vpack.c.bf16 %v1477, %v1476
        %v1505 = vpack.c.bf16 %v1479, %v1478
        %v1506 = vpack.c.bf16 %v1481, %v1480
        %v1507 = vpack.c.bf16 %v1483, %v1482
        %v1508 = vpack.c.bf16 %v1485, %v1484
        %v1509 = vpack.c.bf16 %v1487, %v1486
        %v1510 = vpack.c.bf16 %v1489, %v1488
        %v1511 = vpack.c.bf16 %v1491, %v1490
        %v1512 = vpack.c.bf16 %v1493, %v1492
        %v1513 = vpack.c.bf16 %v1495, %v1494
        %v1514 = vpack.c.bf16 %v1497, %v1496
        %v1515 = vpack.c.bf16 %v1499, %v1498
        %s1516 = scalar_lea.vmem [#allocation7], 192
        %v1517 = vld [vmem:[%s1516] sm:$0xf]
        %v1518 = vld [vmem:[%s1516 + $0x4] sm:$0xf]
        %v1519 = vld [vmem:[%s1516 + $0x8] sm:$0xf]
        %v1520 = vld [vmem:[%s1516 + $0xc] sm:$0xf]
        %v1521 = vld [vmem:[%s1516 + $0x10] sm:$0xf]
        %v1522 = vld [vmem:[%s1516 + $0x14] sm:$0xf]
        %v1523 = vld [vmem:[%s1516 + $0x18] sm:$0xf]
        %v1524 = vld [vmem:[%s1516 + $0x1c] sm:$0xf]
        %v1525 = vld [vmem:[%s1516 + $0x20] sm:$0xf]
        %v1526 = vld [vmem:[%s1516 + $0x24] sm:$0xf]
        %v1527 = vld [vmem:[%s1516 + $0x28] sm:$0xf]
        %v1528 = vld [vmem:[%s1516 + $0x2c] sm:$0xf]
        %v1529 = vld [vmem:[%s1516 + $0x30] sm:$0xf]
        %v1530 = vld [vmem:[%s1516 + $0x34] sm:$0xf]
        %v1531 = vld [vmem:[%s1516 + $0x38] sm:$0xf]
        %v1532 = vld [vmem:[%s1516 + $0x3c] sm:$0xf]
        %s1533 = scalar_lea.vmem %s4, 3
        %v1534 = vld [vmem:[%s1533] sm:$0x1]
        %v1536 = vlaneseq
        %v1537 = vshrl.u32 %v1536, 7
        %v1538 = vsub.s32 0, %v1537
        %v1539 = vrot.slane %v1534, %v1538
        %v1557 = vunpack.c.l.b16 %v1517
        %v1558 = vunpack.c.l.b16 %v1518
        %v1559 = vunpack.c.l.b16 %v1519
        %v1560 = vunpack.c.l.b16 %v1520
        %v1561 = vunpack.c.l.b16 %v1521
        %v1562 = vunpack.c.l.b16 %v1522
        %v1563 = vunpack.c.l.b16 %v1523
        %v1564 = vunpack.c.l.b16 %v1524
        %v1565 = vunpack.c.l.b16 %v1525
        %v1566 = vunpack.c.l.b16 %v1526
        %v1567 = vunpack.c.l.b16 %v1527
        %v1568 = vunpack.c.l.b16 %v1528
        %v1569 = vunpack.c.l.b16 %v1529
        %v1570 = vunpack.c.l.b16 %v1530
        %v1571 = vunpack.c.l.b16 %v1531
        %v1572 = vunpack.c.l.b16 %v1532
        %v1573 = vpack.c.b16 %v1558, %v1557
        %v1574 = vpack.c.b16 %v1560, %v1559
        %v1575 = vpack.c.b16 %v1562, %v1561
        %v1576 = vpack.c.b16 %v1564, %v1563
        %v1577 = vpack.c.b16 %v1566, %v1565
        %v1578 = vpack.c.b16 %v1568, %v1567
        %v1579 = vpack.c.b16 %v1570, %v1569
        %v1580 = vpack.c.b16 %v1572, %v1571
        %1589 = vmatprep.subr.bf16.mxu0 0
        %1590 = vmatpush1.bf16.msra.mxu0 %v1573
        %1591 = vmatprep.subr.bf16.mxu0 0
        %1592 = vmatpush1.bf16.msra.mxu0 %v1574
        %1593 = vmatprep.subr.bf16.mxu0 0
        %1594 = vmatpush1.bf16.msra.mxu0 %v1575
        %1595 = vmatprep.subr.bf16.mxu0 0
        %1596 = vmatpush1.bf16.msra.mxu0 %v1576
        %1597 = vmatprep.subr.bf16.mxu0 0
        %1598 = vmatpush1.bf16.msra.mxu0 %v1577
        %1599 = vmatprep.subr.bf16.mxu0 0
        %1600 = vmatpush1.bf16.msra.mxu0 %v1578
        %1601 = vmatprep.subr.bf16.mxu0 0
        %1602 = vmatpush1.bf16.msra.mxu0 %v1579
        %1603 = vmatprep.subr.bf16.mxu0 0
        %1604 = vmatpush1.bf16.msra.mxu0 %v1580
        %1605 = vmatprep.subr.bf16.mxu0 0
        %1606 = vmatpush1.bf16.msra.mxu0 0
        %1607 = vmatprep.subr.bf16.mxu0 0
        %1608 = vmatpush1.bf16.msra.mxu0 0
        %1609 = vmatprep.subr.bf16.mxu0 0
        %1610 = vmatpush1.bf16.msra.mxu0 0
        %1611 = vmatprep.subr.bf16.mxu0 0
        %1612 = vmatpush1.bf16.msra.mxu0 0
        %1613 = vmatprep.subr.bf16.mxu0 0
        %1614 = vmatpush1.bf16.msra.mxu0 0
        %1615 = vmatprep.subr.bf16.mxu0 0
        %1616 = vmatpush1.bf16.msra.mxu0 0
        %1617 = vmatprep.subr.bf16.mxu0 0
        %1618 = vmatpush1.bf16.msra.mxu0 0
        %1619 = vmatprep.subr.bf16.mxu0 0
        %1620 = vmatpush1.bf16.msra.mxu0 0
        %1621 = vmatprep.mubr.bf16.mxu0 0
        %1622 = vmatmul.mubr.bf16.gmra.mrb[0].mxu0 %v1500
        %v1623 = vpop.f32.mrb[0].mxu0
        %v1624 = vadd.f32 %v1539, %v1623
        %v1625 = vpop.f32.mrb[0].mxu0
        %v1626 = vpop.f32.mrb[0].mxu0
        %v1627 = vadd.f32 %v1539, %v1626
        %v1628 = vpop.f32.mrb[0].mxu0
        %1629 = vmatprep.mubr.bf16.mxu0 0
        %1630 = vmatmul.mubr.bf16.gmra.mrb[0].mxu0 %v1501
        %v1631 = vpop.f32.mrb[0].mxu0
        %v1632 = vadd.f32 %v1539, %v1631
        %v1633 = vpop.f32.mrb[0].mxu0
        %v1634 = vpop.f32.mrb[0].mxu0
        %v1635 = vadd.f32 %v1539, %v1634
        %v1636 = vpop.f32.mrb[0].mxu0
        %1637 = vmatprep.mubr.bf16.mxu0 0
        %1638 = vmatmul.mubr.bf16.gmra.mrb[0].mxu0 %v1502
        %v1639 = vpop.f32.mrb[0].mxu0
        %v1640 = vadd.f32 %v1539, %v1639
        %v1641 = vpop.f32.mrb[0].mxu0
        %v1642 = vpop.f32.mrb[0].mxu0
        %v1643 = vadd.f32 %v1539, %v1642
        %v1644 = vpop.f32.mrb[0].mxu0
        %1645 = vmatprep.mubr.bf16.mxu0 0
        %1646 = vmatmul.mubr.bf16.gmra.mrb[0].mxu0 %v1503
        %v1647 = vpop.f32.mrb[0].mxu0
        %v1648 = vadd.f32 %v1539, %v1647
        %v1649 = vpop.f32.mrb[0].mxu0
        %v1650 = vpop.f32.mrb[0].mxu0
        %v1651 = vadd.f32 %v1539, %v1650
        %v1652 = vpop.f32.mrb[0].mxu0
        %1653 = vmatprep.mubr.bf16.mxu0 0
        %1654 = vmatmul.mubr.bf16.gmra.mrb[0].mxu0 %v1504
        %v1655 = vpop.f32.mrb[0].mxu0
        %v1656 = vadd.f32 %v1539, %v1655
        %v1657 = vpop.f32.mrb[0].mxu0
        %v1658 = vpop.f32.mrb[0].mxu0
        %v1659 = vadd.f32 %v1539, %v1658
        %v1660 = vpop.f32.mrb[0].mxu0
        %1661 = vmatprep.mubr.bf16.mxu0 0
        %1662 = vmatmul.mubr.bf16.gmra.mrb[0].mxu0 %v1505
        %v1663 = vpop.f32.mrb[0].mxu0
        %v1664 = vadd.f32 %v1539, %v1663
        %v1665 = vpop.f32.mrb[0].mxu0
        %v1666 = vpop.f32.mrb[0].mxu0
        %v1667 = vadd.f32 %v1539, %v1666
        %v1668 = vpop.f32.mrb[0].mxu0
        %1669 = vmatprep.mubr.bf16.mxu0 0
        %1670 = vmatmul.mubr.bf16.gmra.mrb[0].mxu0 %v1506
        %v1671 = vpop.f32.mrb[0].mxu0
        %v1672 = vadd.f32 %v1539, %v1671
        %v1673 = vpop.f32.mrb[0].mxu0
        %v1674 = vpop.f32.mrb[0].mxu0
        %v1675 = vadd.f32 %v1539, %v1674
        %v1676 = vpop.f32.mrb[0].mxu0
        %1677 = vmatprep.mubr.bf16.mxu0 0
        %1678 = vmatmul.mubr.bf16.gmra.mrb[0].mxu0 %v1507
        %v1679 = vpop.f32.mrb[0].mxu0
        %v1680 = vadd.f32 %v1539, %v1679
        %v1681 = vpop.f32.mrb[0].mxu0
        %v1682 = vpop.f32.mrb[0].mxu0
        %v1683 = vadd.f32 %v1539, %v1682
        %v1684 = vpop.f32.mrb[0].mxu0
        %1685 = vmatprep.mubr.bf16.mxu0 0
        %1686 = vmatmul.mubr.bf16.gmra.mrb[0].mxu0 %v1508
        %v1687 = vpop.f32.mrb[0].mxu0
        %v1688 = vadd.f32 %v1539, %v1687
        %v1689 = vpop.f32.mrb[0].mxu0
        %v1690 = vpop.f32.mrb[0].mxu0
        %v1691 = vadd.f32 %v1539, %v1690
        %v1692 = vpop.f32.mrb[0].mxu0
        %1693 = vmatprep.mubr.bf16.mxu0 0
        %1694 = vmatmul.mubr.bf16.gmra.mrb[0].mxu0 %v1509
        %v1695 = vpop.f32.mrb[0].mxu0
        %v1696 = vadd.f32 %v1539, %v1695
        %v1697 = vpop.f32.mrb[0].mxu0
        %v1698 = vpop.f32.mrb[0].mxu0
        %v1699 = vadd.f32 %v1539, %v1698
        %v1700 = vpop.f32.mrb[0].mxu0
        %1701 = vmatprep.mubr.bf16.mxu0 0
        %1702 = vmatmul.mubr.bf16.gmra.mrb[0].mxu0 %v1510
        %v1703 = vpop.f32.mrb[0].mxu0
        %v1704 = vadd.f32 %v1539, %v1703
        %v1705 = vpop.f32.mrb[0].mxu0
        %v1706 = vpop.f32.mrb[0].mxu0
        %v1707 = vadd.f32 %v1539, %v1706
        %v1708 = vpop.f32.mrb[0].mxu0
        %1709 = vmatprep.mubr.bf16.mxu0 0
        %1710 = vmatmul.mubr.bf16.gmra.mrb[0].mxu0 %v1511
        %v1711 = vpop.f32.mrb[0].mxu0
        %v1712 = vadd.f32 %v1539, %v1711
        %v1713 = vpop.f32.mrb[0].mxu0
        %v1714 = vpop.f32.mrb[0].mxu0
        %v1715 = vadd.f32 %v1539, %v1714
        %v1716 = vpop.f32.mrb[0].mxu0
        %1717 = vmatprep.mubr.bf16.mxu0 0
        %1718 = vmatmul.mubr.bf16.gmra.mrb[0].mxu0 %v1512
        %v1719 = vpop.f32.mrb[0].mxu0
        %v1720 = vadd.f32 %v1539, %v1719
        %v1721 = vpop.f32.mrb[0].mxu0
        %v1722 = vpop.f32.mrb[0].mxu0
        %v1723 = vadd.f32 %v1539, %v1722
        %v1724 = vpop.f32.mrb[0].mxu0
        %1725 = vmatprep.mubr.bf16.mxu0 0
        %1726 = vmatmul.mubr.bf16.gmra.mrb[0].mxu0 %v1513
        %v1727 = vpop.f32.mrb[0].mxu0
        %v1728 = vadd.f32 %v1539, %v1727
        %v1729 = vpop.f32.mrb[0].mxu0
        %v1730 = vpop.f32.mrb[0].mxu0
        %v1731 = vadd.f32 %v1539, %v1730
        %v1732 = vpop.f32.mrb[0].mxu0
        %1733 = vmatprep.mubr.bf16.mxu0 0
        %1734 = vmatmul.mubr.bf16.gmra.mrb[0].mxu0 %v1514
        %v1735 = vpop.f32.mrb[0].mxu0
        %v1736 = vadd.f32 %v1539, %v1735
        %v1737 = vpop.f32.mrb[0].mxu0
        %v1738 = vpop.f32.mrb[0].mxu0
        %v1739 = vadd.f32 %v1539, %v1738
        %v1740 = vpop.f32.mrb[0].mxu0
        %1741 = vmatprep.mubr.bf16.mxu0 0
        %1742 = vmatmul.mubr.bf16.gmra.mrb[0].mxu0 %v1515
        %v1743 = vpop.f32.mrb[0].mxu0
        %v1744 = vadd.f32 %v1539, %v1743
        %v1745 = vpop.f32.mrb[0].mxu0
        %v1746 = vpop.f32.mrb[0].mxu0
        %v1747 = vadd.f32 %v1539, %v1746
        %v1748 = vpop.f32.mrb[0].mxu0
        %1749 = vdwg.mxu0
        %v1750 = vmax.f32 %v1624, 0.0
        %v1751 = vmax.f32 %v1627, 0.0
        %v1752 = vmax.f32 %v1632, 0.0
        %v1753 = vmax.f32 %v1635, 0.0
        %v1754 = vmax.f32 %v1640, 0.0
        %v1755 = vmax.f32 %v1643, 0.0
        %v1756 = vmax.f32 %v1648, 0.0
        %v1757 = vmax.f32 %v1651, 0.0
        %v1758 = vmax.f32 %v1656, 0.0
        %v1759 = vmax.f32 %v1659, 0.0
        %v1760 = vmax.f32 %v1664, 0.0
        %v1761 = vmax.f32 %v1667, 0.0
        %v1762 = vmax.f32 %v1672, 0.0
        %v1763 = vmax.f32 %v1675, 0.0
        %v1764 = vmax.f32 %v1680, 0.0
        %v1765 = vmax.f32 %v1683, 0.0
        %v1766 = vmax.f32 %v1688, 0.0
        %v1767 = vmax.f32 %v1691, 0.0
        %v1768 = vmax.f32 %v1696, 0.0
        %v1769 = vmax.f32 %v1699, 0.0
        %v1770 = vmax.f32 %v1704, 0.0
        %v1771 = vmax.f32 %v1707, 0.0
        %v1772 = vmax.f32 %v1712, 0.0
        %v1773 = vmax.f32 %v1715, 0.0
        %v1774 = vmax.f32 %v1720, 0.0
        %v1775 = vmax.f32 %v1723, 0.0
        %v1776 = vmax.f32 %v1728, 0.0
        %v1777 = vmax.f32 %v1731, 0.0
        %v1778 = vmax.f32 %v1736, 0.0
        %v1779 = vmax.f32 %v1739, 0.0
        %v1780 = vmax.f32 %v1744, 0.0
        %v1781 = vmax.f32 %v1747, 0.0
        %v1782 = vpack.c.bf16 %v1751, %v1750
        %v1783 = vpack.c.bf16 %v1753, %v1752
        %v1784 = vpack.c.bf16 %v1755, %v1754
        %v1785 = vpack.c.bf16 %v1757, %v1756
        %v1786 = vpack.c.bf16 %v1759, %v1758
        %v1787 = vpack.c.bf16 %v1761, %v1760
        %v1788 = vpack.c.bf16 %v1763, %v1762
        %v1789 = vpack.c.bf16 %v1765, %v1764
        %v1790 = vpack.c.bf16 %v1767, %v1766
        %v1791 = vpack.c.bf16 %v1769, %v1768
        %v1792 = vpack.c.bf16 %v1771, %v1770
        %v1793 = vpack.c.bf16 %v1773, %v1772
        %v1794 = vpack.c.bf16 %v1775, %v1774
        %v1795 = vpack.c.bf16 %v1777, %v1776
        %v1796 = vpack.c.bf16 %v1779, %v1778
        %v1797 = vpack.c.bf16 %v1781, %v1780
        %s1798 = scalar_lea.vmem [#allocation7], 256
        %v1799 = vld [vmem:[%s1798] sm:$0xf]
        %v1800 = vld [vmem:[%s1798 + $0x4] sm:$0xf]
        %v1801 = vld [vmem:[%s1798 + $0x8] sm:$0xf]
        %v1802 = vld [vmem:[%s1798 + $0xc] sm:$0xf]
        %v1803 = vld [vmem:[%s1798 + $0x10] sm:$0xf]
        %v1804 = vld [vmem:[%s1798 + $0x14] sm:$0xf]
        %v1805 = vld [vmem:[%s1798 + $0x18] sm:$0xf]
        %v1806 = vld [vmem:[%s1798 + $0x1c] sm:$0xf]
        %v1807 = vld [vmem:[%s1798 + $0x20] sm:$0xf]
        %v1808 = vld [vmem:[%s1798 + $0x24] sm:$0xf]
        %v1809 = vld [vmem:[%s1798 + $0x28] sm:$0xf]
        %v1810 = vld [vmem:[%s1798 + $0x2c] sm:$0xf]
        %v1811 = vld [vmem:[%s1798 + $0x30] sm:$0xf]
        %v1812 = vld [vmem:[%s1798 + $0x34] sm:$0xf]
        %v1813 = vld [vmem:[%s1798 + $0x38] sm:$0xf]
        %v1814 = vld [vmem:[%s1798 + $0x3c] sm:$0xf]
        %s1815 = scalar_lea.vmem %s4, 4
        %v1816 = vld [vmem:[%s1815] sm:$0x1]
        %v1818 = vlaneseq
        %v1819 = vshrl.u32 %v1818, 7
        %v1820 = vsub.s32 0, %v1819
        %v1821 = vrot.slane %v1816, %v1820
        %v1839 = vunpack.c.l.b16 %v1799
        %v1840 = vunpack.c.l.b16 %v1800
        %v1841 = vunpack.c.l.b16 %v1801
        %v1842 = vunpack.c.l.b16 %v1802
        %v1843 = vunpack.c.l.b16 %v1803
        %v1844 = vunpack.c.l.b16 %v1804
        %v1845 = vunpack.c.l.b16 %v1805
        %v1846 = vunpack.c.l.b16 %v1806
        %v1847 = vunpack.c.l.b16 %v1807
        %v1848 = vunpack.c.l.b16 %v1808
        %v1849 = vunpack.c.l.b16 %v1809
        %v1850 = vunpack.c.l.b16 %v1810
        %v1851 = vunpack.c.l.b16 %v1811
        %v1852 = vunpack.c.l.b16 %v1812
        %v1853 = vunpack.c.l.b16 %v1813
        %v1854 = vunpack.c.l.b16 %v1814
        %v1855 = vpack.c.b16 %v1840, %v1839
        %v1856 = vpack.c.b16 %v1842, %v1841
        %v1857 = vpack.c.b16 %v1844, %v1843
        %v1858 = vpack.c.b16 %v1846, %v1845
        %v1859 = vpack.c.b16 %v1848, %v1847
        %v1860 = vpack.c.b16 %v1850, %v1849
        %v1861 = vpack.c.b16 %v1852, %v1851
        %v1862 = vpack.c.b16 %v1854, %v1853
        %1871 = vmatprep.subr.bf16.mxu0 0
        %1872 = vmatpush1.bf16.msra.mxu0 %v1855
        %1873 = vmatprep.subr.bf16.mxu0 0
        %1874 = vmatpush1.bf16.msra.mxu0 %v1856
        %1875 = vmatprep.subr.bf16.mxu0 0
        %1876 = vmatpush1.bf16.msra.mxu0 %v1857
        %1877 = vmatprep.subr.bf16.mxu0 0
        %1878 = vmatpush1.bf16.msra.mxu0 %v1858
        %1879 = vmatprep.subr.bf16.mxu0 0
        %1880 = vmatpush1.bf16.msra.mxu0 %v1859
        %1881 = vmatprep.subr.bf16.mxu0 0
        %1882 = vmatpush1.bf16.msra.mxu0 %v1860
        %1883 = vmatprep.subr.bf16.mxu0 0
        %1884 = vmatpush1.bf16.msra.mxu0 %v1861
        %1885 = vmatprep.subr.bf16.mxu0 0
        %1886 = vmatpush1.bf16.msra.mxu0 %v1862
        %1887 = vmatprep.subr.bf16.mxu0 0
        %1888 = vmatpush1.bf16.msra.mxu0 0
        %1889 = vmatprep.subr.bf16.mxu0 0
        %1890 = vmatpush1.bf16.msra.mxu0 0
        %1891 = vmatprep.subr.bf16.mxu0 0
        %1892 = vmatpush1.bf16.msra.mxu0 0
        %1893 = vmatprep.subr.bf16.mxu0 0
        %1894 = vmatpush1.bf16.msra.mxu0 0
        %1895 = vmatprep.subr.bf16.mxu0 0
        %1896 = vmatpush1.bf16.msra.mxu0 0
        %1897 = vmatprep.subr.bf16.mxu0 0
        %1898 = vmatpush1.bf16.msra.mxu0 0
        %1899 = vmatprep.subr.bf16.mxu0 0
        %1900 = vmatpush1.bf16.msra.mxu0 0
        %1901 = vmatprep.subr.bf16.mxu0 0
        %1902 = vmatpush1.bf16.msra.mxu0 0
        %1903 = vmatprep.mubr.bf16.mxu0 0
        %1904 = vmatmul.mubr.bf16.gmra.mrb[0].mxu0 %v1782
        %v1905 = vpop.f32.mrb[0].mxu0
        %v1906 = vadd.f32 %v1821, %v1905
        %v1907 = vpop.f32.mrb[0].mxu0
        %v1908 = vpop.f32.mrb[0].mxu0
        %v1909 = vadd.f32 %v1821, %v1908
        %v1910 = vpop.f32.mrb[0].mxu0
        %1911 = vmatprep.mubr.bf16.mxu0 0
        %1912 = vmatmul.mubr.bf16.gmra.mrb[0].mxu0 %v1783
        %v1913 = vpop.f32.mrb[0].mxu0
        %v1914 = vadd.f32 %v1821, %v1913
        %v1915 = vpop.f32.mrb[0].mxu0
        %v1916 = vpop.f32.mrb[0].mxu0
        %v1917 = vadd.f32 %v1821, %v1916
        %v1918 = vpop.f32.mrb[0].mxu0
        %1919 = vmatprep.mubr.bf16.mxu0 0
        %1920 = vmatmul.mubr.bf16.gmra.mrb[0].mxu0 %v1784
        %v1921 = vpop.f32.mrb[0].mxu0
        %v1922 = vadd.f32 %v1821, %v1921
        %v1923 = vpop.f32.mrb[0].mxu0
        %v1924 = vpop.f32.mrb[0].mxu0
        %v1925 = vadd.f32 %v1821, %v1924
        %v1926 = vpop.f32.mrb[0].mxu0
        %1927 = vmatprep.mubr.bf16.mxu0 0
        %1928 = vmatmul.mubr.bf16.gmra.mrb[0].mxu0 %v1785
        %v1929 = vpop.f32.mrb[0].mxu0
        %v1930 = vadd.f32 %v1821, %v1929
        %v1931 = vpop.f32.mrb[0].mxu0
        %v1932 = vpop.f32.mrb[0].mxu0
        %v1933 = vadd.f32 %v1821, %v1932
        %v1934 = vpop.f32.mrb[0].mxu0
        %1935 = vmatprep.mubr.bf16.mxu0 0
        %1936 = vmatmul.mubr.bf16.gmra.mrb[0].mxu0 %v1786
        %v1937 = vpop.f32.mrb[0].mxu0
        %v1938 = vadd.f32 %v1821, %v1937
        %v1939 = vpop.f32.mrb[0].mxu0
        %v1940 = vpop.f32.mrb[0].mxu0
        %v1941 = vadd.f32 %v1821, %v1940
        %v1942 = vpop.f32.mrb[0].mxu0
        %1943 = vmatprep.mubr.bf16.mxu0 0
        %1944 = vmatmul.mubr.bf16.gmra.mrb[0].mxu0 %v1787
        %v1945 = vpop.f32.mrb[0].mxu0
        %v1946 = vadd.f32 %v1821, %v1945
        %v1947 = vpop.f32.mrb[0].mxu0
        %v1948 = vpop.f32.mrb[0].mxu0
        %v1949 = vadd.f32 %v1821, %v1948
        %v1950 = vpop.f32.mrb[0].mxu0
        %1951 = vmatprep.mubr.bf16.mxu0 0
        %1952 = vmatmul.mubr.bf16.gmra.mrb[0].mxu0 %v1788
        %v1953 = vpop.f32.mrb[0].mxu0
        %v1954 = vadd.f32 %v1821, %v1953
        %v1955 = vpop.f32.mrb[0].mxu0
        %v1956 = vpop.f32.mrb[0].mxu0
        %v1957 = vadd.f32 %v1821, %v1956
        %v1958 = vpop.f32.mrb[0].mxu0
        %1959 = vmatprep.mubr.bf16.mxu0 0
        %1960 = vmatmul.mubr.bf16.gmra.mrb[0].mxu0 %v1789
        %v1961 = vpop.f32.mrb[0].mxu0
        %v1962 = vadd.f32 %v1821, %v1961
        %v1963 = vpop.f32.mrb[0].mxu0
        %v1964 = vpop.f32.mrb[0].mxu0
        %v1965 = vadd.f32 %v1821, %v1964
        %v1966 = vpop.f32.mrb[0].mxu0
        %1967 = vmatprep.mubr.bf16.mxu0 0
        %1968 = vmatmul.mubr.bf16.gmra.mrb[0].mxu0 %v1790
        %v1969 = vpop.f32.mrb[0].mxu0
        %v1970 = vadd.f32 %v1821, %v1969
        %v1971 = vpop.f32.mrb[0].mxu0
        %v1972 = vpop.f32.mrb[0].mxu0
        %v1973 = vadd.f32 %v1821, %v1972
        %v1974 = vpop.f32.mrb[0].mxu0
        %1975 = vmatprep.mubr.bf16.mxu0 0
        %1976 = vmatmul.mubr.bf16.gmra.mrb[0].mxu0 %v1791
        %v1977 = vpop.f32.mrb[0].mxu0
        %v1978 = vadd.f32 %v1821, %v1977
        %v1979 = vpop.f32.mrb[0].mxu0
        %v1980 = vpop.f32.mrb[0].mxu0
        %v1981 = vadd.f32 %v1821, %v1980
        %v1982 = vpop.f32.mrb[0].mxu0
        %1983 = vmatprep.mubr.bf16.mxu0 0
        %1984 = vmatmul.mubr.bf16.gmra.mrb[0].mxu0 %v1792
        %v1985 = vpop.f32.mrb[0].mxu0
        %v1986 = vadd.f32 %v1821, %v1985
        %v1987 = vpop.f32.mrb[0].mxu0
        %v1988 = vpop.f32.mrb[0].mxu0
        %v1989 = vadd.f32 %v1821, %v1988
        %v1990 = vpop.f32.mrb[0].mxu0
        %1991 = vmatprep.mubr.bf16.mxu0 0
        %1992 = vmatmul.mubr.bf16.gmra.mrb[0].mxu0 %v1793
        %v1993 = vpop.f32.mrb[0].mxu0
        %v1994 = vadd.f32 %v1821, %v1993
        %v1995 = vpop.f32.mrb[0].mxu0
        %v1996 = vpop.f32.mrb[0].mxu0
        %v1997 = vadd.f32 %v1821, %v1996
        %v1998 = vpop.f32.mrb[0].mxu0
        %1999 = vmatprep.mubr.bf16.mxu0 0
        %2000 = vmatmul.mubr.bf16.gmra.mrb[0].mxu0 %v1794
        %v2001 = vpop.f32.mrb[0].mxu0
        %v2002 = vadd.f32 %v1821, %v2001
        %v2003 = vpop.f32.mrb[0].mxu0
        %v2004 = vpop.f32.mrb[0].mxu0
        %v2005 = vadd.f32 %v1821, %v2004
        %v2006 = vpop.f32.mrb[0].mxu0
        %2007 = vmatprep.mubr.bf16.mxu0 0
        %2008 = vmatmul.mubr.bf16.gmra.mrb[0].mxu0 %v1795
        %v2009 = vpop.f32.mrb[0].mxu0
        %v2010 = vadd.f32 %v1821, %v2009
        %v2011 = vpop.f32.mrb[0].mxu0
        %v2012 = vpop.f32.mrb[0].mxu0
        %v2013 = vadd.f32 %v1821, %v2012
        %v2014 = vpop.f32.mrb[0].mxu0
        %2015 = vmatprep.mubr.bf16.mxu0 0
        %2016 = vmatmul.mubr.bf16.gmra.mrb[0].mxu0 %v1796
        %v2017 = vpop.f32.mrb[0].mxu0
        %v2018 = vadd.f32 %v1821, %v2017
        %v2019 = vpop.f32.mrb[0].mxu0
        %v2020 = vpop.f32.mrb[0].mxu0
        %v2021 = vadd.f32 %v1821, %v2020
        %v2022 = vpop.f32.mrb[0].mxu0
        %2023 = vmatprep.mubr.bf16.mxu0 0
        %2024 = vmatmul.mubr.bf16.gmra.mrb[0].mxu0 %v1797
        %v2025 = vpop.f32.mrb[0].mxu0
        %v2026 = vadd.f32 %v1821, %v2025
        %v2027 = vpop.f32.mrb[0].mxu0
        %v2028 = vpop.f32.mrb[0].mxu0
        %v2029 = vadd.f32 %v1821, %v2028
        %v2030 = vpop.f32.mrb[0].mxu0
        %2031 = vdwg.mxu0
        %v2032 = vmax.f32 %v1906, 0.0
        %v2033 = vmax.f32 %v1909, 0.0
        %v2034 = vmax.f32 %v1914, 0.0
        %v2035 = vmax.f32 %v1917, 0.0
        %v2036 = vmax.f32 %v1922, 0.0
        %v2037 = vmax.f32 %v1925, 0.0
        %v2038 = vmax.f32 %v1930, 0.0
        %v2039 = vmax.f32 %v1933, 0.0
        %v2040 = vmax.f32 %v1938, 0.0
        %v2041 = vmax.f32 %v1941, 0.0
        %v2042 = vmax.f32 %v1946, 0.0
        %v2043 = vmax.f32 %v1949, 0.0
        %v2044 = vmax.f32 %v1954, 0.0
        %v2045 = vmax.f32 %v1957, 0.0
        %v2046 = vmax.f32 %v1962, 0.0
        %v2047 = vmax.f32 %v1965, 0.0
        %v2048 = vmax.f32 %v1970, 0.0
        %v2049 = vmax.f32 %v1973, 0.0
        %v2050 = vmax.f32 %v1978, 0.0
        %v2051 = vmax.f32 %v1981, 0.0
        %v2052 = vmax.f32 %v1986, 0.0
        %v2053 = vmax.f32 %v1989, 0.0
        %v2054 = vmax.f32 %v1994, 0.0
        %v2055 = vmax.f32 %v1997, 0.0
        %v2056 = vmax.f32 %v2002, 0.0
        %v2057 = vmax.f32 %v2005, 0.0
        %v2058 = vmax.f32 %v2010, 0.0
        %v2059 = vmax.f32 %v2013, 0.0
        %v2060 = vmax.f32 %v2018, 0.0
        %v2061 = vmax.f32 %v2021, 0.0
        %v2062 = vmax.f32 %v2026, 0.0
        %v2063 = vmax.f32 %v2029, 0.0
        %v2064 = vpack.c.bf16 %v2033, %v2032
        %v2065 = vpack.c.bf16 %v2035, %v2034
        %v2066 = vpack.c.bf16 %v2037, %v2036
        %v2067 = vpack.c.bf16 %v2039, %v2038
        %v2068 = vpack.c.bf16 %v2041, %v2040
        %v2069 = vpack.c.bf16 %v2043, %v2042
        %v2070 = vpack.c.bf16 %v2045, %v2044
        %v2071 = vpack.c.bf16 %v2047, %v2046
        %v2072 = vpack.c.bf16 %v2049, %v2048
        %v2073 = vpack.c.bf16 %v2051, %v2050
        %v2074 = vpack.c.bf16 %v2053, %v2052
        %v2075 = vpack.c.bf16 %v2055, %v2054
        %v2076 = vpack.c.bf16 %v2057, %v2056
        %v2077 = vpack.c.bf16 %v2059, %v2058
        %v2078 = vpack.c.bf16 %v2061, %v2060
        %v2079 = vpack.c.bf16 %v2063, %v2062
        %s2080 = scalar_lea.vmem [#allocation7], 320
        %v2081 = vld [vmem:[%s2080] sm:$0xf]
        %v2082 = vld [vmem:[%s2080 + $0x4] sm:$0xf]
        %v2083 = vld [vmem:[%s2080 + $0x8] sm:$0xf]
        %v2084 = vld [vmem:[%s2080 + $0xc] sm:$0xf]
        %v2085 = vld [vmem:[%s2080 + $0x10] sm:$0xf]
        %v2086 = vld [vmem:[%s2080 + $0x14] sm:$0xf]
        %v2087 = vld [vmem:[%s2080 + $0x18] sm:$0xf]
        %v2088 = vld [vmem:[%s2080 + $0x1c] sm:$0xf]
        %v2089 = vld [vmem:[%s2080 + $0x20] sm:$0xf]
        %v2090 = vld [vmem:[%s2080 + $0x24] sm:$0xf]
        %v2091 = vld [vmem:[%s2080 + $0x28] sm:$0xf]
        %v2092 = vld [vmem:[%s2080 + $0x2c] sm:$0xf]
        %v2093 = vld [vmem:[%s2080 + $0x30] sm:$0xf]
        %v2094 = vld [vmem:[%s2080 + $0x34] sm:$0xf]
        %v2095 = vld [vmem:[%s2080 + $0x38] sm:$0xf]
        %v2096 = vld [vmem:[%s2080 + $0x3c] sm:$0xf]
        %s2097 = scalar_lea.vmem %s4, 5
        %v2098 = vld [vmem:[%s2097] sm:$0x1]
        %v2100 = vlaneseq
        %v2101 = vshrl.u32 %v2100, 7
        %v2102 = vsub.s32 0, %v2101
        %v2103 = vrot.slane %v2098, %v2102
        %v2121 = vunpack.c.l.b16 %v2081
        %v2122 = vunpack.c.l.b16 %v2082
        %v2123 = vunpack.c.l.b16 %v2083
        %v2124 = vunpack.c.l.b16 %v2084
        %v2125 = vunpack.c.l.b16 %v2085
        %v2126 = vunpack.c.l.b16 %v2086
        %v2127 = vunpack.c.l.b16 %v2087
        %v2128 = vunpack.c.l.b16 %v2088
        %v2129 = vunpack.c.l.b16 %v2089
        %v2130 = vunpack.c.l.b16 %v2090
        %v2131 = vunpack.c.l.b16 %v2091
        %v2132 = vunpack.c.l.b16 %v2092
        %v2133 = vunpack.c.l.b16 %v2093
        %v2134 = vunpack.c.l.b16 %v2094
        %v2135 = vunpack.c.l.b16 %v2095
        %v2136 = vunpack.c.l.b16 %v2096
        %v2137 = vpack.c.b16 %v2122, %v2121
        %v2138 = vpack.c.b16 %v2124, %v2123
        %v2139 = vpack.c.b16 %v2126, %v2125
        %v2140 = vpack.c.b16 %v2128, %v2127
        %v2141 = vpack.c.b16 %v2130, %v2129
        %v2142 = vpack.c.b16 %v2132, %v2131
        %v2143 = vpack.c.b16 %v2134, %v2133
        %v2144 = vpack.c.b16 %v2136, %v2135
        %2153 = vmatprep.subr.bf16.mxu0 0
        %2154 = vmatpush1.bf16.msra.mxu0 %v2137
        %2155 = vmatprep.subr.bf16.mxu0 0
        %2156 = vmatpush1.bf16.msra.mxu0 %v2138
        %2157 = vmatprep.subr.bf16.mxu0 0
        %2158 = vmatpush1.bf16.msra.mxu0 %v2139
        %2159 = vmatprep.subr.bf16.mxu0 0
        %2160 = vmatpush1.bf16.msra.mxu0 %v2140
        %2161 = vmatprep.subr.bf16.mxu0 0
        %2162 = vmatpush1.bf16.msra.mxu0 %v2141
        %2163 = vmatprep.subr.bf16.mxu0 0
        %2164 = vmatpush1.bf16.msra.mxu0 %v2142
        %2165 = vmatprep.subr.bf16.mxu0 0
        %2166 = vmatpush1.bf16.msra.mxu0 %v2143
        %2167 = vmatprep.subr.bf16.mxu0 0
        %2168 = vmatpush1.bf16.msra.mxu0 %v2144
        %2169 = vmatprep.subr.bf16.mxu0 0
        %2170 = vmatpush1.bf16.msra.mxu0 0
        %2171 = vmatprep.subr.bf16.mxu0 0
        %2172 = vmatpush1.bf16.msra.mxu0 0
        %2173 = vmatprep.subr.bf16.mxu0 0
        %2174 = vmatpush1.bf16.msra.mxu0 0
        %2175 = vmatprep.subr.bf16.mxu0 0
        %2176 = vmatpush1.bf16.msra.mxu0 0
        %2177 = vmatprep.subr.bf16.mxu0 0
        %2178 = vmatpush1.bf16.msra.mxu0 0
        %2179 = vmatprep.subr.bf16.mxu0 0
        %2180 = vmatpush1.bf16.msra.mxu0 0
        %2181 = vmatprep.subr.bf16.mxu0 0
        %2182 = vmatpush1.bf16.msra.mxu0 0
        %2183 = vmatprep.subr.bf16.mxu0 0
        %2184 = vmatpush1.bf16.msra.mxu0 0
        %2185 = vmatprep.mubr.bf16.mxu0 0
        %2186 = vmatmul.mubr.bf16.gmra.mrb[0].mxu0 %v2064
        %v2187 = vpop.f32.mrb[0].mxu0
        %v2188 = vadd.f32 %v2103, %v2187
        %v2189 = vpop.f32.mrb[0].mxu0
        %v2190 = vpop.f32.mrb[0].mxu0
        %v2191 = vadd.f32 %v2103, %v2190
        %v2192 = vpop.f32.mrb[0].mxu0
        %2193 = vmatprep.mubr.bf16.mxu0 0
        %2194 = vmatmul.mubr.bf16.gmra.mrb[0].mxu0 %v2065
        %v2195 = vpop.f32.mrb[0].mxu0
        %v2196 = vadd.f32 %v2103, %v2195
        %v2197 = vpop.f32.mrb[0].mxu0
        %v2198 = vpop.f32.mrb[0].mxu0
        %v2199 = vadd.f32 %v2103, %v2198
        %v2200 = vpop.f32.mrb[0].mxu0
        %2201 = vmatprep.mubr.bf16.mxu0 0
        %2202 = vmatmul.mubr.bf16.gmra.mrb[0].mxu0 %v2066
        %v2203 = vpop.f32.mrb[0].mxu0
        %v2204 = vadd.f32 %v2103, %v2203
        %v2205 = vpop.f32.mrb[0].mxu0
        %v2206 = vpop.f32.mrb[0].mxu0
        %v2207 = vadd.f32 %v2103, %v2206
        %v2208 = vpop.f32.mrb[0].mxu0
        %2209 = vmatprep.mubr.bf16.mxu0 0
        %2210 = vmatmul.mubr.bf16.gmra.mrb[0].mxu0 %v2067
        %v2211 = vpop.f32.mrb[0].mxu0
        %v2212 = vadd.f32 %v2103, %v2211
        %v2213 = vpop.f32.mrb[0].mxu0
        %v2214 = vpop.f32.mrb[0].mxu0
        %v2215 = vadd.f32 %v2103, %v2214
        %v2216 = vpop.f32.mrb[0].mxu0
        %2217 = vmatprep.mubr.bf16.mxu0 0
        %2218 = vmatmul.mubr.bf16.gmra.mrb[0].mxu0 %v2068
        %v2219 = vpop.f32.mrb[0].mxu0
        %v2220 = vadd.f32 %v2103, %v2219
        %v2221 = vpop.f32.mrb[0].mxu0
        %v2222 = vpop.f32.mrb[0].mxu0
        %v2223 = vadd.f32 %v2103, %v2222
        %v2224 = vpop.f32.mrb[0].mxu0
        %2225 = vmatprep.mubr.bf16.mxu0 0
        %2226 = vmatmul.mubr.bf16.gmra.mrb[0].mxu0 %v2069
        %v2227 = vpop.f32.mrb[0].mxu0
        %v2228 = vadd.f32 %v2103, %v2227
        %v2229 = vpop.f32.mrb[0].mxu0
        %v2230 = vpop.f32.mrb[0].mxu0
        %v2231 = vadd.f32 %v2103, %v2230
        %v2232 = vpop.f32.mrb[0].mxu0
        %2233 = vmatprep.mubr.bf16.mxu0 0
        %2234 = vmatmul.mubr.bf16.gmra.mrb[0].mxu0 %v2070
        %v2235 = vpop.f32.mrb[0].mxu0
        %v2236 = vadd.f32 %v2103, %v2235
        %v2237 = vpop.f32.mrb[0].mxu0
        %v2238 = vpop.f32.mrb[0].mxu0
        %v2239 = vadd.f32 %v2103, %v2238
        %v2240 = vpop.f32.mrb[0].mxu0
        %2241 = vmatprep.mubr.bf16.mxu0 0
        %2242 = vmatmul.mubr.bf16.gmra.mrb[0].mxu0 %v2071
        %v2243 = vpop.f32.mrb[0].mxu0
        %v2244 = vadd.f32 %v2103, %v2243
        %v2245 = vpop.f32.mrb[0].mxu0
        %v2246 = vpop.f32.mrb[0].mxu0
        %v2247 = vadd.f32 %v2103, %v2246
        %v2248 = vpop.f32.mrb[0].mxu0
        %2249 = vmatprep.mubr.bf16.mxu0 0
        %2250 = vmatmul.mubr.bf16.gmra.mrb[0].mxu0 %v2072
        %v2251 = vpop.f32.mrb[0].mxu0
        %v2252 = vadd.f32 %v2103, %v2251
        %v2253 = vpop.f32.mrb[0].mxu0
        %v2254 = vpop.f32.mrb[0].mxu0
        %v2255 = vadd.f32 %v2103, %v2254
        %v2256 = vpop.f32.mrb[0].mxu0
        %2257 = vmatprep.mubr.bf16.mxu0 0
        %2258 = vmatmul.mubr.bf16.gmra.mrb[0].mxu0 %v2073
        %v2259 = vpop.f32.mrb[0].mxu0
        %v2260 = vadd.f32 %v2103, %v2259
        %v2261 = vpop.f32.mrb[0].mxu0
        %v2262 = vpop.f32.mrb[0].mxu0
        %v2263 = vadd.f32 %v2103, %v2262
        %v2264 = vpop.f32.mrb[0].mxu0
        %2265 = vmatprep.mubr.bf16.mxu0 0
        %2266 = vmatmul.mubr.bf16.gmra.mrb[0].mxu0 %v2074
        %v2267 = vpop.f32.mrb[0].mxu0
        %v2268 = vadd.f32 %v2103, %v2267
        %v2269 = vpop.f32.mrb[0].mxu0
        %v2270 = vpop.f32.mrb[0].mxu0
        %v2271 = vadd.f32 %v2103, %v2270
        %v2272 = vpop.f32.mrb[0].mxu0
        %2273 = vmatprep.mubr.bf16.mxu0 0
        %2274 = vmatmul.mubr.bf16.gmra.mrb[0].mxu0 %v2075
        %v2275 = vpop.f32.mrb[0].mxu0
        %v2276 = vadd.f32 %v2103, %v2275
        %v2277 = vpop.f32.mrb[0].mxu0
        %v2278 = vpop.f32.mrb[0].mxu0
        %v2279 = vadd.f32 %v2103, %v2278
        %v2280 = vpop.f32.mrb[0].mxu0
        %2281 = vmatprep.mubr.bf16.mxu0 0
        %2282 = vmatmul.mubr.bf16.gmra.mrb[0].mxu0 %v2076
        %v2283 = vpop.f32.mrb[0].mxu0
        %v2284 = vadd.f32 %v2103, %v2283
        %v2285 = vpop.f32.mrb[0].mxu0
        %v2286 = vpop.f32.mrb[0].mxu0
        %v2287 = vadd.f32 %v2103, %v2286
        %v2288 = vpop.f32.mrb[0].mxu0
        %2289 = vmatprep.mubr.bf16.mxu0 0
        %2290 = vmatmul.mubr.bf16.gmra.mrb[0].mxu0 %v2077
        %v2291 = vpop.f32.mrb[0].mxu0
        %v2292 = vadd.f32 %v2103, %v2291
        %v2293 = vpop.f32.mrb[0].mxu0
        %v2294 = vpop.f32.mrb[0].mxu0
        %v2295 = vadd.f32 %v2103, %v2294
        %v2296 = vpop.f32.mrb[0].mxu0
        %2297 = vmatprep.mubr.bf16.mxu0 0
        %2298 = vmatmul.mubr.bf16.gmra.mrb[0].mxu0 %v2078
        %v2299 = vpop.f32.mrb[0].mxu0
        %v2300 = vadd.f32 %v2103, %v2299
        %v2301 = vpop.f32.mrb[0].mxu0
        %v2302 = vpop.f32.mrb[0].mxu0
        %v2303 = vadd.f32 %v2103, %v2302
        %v2304 = vpop.f32.mrb[0].mxu0
        %2305 = vmatprep.mubr.bf16.mxu0 0
        %2306 = vmatmul.mubr.bf16.gmra.mrb[0].mxu0 %v2079
        %v2307 = vpop.f32.mrb[0].mxu0
        %v2308 = vadd.f32 %v2103, %v2307
        %v2309 = vpop.f32.mrb[0].mxu0
        %v2310 = vpop.f32.mrb[0].mxu0
        %v2311 = vadd.f32 %v2103, %v2310
        %v2312 = vpop.f32.mrb[0].mxu0
        %2313 = vdwg.mxu0
        %v2314 = vmax.f32 %v2188, 0.0
        %v2315 = vmax.f32 %v2191, 0.0
        %v2316 = vmax.f32 %v2196, 0.0
        %v2317 = vmax.f32 %v2199, 0.0
        %v2318 = vmax.f32 %v2204, 0.0
        %v2319 = vmax.f32 %v2207, 0.0
        %v2320 = vmax.f32 %v2212, 0.0
        %v2321 = vmax.f32 %v2215, 0.0
        %v2322 = vmax.f32 %v2220, 0.0
        %v2323 = vmax.f32 %v2223, 0.0
        %v2324 = vmax.f32 %v2228, 0.0
        %v2325 = vmax.f32 %v2231, 0.0
        %v2326 = vmax.f32 %v2236, 0.0
        %v2327 = vmax.f32 %v2239, 0.0
        %v2328 = vmax.f32 %v2244, 0.0
        %v2329 = vmax.f32 %v2247, 0.0
        %v2330 = vmax.f32 %v2252, 0.0
        %v2331 = vmax.f32 %v2255, 0.0
        %v2332 = vmax.f32 %v2260, 0.0
        %v2333 = vmax.f32 %v2263, 0.0
        %v2334 = vmax.f32 %v2268, 0.0
        %v2335 = vmax.f32 %v2271, 0.0
        %v2336 = vmax.f32 %v2276, 0.0
        %v2337 = vmax.f32 %v2279, 0.0
        %v2338 = vmax.f32 %v2284, 0.0
        %v2339 = vmax.f32 %v2287, 0.0
        %v2340 = vmax.f32 %v2292, 0.0
        %v2341 = vmax.f32 %v2295, 0.0
        %v2342 = vmax.f32 %v2300, 0.0
        %v2343 = vmax.f32 %v2303, 0.0
        %v2344 = vmax.f32 %v2308, 0.0
        %v2345 = vmax.f32 %v2311, 0.0
        %v2346 = vpack.c.bf16 %v2315, %v2314
        %v2347 = vpack.c.bf16 %v2317, %v2316
        %v2348 = vpack.c.bf16 %v2319, %v2318
        %v2349 = vpack.c.bf16 %v2321, %v2320
        %v2350 = vpack.c.bf16 %v2323, %v2322
        %v2351 = vpack.c.bf16 %v2325, %v2324
        %v2352 = vpack.c.bf16 %v2327, %v2326
        %v2353 = vpack.c.bf16 %v2329, %v2328
        %v2354 = vpack.c.bf16 %v2331, %v2330
        %v2355 = vpack.c.bf16 %v2333, %v2332
        %v2356 = vpack.c.bf16 %v2335, %v2334
        %v2357 = vpack.c.bf16 %v2337, %v2336
        %v2358 = vpack.c.bf16 %v2339, %v2338
        %v2359 = vpack.c.bf16 %v2341, %v2340
        %v2360 = vpack.c.bf16 %v2343, %v2342
        %v2361 = vpack.c.bf16 %v2345, %v2344
        %s2362 = scalar_lea.vmem [#allocation7], 384
        %v2363 = vld [vmem:[%s2362] sm:$0xf]
        %v2364 = vld [vmem:[%s2362 + $0x4] sm:$0xf]
        %v2365 = vld [vmem:[%s2362 + $0x8] sm:$0xf]
        %v2366 = vld [vmem:[%s2362 + $0xc] sm:$0xf]
        %v2367 = vld [vmem:[%s2362 + $0x10] sm:$0xf]
        %v2368 = vld [vmem:[%s2362 + $0x14] sm:$0xf]
        %v2369 = vld [vmem:[%s2362 + $0x18] sm:$0xf]
        %v2370 = vld [vmem:[%s2362 + $0x1c] sm:$0xf]
        %v2371 = vld [vmem:[%s2362 + $0x20] sm:$0xf]
        %v2372 = vld [vmem:[%s2362 + $0x24] sm:$0xf]
        %v2373 = vld [vmem:[%s2362 + $0x28] sm:$0xf]
        %v2374 = vld [vmem:[%s2362 + $0x2c] sm:$0xf]
        %v2375 = vld [vmem:[%s2362 + $0x30] sm:$0xf]
        %v2376 = vld [vmem:[%s2362 + $0x34] sm:$0xf]
        %v2377 = vld [vmem:[%s2362 + $0x38] sm:$0xf]
        %v2378 = vld [vmem:[%s2362 + $0x3c] sm:$0xf]
        %s2379 = scalar_lea.vmem %s4, 6
        %v2380 = vld [vmem:[%s2379] sm:$0x1]
        %v2382 = vlaneseq
        %v2383 = vshrl.u32 %v2382, 7
        %v2384 = vsub.s32 0, %v2383
        %v2385 = vrot.slane %v2380, %v2384
        %v2403 = vunpack.c.l.b16 %v2363
        %v2404 = vunpack.c.l.b16 %v2364
        %v2405 = vunpack.c.l.b16 %v2365
        %v2406 = vunpack.c.l.b16 %v2366
        %v2407 = vunpack.c.l.b16 %v2367
        %v2408 = vunpack.c.l.b16 %v2368
        %v2409 = vunpack.c.l.b16 %v2369
        %v2410 = vunpack.c.l.b16 %v2370
        %v2411 = vunpack.c.l.b16 %v2371
        %v2412 = vunpack.c.l.b16 %v2372
        %v2413 = vunpack.c.l.b16 %v2373
        %v2414 = vunpack.c.l.b16 %v2374
        %v2415 = vunpack.c.l.b16 %v2375
        %v2416 = vunpack.c.l.b16 %v2376
        %v2417 = vunpack.c.l.b16 %v2377
        %v2418 = vunpack.c.l.b16 %v2378
        %v2419 = vpack.c.b16 %v2404, %v2403
        %v2420 = vpack.c.b16 %v2406, %v2405
        %v2421 = vpack.c.b16 %v2408, %v2407
        %v2422 = vpack.c.b16 %v2410, %v2409
        %v2423 = vpack.c.b16 %v2412, %v2411
        %v2424 = vpack.c.b16 %v2414, %v2413
        %v2425 = vpack.c.b16 %v2416, %v2415
        %v2426 = vpack.c.b16 %v2418, %v2417
        %2435 = vmatprep.subr.bf16.mxu0 0
        %2436 = vmatpush1.bf16.msra.mxu0 %v2419
        %2437 = vmatprep.subr.bf16.mxu0 0
        %2438 = vmatpush1.bf16.msra.mxu0 %v2420
        %2439 = vmatprep.subr.bf16.mxu0 0
        %2440 = vmatpush1.bf16.msra.mxu0 %v2421
        %2441 = vmatprep.subr.bf16.mxu0 0
        %2442 = vmatpush1.bf16.msra.mxu0 %v2422
        %2443 = vmatprep.subr.bf16.mxu0 0
        %2444 = vmatpush1.bf16.msra.mxu0 %v2423
        %2445 = vmatprep.subr.bf16.mxu0 0
        %2446 = vmatpush1.bf16.msra.mxu0 %v2424
        %2447 = vmatprep.subr.bf16.mxu0 0
        %2448 = vmatpush1.bf16.msra.mxu0 %v2425
        %2449 = vmatprep.subr.bf16.mxu0 0
        %2450 = vmatpush1.bf16.msra.mxu0 %v2426
        %2451 = vmatprep.subr.bf16.mxu0 0
        %2452 = vmatpush1.bf16.msra.mxu0 0
        %2453 = vmatprep.subr.bf16.mxu0 0
        %2454 = vmatpush1.bf16.msra.mxu0 0
        %2455 = vmatprep.subr.bf16.mxu0 0
        %2456 = vmatpush1.bf16.msra.mxu0 0
        %2457 = vmatprep.subr.bf16.mxu0 0
        %2458 = vmatpush1.bf16.msra.mxu0 0
        %2459 = vmatprep.subr.bf16.mxu0 0
        %2460 = vmatpush1.bf16.msra.mxu0 0
        %2461 = vmatprep.subr.bf16.mxu0 0
        %2462 = vmatpush1.bf16.msra.mxu0 0
        %2463 = vmatprep.subr.bf16.mxu0 0
        %2464 = vmatpush1.bf16.msra.mxu0 0
        %2465 = vmatprep.subr.bf16.mxu0 0
        %2466 = vmatpush1.bf16.msra.mxu0 0
        %2467 = vmatprep.mubr.bf16.mxu0 0
        %2468 = vmatmul.mubr.bf16.gmra.mrb[0].mxu0 %v2346
        %v2469 = vpop.f32.mrb[0].mxu0
        %v2470 = vadd.f32 %v2385, %v2469
        %v2471 = vpop.f32.mrb[0].mxu0
        %v2472 = vpop.f32.mrb[0].mxu0
        %v2473 = vadd.f32 %v2385, %v2472
        %v2474 = vpop.f32.mrb[0].mxu0
        %2475 = vmatprep.mubr.bf16.mxu0 0
        %2476 = vmatmul.mubr.bf16.gmra.mrb[0].mxu0 %v2347
        %v2477 = vpop.f32.mrb[0].mxu0
        %v2478 = vadd.f32 %v2385, %v2477
        %v2479 = vpop.f32.mrb[0].mxu0
        %v2480 = vpop.f32.mrb[0].mxu0
        %v2481 = vadd.f32 %v2385, %v2480
        %v2482 = vpop.f32.mrb[0].mxu0
        %2483 = vmatprep.mubr.bf16.mxu0 0
        %2484 = vmatmul.mubr.bf16.gmra.mrb[0].mxu0 %v2348
        %v2485 = vpop.f32.mrb[0].mxu0
        %v2486 = vadd.f32 %v2385, %v2485
        %v2487 = vpop.f32.mrb[0].mxu0
        %v2488 = vpop.f32.mrb[0].mxu0
        %v2489 = vadd.f32 %v2385, %v2488
        %v2490 = vpop.f32.mrb[0].mxu0
        %2491 = vmatprep.mubr.bf16.mxu0 0
        %2492 = vmatmul.mubr.bf16.gmra.mrb[0].mxu0 %v2349
        %v2493 = vpop.f32.mrb[0].mxu0
        %v2494 = vadd.f32 %v2385, %v2493
        %v2495 = vpop.f32.mrb[0].mxu0
        %v2496 = vpop.f32.mrb[0].mxu0
        %v2497 = vadd.f32 %v2385, %v2496
        %v2498 = vpop.f32.mrb[0].mxu0
        %2499 = vmatprep.mubr.bf16.mxu0 0
        %2500 = vmatmul.mubr.bf16.gmra.mrb[0].mxu0 %v2350
        %v2501 = vpop.f32.mrb[0].mxu0
        %v2502 = vadd.f32 %v2385, %v2501
        %v2503 = vpop.f32.mrb[0].mxu0
        %v2504 = vpop.f32.mrb[0].mxu0
        %v2505 = vadd.f32 %v2385, %v2504
        %v2506 = vpop.f32.mrb[0].mxu0
        %2507 = vmatprep.mubr.bf16.mxu0 0
        %2508 = vmatmul.mubr.bf16.gmra.mrb[0].mxu0 %v2351
        %v2509 = vpop.f32.mrb[0].mxu0
        %v2510 = vadd.f32 %v2385, %v2509
        %v2511 = vpop.f32.mrb[0].mxu0
        %v2512 = vpop.f32.mrb[0].mxu0
        %v2513 = vadd.f32 %v2385, %v2512
        %v2514 = vpop.f32.mrb[0].mxu0
        %2515 = vmatprep.mubr.bf16.mxu0 0
        %2516 = vmatmul.mubr.bf16.gmra.mrb[0].mxu0 %v2352
        %v2517 = vpop.f32.mrb[0].mxu0
        %v2518 = vadd.f32 %v2385, %v2517
        %v2519 = vpop.f32.mrb[0].mxu0
        %v2520 = vpop.f32.mrb[0].mxu0
        %v2521 = vadd.f32 %v2385, %v2520
        %v2522 = vpop.f32.mrb[0].mxu0
        %2523 = vmatprep.mubr.bf16.mxu0 0
        %2524 = vmatmul.mubr.bf16.gmra.mrb[0].mxu0 %v2353
        %v2525 = vpop.f32.mrb[0].mxu0
        %v2526 = vadd.f32 %v2385, %v2525
        %v2527 = vpop.f32.mrb[0].mxu0
        %v2528 = vpop.f32.mrb[0].mxu0
        %v2529 = vadd.f32 %v2385, %v2528
        %v2530 = vpop.f32.mrb[0].mxu0
        %2531 = vmatprep.mubr.bf16.mxu0 0
        %2532 = vmatmul.mubr.bf16.gmra.mrb[0].mxu0 %v2354
        %v2533 = vpop.f32.mrb[0].mxu0
        %v2534 = vadd.f32 %v2385, %v2533
        %v2535 = vpop.f32.mrb[0].mxu0
        %v2536 = vpop.f32.mrb[0].mxu0
        %v2537 = vadd.f32 %v2385, %v2536
        %v2538 = vpop.f32.mrb[0].mxu0
        %2539 = vmatprep.mubr.bf16.mxu0 0
        %2540 = vmatmul.mubr.bf16.gmra.mrb[0].mxu0 %v2355
        %v2541 = vpop.f32.mrb[0].mxu0
        %v2542 = vadd.f32 %v2385, %v2541
        %v2543 = vpop.f32.mrb[0].mxu0
        %v2544 = vpop.f32.mrb[0].mxu0
        %v2545 = vadd.f32 %v2385, %v2544
        %v2546 = vpop.f32.mrb[0].mxu0
        %2547 = vmatprep.mubr.bf16.mxu0 0
        %2548 = vmatmul.mubr.bf16.gmra.mrb[0].mxu0 %v2356
        %v2549 = vpop.f32.mrb[0].mxu0
        %v2550 = vadd.f32 %v2385, %v2549
        %v2551 = vpop.f32.mrb[0].mxu0
        %v2552 = vpop.f32.mrb[0].mxu0
        %v2553 = vadd.f32 %v2385, %v2552
        %v2554 = vpop.f32.mrb[0].mxu0
        %2555 = vmatprep.mubr.bf16.mxu0 0
        %2556 = vmatmul.mubr.bf16.gmra.mrb[0].mxu0 %v2357
        %v2557 = vpop.f32.mrb[0].mxu0
        %v2558 = vadd.f32 %v2385, %v2557
        %v2559 = vpop.f32.mrb[0].mxu0
        %v2560 = vpop.f32.mrb[0].mxu0
        %v2561 = vadd.f32 %v2385, %v2560
        %v2562 = vpop.f32.mrb[0].mxu0
        %2563 = vmatprep.mubr.bf16.mxu0 0
        %2564 = vmatmul.mubr.bf16.gmra.mrb[0].mxu0 %v2358
        %v2565 = vpop.f32.mrb[0].mxu0
        %v2566 = vadd.f32 %v2385, %v2565
        %v2567 = vpop.f32.mrb[0].mxu0
        %v2568 = vpop.f32.mrb[0].mxu0
        %v2569 = vadd.f32 %v2385, %v2568
        %v2570 = vpop.f32.mrb[0].mxu0
        %2571 = vmatprep.mubr.bf16.mxu0 0
        %2572 = vmatmul.mubr.bf16.gmra.mrb[0].mxu0 %v2359
        %v2573 = vpop.f32.mrb[0].mxu0
        %v2574 = vadd.f32 %v2385, %v2573
        %v2575 = vpop.f32.mrb[0].mxu0
        %v2576 = vpop.f32.mrb[0].mxu0
        %v2577 = vadd.f32 %v2385, %v2576
        %v2578 = vpop.f32.mrb[0].mxu0
        %2579 = vmatprep.mubr.bf16.mxu0 0
        %2580 = vmatmul.mubr.bf16.gmra.mrb[0].mxu0 %v2360
        %v2581 = vpop.f32.mrb[0].mxu0
        %v2582 = vadd.f32 %v2385, %v2581
        %v2583 = vpop.f32.mrb[0].mxu0
        %v2584 = vpop.f32.mrb[0].mxu0
        %v2585 = vadd.f32 %v2385, %v2584
        %v2586 = vpop.f32.mrb[0].mxu0
        %2587 = vmatprep.mubr.bf16.mxu0 0
        %2588 = vmatmul.mubr.bf16.gmra.mrb[0].mxu0 %v2361
        %v2589 = vpop.f32.mrb[0].mxu0
        %v2590 = vadd.f32 %v2385, %v2589
        %v2591 = vpop.f32.mrb[0].mxu0
        %v2592 = vpop.f32.mrb[0].mxu0
        %v2593 = vadd.f32 %v2385, %v2592
        %v2594 = vpop.f32.mrb[0].mxu0
        %2595 = vdwg.mxu0
        %v2596 = vmax.f32 %v2470, 0.0
        %v2597 = vmax.f32 %v2473, 0.0
        %v2598 = vmax.f32 %v2478, 0.0
        %v2599 = vmax.f32 %v2481, 0.0
        %v2600 = vmax.f32 %v2486, 0.0
        %v2601 = vmax.f32 %v2489, 0.0
        %v2602 = vmax.f32 %v2494, 0.0
        %v2603 = vmax.f32 %v2497, 0.0
        %v2604 = vmax.f32 %v2502, 0.0
        %v2605 = vmax.f32 %v2505, 0.0
        %v2606 = vmax.f32 %v2510, 0.0
        %v2607 = vmax.f32 %v2513, 0.0
        %v2608 = vmax.f32 %v2518, 0.0
        %v2609 = vmax.f32 %v2521, 0.0
        %v2610 = vmax.f32 %v2526, 0.0
        %v2611 = vmax.f32 %v2529, 0.0
        %v2612 = vmax.f32 %v2534, 0.0
        %v2613 = vmax.f32 %v2537, 0.0
        %v2614 = vmax.f32 %v2542, 0.0
        %v2615 = vmax.f32 %v2545, 0.0
        %v2616 = vmax.f32 %v2550, 0.0
        %v2617 = vmax.f32 %v2553, 0.0
        %v2618 = vmax.f32 %v2558, 0.0
        %v2619 = vmax.f32 %v2561, 0.0
        %v2620 = vmax.f32 %v2566, 0.0
        %v2621 = vmax.f32 %v2569, 0.0
        %v2622 = vmax.f32 %v2574, 0.0
        %v2623 = vmax.f32 %v2577, 0.0
        %v2624 = vmax.f32 %v2582, 0.0
        %v2625 = vmax.f32 %v2585, 0.0
        %v2626 = vmax.f32 %v2590, 0.0
        %v2627 = vmax.f32 %v2593, 0.0
        %v2628 = vpack.c.bf16 %v2597, %v2596
        %v2629 = vpack.c.bf16 %v2599, %v2598
        %v2630 = vpack.c.bf16 %v2601, %v2600
        %v2631 = vpack.c.bf16 %v2603, %v2602
        %v2632 = vpack.c.bf16 %v2605, %v2604
        %v2633 = vpack.c.bf16 %v2607, %v2606
        %v2634 = vpack.c.bf16 %v2609, %v2608
        %v2635 = vpack.c.bf16 %v2611, %v2610
        %v2636 = vpack.c.bf16 %v2613, %v2612
        %v2637 = vpack.c.bf16 %v2615, %v2614
        %v2638 = vpack.c.bf16 %v2617, %v2616
        %v2639 = vpack.c.bf16 %v2619, %v2618
        %v2640 = vpack.c.bf16 %v2621, %v2620
        %v2641 = vpack.c.bf16 %v2623, %v2622
        %v2642 = vpack.c.bf16 %v2625, %v2624
        %v2643 = vpack.c.bf16 %v2627, %v2626
        %s2644 = scalar_lea.vmem [#allocation7], 448
        %v2645 = vld [vmem:[%s2644] sm:$0xf]
        %v2646 = vld [vmem:[%s2644 + $0x4] sm:$0xf]
        %v2647 = vld [vmem:[%s2644 + $0x8] sm:$0xf]
        %v2648 = vld [vmem:[%s2644 + $0xc] sm:$0xf]
        %v2649 = vld [vmem:[%s2644 + $0x10] sm:$0xf]
        %v2650 = vld [vmem:[%s2644 + $0x14] sm:$0xf]
        %v2651 = vld [vmem:[%s2644 + $0x18] sm:$0xf]
        %v2652 = vld [vmem:[%s2644 + $0x1c] sm:$0xf]
        %v2653 = vld [vmem:[%s2644 + $0x20] sm:$0xf]
        %v2654 = vld [vmem:[%s2644 + $0x24] sm:$0xf]
        %v2655 = vld [vmem:[%s2644 + $0x28] sm:$0xf]
        %v2656 = vld [vmem:[%s2644 + $0x2c] sm:$0xf]
        %v2657 = vld [vmem:[%s2644 + $0x30] sm:$0xf]
        %v2658 = vld [vmem:[%s2644 + $0x34] sm:$0xf]
        %v2659 = vld [vmem:[%s2644 + $0x38] sm:$0xf]
        %v2660 = vld [vmem:[%s2644 + $0x3c] sm:$0xf]
        %s2661 = scalar_lea.vmem %s4, 7
        %v2662 = vld [vmem:[%s2661] sm:$0x1]
        %v2664 = vlaneseq
        %v2665 = vshrl.u32 %v2664, 7
        %v2666 = vsub.s32 0, %v2665
        %v2667 = vrot.slane %v2662, %v2666
        %v2685 = vunpack.c.l.b16 %v2645
        %v2686 = vunpack.c.l.b16 %v2646
        %v2687 = vunpack.c.l.b16 %v2647
        %v2688 = vunpack.c.l.b16 %v2648
        %v2689 = vunpack.c.l.b16 %v2649
        %v2690 = vunpack.c.l.b16 %v2650
        %v2691 = vunpack.c.l.b16 %v2651
        %v2692 = vunpack.c.l.b16 %v2652
        %v2693 = vunpack.c.l.b16 %v2653
        %v2694 = vunpack.c.l.b16 %v2654
        %v2695 = vunpack.c.l.b16 %v2655
        %v2696 = vunpack.c.l.b16 %v2656
        %v2697 = vunpack.c.l.b16 %v2657
        %v2698 = vunpack.c.l.b16 %v2658
        %v2699 = vunpack.c.l.b16 %v2659
        %v2700 = vunpack.c.l.b16 %v2660
        %v2701 = vpack.c.b16 %v2686, %v2685
        %v2702 = vpack.c.b16 %v2688, %v2687
        %v2703 = vpack.c.b16 %v2690, %v2689
        %v2704 = vpack.c.b16 %v2692, %v2691
        %v2705 = vpack.c.b16 %v2694, %v2693
        %v2706 = vpack.c.b16 %v2696, %v2695
        %v2707 = vpack.c.b16 %v2698, %v2697
        %v2708 = vpack.c.b16 %v2700, %v2699
        %2717 = vmatprep.subr.bf16.mxu0 0
        %2718 = vmatpush1.bf16.msra.mxu0 %v2701
        %2719 = vmatprep.subr.bf16.mxu0 0
        %2720 = vmatpush1.bf16.msra.mxu0 %v2702
        %2721 = vmatprep.subr.bf16.mxu0 0
        %2722 = vmatpush1.bf16.msra.mxu0 %v2703
        %2723 = vmatprep.subr.bf16.mxu0 0
        %2724 = vmatpush1.bf16.msra.mxu0 %v2704
        %2725 = vmatprep.subr.bf16.mxu0 0
        %2726 = vmatpush1.bf16.msra.mxu0 %v2705
        %2727 = vmatprep.subr.bf16.mxu0 0
        %2728 = vmatpush1.bf16.msra.mxu0 %v2706
        %2729 = vmatprep.subr.bf16.mxu0 0
        %2730 = vmatpush1.bf16.msra.mxu0 %v2707
        %2731 = vmatprep.subr.bf16.mxu0 0
        %2732 = vmatpush1.bf16.msra.mxu0 %v2708
        %2733 = vmatprep.subr.bf16.mxu0 0
        %2734 = vmatpush1.bf16.msra.mxu0 0
        %2735 = vmatprep.subr.bf16.mxu0 0
        %2736 = vmatpush1.bf16.msra.mxu0 0
        %2737 = vmatprep.subr.bf16.mxu0 0
        %2738 = vmatpush1.bf16.msra.mxu0 0
        %2739 = vmatprep.subr.bf16.mxu0 0
        %2740 = vmatpush1.bf16.msra.mxu0 0
        %2741 = vmatprep.subr.bf16.mxu0 0
        %2742 = vmatpush1.bf16.msra.mxu0 0
        %2743 = vmatprep.subr.bf16.mxu0 0
        %2744 = vmatpush1.bf16.msra.mxu0 0
        %2745 = vmatprep.subr.bf16.mxu0 0
        %2746 = vmatpush1.bf16.msra.mxu0 0
        %2747 = vmatprep.subr.bf16.mxu0 0
        %2748 = vmatpush1.bf16.msra.mxu0 0
        %2749 = vmatprep.mubr.bf16.mxu0 0
        %2750 = vmatmul.mubr.bf16.gmra.mrb[0].mxu0 %v2628
        %v2751 = vpop.f32.mrb[0].mxu0
        %v2752 = vadd.f32 %v2667, %v2751
        %v2753 = vpop.f32.mrb[0].mxu0
        %v2754 = vpop.f32.mrb[0].mxu0
        %v2755 = vadd.f32 %v2667, %v2754
        %v2756 = vpop.f32.mrb[0].mxu0
        %2757 = vmatprep.mubr.bf16.mxu0 0
        %2758 = vmatmul.mubr.bf16.gmra.mrb[0].mxu0 %v2629
        %v2759 = vpop.f32.mrb[0].mxu0
        %v2760 = vadd.f32 %v2667, %v2759
        %v2761 = vpop.f32.mrb[0].mxu0
        %v2762 = vpop.f32.mrb[0].mxu0
        %v2763 = vadd.f32 %v2667, %v2762
        %v2764 = vpop.f32.mrb[0].mxu0
        %2765 = vmatprep.mubr.bf16.mxu0 0
        %2766 = vmatmul.mubr.bf16.gmra.mrb[0].mxu0 %v2630
        %v2767 = vpop.f32.mrb[0].mxu0
        %v2768 = vadd.f32 %v2667, %v2767
        %v2769 = vpop.f32.mrb[0].mxu0
        %v2770 = vpop.f32.mrb[0].mxu0
        %v2771 = vadd.f32 %v2667, %v2770
        %v2772 = vpop.f32.mrb[0].mxu0
        %2773 = vmatprep.mubr.bf16.mxu0 0
        %2774 = vmatmul.mubr.bf16.gmra.mrb[0].mxu0 %v2631
        %v2775 = vpop.f32.mrb[0].mxu0
        %v2776 = vadd.f32 %v2667, %v2775
        %v2777 = vpop.f32.mrb[0].mxu0
        %v2778 = vpop.f32.mrb[0].mxu0
        %v2779 = vadd.f32 %v2667, %v2778
        %v2780 = vpop.f32.mrb[0].mxu0
        %2781 = vmatprep.mubr.bf16.mxu0 0
        %2782 = vmatmul.mubr.bf16.gmra.mrb[0].mxu0 %v2632
        %v2783 = vpop.f32.mrb[0].mxu0
        %v2784 = vadd.f32 %v2667, %v2783
        %v2785 = vpop.f32.mrb[0].mxu0
        %v2786 = vpop.f32.mrb[0].mxu0
        %v2787 = vadd.f32 %v2667, %v2786
        %v2788 = vpop.f32.mrb[0].mxu0
        %2789 = vmatprep.mubr.bf16.mxu0 0
        %2790 = vmatmul.mubr.bf16.gmra.mrb[0].mxu0 %v2633
        %v2791 = vpop.f32.mrb[0].mxu0
        %v2792 = vadd.f32 %v2667, %v2791
        %v2793 = vpop.f32.mrb[0].mxu0
        %v2794 = vpop.f32.mrb[0].mxu0
        %v2795 = vadd.f32 %v2667, %v2794
        %v2796 = vpop.f32.mrb[0].mxu0
        %2797 = vmatprep.mubr.bf16.mxu0 0
        %2798 = vmatmul.mubr.bf16.gmra.mrb[0].mxu0 %v2634
        %v2799 = vpop.f32.mrb[0].mxu0
        %v2800 = vadd.f32 %v2667, %v2799
        %v2801 = vpop.f32.mrb[0].mxu0
        %v2802 = vpop.f32.mrb[0].mxu0
        %v2803 = vadd.f32 %v2667, %v2802
        %v2804 = vpop.f32.mrb[0].mxu0
        %2805 = vmatprep.mubr.bf16.mxu0 0
        %2806 = vmatmul.mubr.bf16.gmra.mrb[0].mxu0 %v2635
        %v2807 = vpop.f32.mrb[0].mxu0
        %v2808 = vadd.f32 %v2667, %v2807
        %v2809 = vpop.f32.mrb[0].mxu0
        %v2810 = vpop.f32.mrb[0].mxu0
        %v2811 = vadd.f32 %v2667, %v2810
        %v2812 = vpop.f32.mrb[0].mxu0
        %2813 = vmatprep.mubr.bf16.mxu0 0
        %2814 = vmatmul.mubr.bf16.gmra.mrb[0].mxu0 %v2636
        %v2815 = vpop.f32.mrb[0].mxu0
        %v2816 = vadd.f32 %v2667, %v2815
        %v2817 = vpop.f32.mrb[0].mxu0
        %v2818 = vpop.f32.mrb[0].mxu0
        %v2819 = vadd.f32 %v2667, %v2818
        %v2820 = vpop.f32.mrb[0].mxu0
        %2821 = vmatprep.mubr.bf16.mxu0 0
        %2822 = vmatmul.mubr.bf16.gmra.mrb[0].mxu0 %v2637
        %v2823 = vpop.f32.mrb[0].mxu0
        %v2824 = vadd.f32 %v2667, %v2823
        %v2825 = vpop.f32.mrb[0].mxu0
        %v2826 = vpop.f32.mrb[0].mxu0
        %v2827 = vadd.f32 %v2667, %v2826
        %v2828 = vpop.f32.mrb[0].mxu0
        %2829 = vmatprep.mubr.bf16.mxu0 0
        %2830 = vmatmul.mubr.bf16.gmra.mrb[0].mxu0 %v2638
        %v2831 = vpop.f32.mrb[0].mxu0
        %v2832 = vadd.f32 %v2667, %v2831
        %v2833 = vpop.f32.mrb[0].mxu0
        %v2834 = vpop.f32.mrb[0].mxu0
        %v2835 = vadd.f32 %v2667, %v2834
        %v2836 = vpop.f32.mrb[0].mxu0
        %2837 = vmatprep.mubr.bf16.mxu0 0
        %2838 = vmatmul.mubr.bf16.gmra.mrb[0].mxu0 %v2639
        %v2839 = vpop.f32.mrb[0].mxu0
        %v2840 = vadd.f32 %v2667, %v2839
        %v2841 = vpop.f32.mrb[0].mxu0
        %v2842 = vpop.f32.mrb[0].mxu0
        %v2843 = vadd.f32 %v2667, %v2842
        %v2844 = vpop.f32.mrb[0].mxu0
        %2845 = vmatprep.mubr.bf16.mxu0 0
        %2846 = vmatmul.mubr.bf16.gmra.mrb[0].mxu0 %v2640
        %v2847 = vpop.f32.mrb[0].mxu0
        %v2848 = vadd.f32 %v2667, %v2847
        %v2849 = vpop.f32.mrb[0].mxu0
        %v2850 = vpop.f32.mrb[0].mxu0
        %v2851 = vadd.f32 %v2667, %v2850
        %v2852 = vpop.f32.mrb[0].mxu0
        %2853 = vmatprep.mubr.bf16.mxu0 0
        %2854 = vmatmul.mubr.bf16.gmra.mrb[0].mxu0 %v2641
        %v2855 = vpop.f32.mrb[0].mxu0
        %v2856 = vadd.f32 %v2667, %v2855
        %v2857 = vpop.f32.mrb[0].mxu0
        %v2858 = vpop.f32.mrb[0].mxu0
        %v2859 = vadd.f32 %v2667, %v2858
        %v2860 = vpop.f32.mrb[0].mxu0
        %2861 = vmatprep.mubr.bf16.mxu0 0
        %2862 = vmatmul.mubr.bf16.gmra.mrb[0].mxu0 %v2642
        %v2863 = vpop.f32.mrb[0].mxu0
        %v2864 = vadd.f32 %v2667, %v2863
        %v2865 = vpop.f32.mrb[0].mxu0
        %v2866 = vpop.f32.mrb[0].mxu0
        %v2867 = vadd.f32 %v2667, %v2866
        %v2868 = vpop.f32.mrb[0].mxu0
        %2869 = vmatprep.mubr.bf16.mxu0 0
        %2870 = vmatmul.mubr.bf16.gmra.mrb[0].mxu0 %v2643
        %v2871 = vpop.f32.mrb[0].mxu0
        %v2872 = vadd.f32 %v2667, %v2871
        %v2873 = vpop.f32.mrb[0].mxu0
        %v2874 = vpop.f32.mrb[0].mxu0
        %v2875 = vadd.f32 %v2667, %v2874
        %v2876 = vpop.f32.mrb[0].mxu0
        %2877 = vdwg.mxu0
        %v2878 = vmax.f32 %v2752, 0.0
        %v2879 = vmax.f32 %v2755, 0.0
        %v2880 = vmax.f32 %v2760, 0.0
        %v2881 = vmax.f32 %v2763, 0.0
        %v2882 = vmax.f32 %v2768, 0.0
        %v2883 = vmax.f32 %v2771, 0.0
        %v2884 = vmax.f32 %v2776, 0.0
        %v2885 = vmax.f32 %v2779, 0.0
        %v2886 = vmax.f32 %v2784, 0.0
        %v2887 = vmax.f32 %v2787, 0.0
        %v2888 = vmax.f32 %v2792, 0.0
        %v2889 = vmax.f32 %v2795, 0.0
        %v2890 = vmax.f32 %v2800, 0.0
        %v2891 = vmax.f32 %v2803, 0.0
        %v2892 = vmax.f32 %v2808, 0.0
        %v2893 = vmax.f32 %v2811, 0.0
        %v2894 = vmax.f32 %v2816, 0.0
        %v2895 = vmax.f32 %v2819, 0.0
        %v2896 = vmax.f32 %v2824, 0.0
        %v2897 = vmax.f32 %v2827, 0.0
        %v2898 = vmax.f32 %v2832, 0.0
        %v2899 = vmax.f32 %v2835, 0.0
        %v2900 = vmax.f32 %v2840, 0.0
        %v2901 = vmax.f32 %v2843, 0.0
        %v2902 = vmax.f32 %v2848, 0.0
        %v2903 = vmax.f32 %v2851, 0.0
        %v2904 = vmax.f32 %v2856, 0.0
        %v2905 = vmax.f32 %v2859, 0.0
        %v2906 = vmax.f32 %v2864, 0.0
        %v2907 = vmax.f32 %v2867, 0.0
        %v2908 = vmax.f32 %v2872, 0.0
        %v2909 = vmax.f32 %v2875, 0.0
        %v2910 = vpack.c.bf16 %v2879, %v2878
        %v2911 = vpack.c.bf16 %v2881, %v2880
        %v2912 = vpack.c.bf16 %v2883, %v2882
        %v2913 = vpack.c.bf16 %v2885, %v2884
        %v2914 = vpack.c.bf16 %v2887, %v2886
        %v2915 = vpack.c.bf16 %v2889, %v2888
        %v2916 = vpack.c.bf16 %v2891, %v2890
        %v2917 = vpack.c.bf16 %v2893, %v2892
        %v2918 = vpack.c.bf16 %v2895, %v2894
        %v2919 = vpack.c.bf16 %v2897, %v2896
        %v2920 = vpack.c.bf16 %v2899, %v2898
        %v2921 = vpack.c.bf16 %v2901, %v2900
        %v2922 = vpack.c.bf16 %v2903, %v2902
        %v2923 = vpack.c.bf16 %v2905, %v2904
        %v2924 = vpack.c.bf16 %v2907, %v2906
        %v2925 = vpack.c.bf16 %v2909, %v2908
        %v2926 = vld [vmem:[#allocation8] sm:$0xf]
        %v2927 = vld [vmem:[#allocation8 + $0x4] sm:$0xf]
        %v2928 = vld [vmem:[#allocation8 + $0x8] sm:$0xf]
        %v2929 = vld [vmem:[#allocation8 + $0xc] sm:$0xf]
        %v2930 = vld [vmem:[#allocation8 + $0x10] sm:$0xf]
        %v2931 = vld [vmem:[#allocation8 + $0x14] sm:$0xf]
        %v2932 = vld [vmem:[#allocation8 + $0x18] sm:$0xf]
        %v2933 = vld [vmem:[#allocation8 + $0x1c] sm:$0xf]
        %v2934 = vld [vmem:[#allocation8 + $0x20] sm:$0xf]
        %v2935 = vld [vmem:[#allocation8 + $0x24] sm:$0xf]
        %v2936 = vld [vmem:[#allocation8 + $0x28] sm:$0xf]
        %v2937 = vld [vmem:[#allocation8 + $0x2c] sm:$0xf]
        %v2938 = vld [vmem:[#allocation8 + $0x30] sm:$0xf]
        %v2939 = vld [vmem:[#allocation8 + $0x34] sm:$0xf]
        %v2940 = vld [vmem:[#allocation8 + $0x38] sm:$0xf]
        %v2941 = vld [vmem:[#allocation8 + $0x3c] sm:$0xf]
        %v2942 = vld [vmem:[%s6] sm:$0x1]
        %v2944 = vlaneseq
        %v2945 = vshrl.u32 %v2944, 7
        %v2946 = vsub.s32 0, %v2945
        %v2947 = vrot.slane %v2942, %v2946
        %v2965 = vunpack.c.l.b16 %v2926
        %v2966 = vunpack.c.l.b16 %v2927
        %v2967 = vunpack.c.l.b16 %v2928
        %v2968 = vunpack.c.l.b16 %v2929
        %v2969 = vunpack.c.l.b16 %v2930
        %v2970 = vunpack.c.l.b16 %v2931
        %v2971 = vunpack.c.l.b16 %v2932
        %v2972 = vunpack.c.l.b16 %v2933
        %v2973 = vunpack.c.l.b16 %v2934
        %v2974 = vunpack.c.l.b16 %v2935
        %v2975 = vunpack.c.l.b16 %v2936
        %v2976 = vunpack.c.l.b16 %v2937
        %v2977 = vunpack.c.l.b16 %v2938
        %v2978 = vunpack.c.l.b16 %v2939
        %v2979 = vunpack.c.l.b16 %v2940
        %v2980 = vunpack.c.l.b16 %v2941
        %v2981 = vpack.c.b16 %v2966, %v2965
        %v2982 = vpack.c.b16 %v2968, %v2967
        %v2983 = vpack.c.b16 %v2970, %v2969
        %v2984 = vpack.c.b16 %v2972, %v2971
        %v2985 = vpack.c.b16 %v2974, %v2973
        %v2986 = vpack.c.b16 %v2976, %v2975
        %v2987 = vpack.c.b16 %v2978, %v2977
        %v2988 = vpack.c.b16 %v2980, %v2979
        %2997 = vmatprep.subr.bf16.mxu0 0
        %2998 = vmatpush1.bf16.msra.mxu0 %v2981
        %2999 = vmatprep.subr.bf16.mxu0 0
        %3000 = vmatpush1.bf16.msra.mxu0 %v2982
        %3001 = vmatprep.subr.bf16.mxu0 0
        %3002 = vmatpush1.bf16.msra.mxu0 %v2983
        %3003 = vmatprep.subr.bf16.mxu0 0
        %3004 = vmatpush1.bf16.msra.mxu0 %v2984
        %3005 = vmatprep.subr.bf16.mxu0 0
        %3006 = vmatpush1.bf16.msra.mxu0 %v2985
        %3007 = vmatprep.subr.bf16.mxu0 0
        %3008 = vmatpush1.bf16.msra.mxu0 %v2986
        %3009 = vmatprep.subr.bf16.mxu0 0
        %3010 = vmatpush1.bf16.msra.mxu0 %v2987
        %3011 = vmatprep.subr.bf16.mxu0 0
        %3012 = vmatpush1.bf16.msra.mxu0 %v2988
        %3013 = vmatprep.subr.bf16.mxu0 0
        %3014 = vmatpush1.bf16.msra.mxu0 0
        %3015 = vmatprep.subr.bf16.mxu0 0
        %3016 = vmatpush1.bf16.msra.mxu0 0
        %3017 = vmatprep.subr.bf16.mxu0 0
        %3018 = vmatpush1.bf16.msra.mxu0 0
        %3019 = vmatprep.subr.bf16.mxu0 0
        %3020 = vmatpush1.bf16.msra.mxu0 0
        %3021 = vmatprep.subr.bf16.mxu0 0
        %3022 = vmatpush1.bf16.msra.mxu0 0
        %3023 = vmatprep.subr.bf16.mxu0 0
        %3024 = vmatpush1.bf16.msra.mxu0 0
        %3025 = vmatprep.subr.bf16.mxu0 0
        %3026 = vmatpush1.bf16.msra.mxu0 0
        %3027 = vmatprep.subr.bf16.mxu0 0
        %3028 = vmatpush1.bf16.msra.mxu0 0
        %3029 = vmatprep.mubr.bf16.mxu0 0
        %3030 = vmatmul.mubr.bf16.gmra.mrb[0].mxu0 %v2910
        %v3031 = vpop.f32.mrb[0].mxu0
        %v3032 = vadd.f32 %v2947, %v3031
        %v3033 = vpop.f32.mrb[0].mxu0
        %v3034 = vpop.f32.mrb[0].mxu0
        %v3035 = vadd.f32 %v2947, %v3034
        %v3036 = vpop.f32.mrb[0].mxu0
        %3037 = vmatprep.mubr.bf16.mxu0 0
        %3038 = vmatmul.mubr.bf16.gmra.mrb[0].mxu0 %v2911
        %v3039 = vpop.f32.mrb[0].mxu0
        %v3040 = vadd.f32 %v2947, %v3039
        %v3041 = vpop.f32.mrb[0].mxu0
        %v3042 = vpop.f32.mrb[0].mxu0
        %v3043 = vadd.f32 %v2947, %v3042
        %v3044 = vpop.f32.mrb[0].mxu0
        %3045 = vmatprep.mubr.bf16.mxu0 0
        %3046 = vmatmul.mubr.bf16.gmra.mrb[0].mxu0 %v2912
        %v3047 = vpop.f32.mrb[0].mxu0
        %v3048 = vadd.f32 %v2947, %v3047
        %v3049 = vpop.f32.mrb[0].mxu0
        %v3050 = vpop.f32.mrb[0].mxu0
        %v3051 = vadd.f32 %v2947, %v3050
        %v3052 = vpop.f32.mrb[0].mxu0
        %3053 = vmatprep.mubr.bf16.mxu0 0
        %3054 = vmatmul.mubr.bf16.gmra.mrb[0].mxu0 %v2913
        %v3055 = vpop.f32.mrb[0].mxu0
        %v3056 = vadd.f32 %v2947, %v3055
        %v3057 = vpop.f32.mrb[0].mxu0
        %v3058 = vpop.f32.mrb[0].mxu0
        %v3059 = vadd.f32 %v2947, %v3058
        %v3060 = vpop.f32.mrb[0].mxu0
        %3061 = vmatprep.mubr.bf16.mxu0 0
        %3062 = vmatmul.mubr.bf16.gmra.mrb[0].mxu0 %v2914
        %v3063 = vpop.f32.mrb[0].mxu0
        %v3064 = vadd.f32 %v2947, %v3063
        %v3065 = vpop.f32.mrb[0].mxu0
        %v3066 = vpop.f32.mrb[0].mxu0
        %v3067 = vadd.f32 %v2947, %v3066
        %v3068 = vpop.f32.mrb[0].mxu0
        %3069 = vmatprep.mubr.bf16.mxu0 0
        %3070 = vmatmul.mubr.bf16.gmra.mrb[0].mxu0 %v2915
        %v3071 = vpop.f32.mrb[0].mxu0
        %v3072 = vadd.f32 %v2947, %v3071
        %v3073 = vpop.f32.mrb[0].mxu0
        %v3074 = vpop.f32.mrb[0].mxu0
        %v3075 = vadd.f32 %v2947, %v3074
        %v3076 = vpop.f32.mrb[0].mxu0
        %3077 = vmatprep.mubr.bf16.mxu0 0
        %3078 = vmatmul.mubr.bf16.gmra.mrb[0].mxu0 %v2916
        %v3079 = vpop.f32.mrb[0].mxu0
        %v3080 = vadd.f32 %v2947, %v3079
        %v3081 = vpop.f32.mrb[0].mxu0
        %v3082 = vpop.f32.mrb[0].mxu0
        %v3083 = vadd.f32 %v2947, %v3082
        %v3084 = vpop.f32.mrb[0].mxu0
        %3085 = vmatprep.mubr.bf16.mxu0 0
        %3086 = vmatmul.mubr.bf16.gmra.mrb[0].mxu0 %v2917
        %v3087 = vpop.f32.mrb[0].mxu0
        %v3088 = vadd.f32 %v2947, %v3087
        %v3089 = vpop.f32.mrb[0].mxu0
        %v3090 = vpop.f32.mrb[0].mxu0
        %v3091 = vadd.f32 %v2947, %v3090
        %v3092 = vpop.f32.mrb[0].mxu0
        %3093 = vmatprep.mubr.bf16.mxu0 0
        %3094 = vmatmul.mubr.bf16.gmra.mrb[0].mxu0 %v2918
        %v3095 = vpop.f32.mrb[0].mxu0
        %v3096 = vadd.f32 %v2947, %v3095
        %v3097 = vpop.f32.mrb[0].mxu0
        %v3098 = vpop.f32.mrb[0].mxu0
        %v3099 = vadd.f32 %v2947, %v3098
        %v3100 = vpop.f32.mrb[0].mxu0
        %3101 = vmatprep.mubr.bf16.mxu0 0
        %3102 = vmatmul.mubr.bf16.gmra.mrb[0].mxu0 %v2919
        %v3103 = vpop.f32.mrb[0].mxu0
        %v3104 = vadd.f32 %v2947, %v3103
        %v3105 = vpop.f32.mrb[0].mxu0
        %v3106 = vpop.f32.mrb[0].mxu0
        %v3107 = vadd.f32 %v2947, %v3106
        %v3108 = vpop.f32.mrb[0].mxu0
        %3109 = vmatprep.mubr.bf16.mxu0 0
        %3110 = vmatmul.mubr.bf16.gmra.mrb[0].mxu0 %v2920
        %v3111 = vpop.f32.mrb[0].mxu0
        %v3112 = vadd.f32 %v2947, %v3111
        %v3113 = vpop.f32.mrb[0].mxu0
        %v3114 = vpop.f32.mrb[0].mxu0
        %v3115 = vadd.f32 %v2947, %v3114
        %v3116 = vpop.f32.mrb[0].mxu0
        %3117 = vmatprep.mubr.bf16.mxu0 0
        %3118 = vmatmul.mubr.bf16.gmra.mrb[0].mxu0 %v2921
        %v3119 = vpop.f32.mrb[0].mxu0
        %v3120 = vadd.f32 %v2947, %v3119
        %v3121 = vpop.f32.mrb[0].mxu0
        %v3122 = vpop.f32.mrb[0].mxu0
        %v3123 = vadd.f32 %v2947, %v3122
        %v3124 = vpop.f32.mrb[0].mxu0
        %3125 = vmatprep.mubr.bf16.mxu0 0
        %3126 = vmatmul.mubr.bf16.gmra.mrb[0].mxu0 %v2922
        %v3127 = vpop.f32.mrb[0].mxu0
        %v3128 = vadd.f32 %v2947, %v3127
        %v3129 = vpop.f32.mrb[0].mxu0
        %v3130 = vpop.f32.mrb[0].mxu0
        %v3131 = vadd.f32 %v2947, %v3130
        %v3132 = vpop.f32.mrb[0].mxu0
        %3133 = vmatprep.mubr.bf16.mxu0 0
        %3134 = vmatmul.mubr.bf16.gmra.mrb[0].mxu0 %v2923
        %v3135 = vpop.f32.mrb[0].mxu0
        %v3136 = vadd.f32 %v2947, %v3135
        %v3137 = vpop.f32.mrb[0].mxu0
        %v3138 = vpop.f32.mrb[0].mxu0
        %v3139 = vadd.f32 %v2947, %v3138
        %v3140 = vpop.f32.mrb[0].mxu0
        %3141 = vmatprep.mubr.bf16.mxu0 0
        %3142 = vmatmul.mubr.bf16.gmra.mrb[0].mxu0 %v2924
        %v3143 = vpop.f32.mrb[0].mxu0
        %v3144 = vadd.f32 %v2947, %v3143
        %v3145 = vpop.f32.mrb[0].mxu0
        %v3146 = vpop.f32.mrb[0].mxu0
        %v3147 = vadd.f32 %v2947, %v3146
        %v3148 = vpop.f32.mrb[0].mxu0
        %3149 = vmatprep.mubr.bf16.mxu0 0
        %3150 = vmatmul.mubr.bf16.gmra.mrb[0].mxu0 %v2925
        %v3151 = vpop.f32.mrb[0].mxu0
        %v3152 = vadd.f32 %v2947, %v3151
        %v3153 = vpop.f32.mrb[0].mxu0
        %v3154 = vpop.f32.mrb[0].mxu0
        %v3155 = vadd.f32 %v2947, %v3154
        %v3156 = vpop.f32.mrb[0].mxu0
        %3157 = vdwg.mxu0
        %3158 = vxpose.xlu0.b32.start [1/16] %v3032, 128
        %3159 = vxpose.xlu0.b32.cont [2/16] %v3035, 128
        %3160 = vxpose.xlu0.b32.cont [3/16] %v3040, 128
        %3161 = vxpose.xlu0.b32.cont [4/16] %v3043, 128
        %3162 = vxpose.xlu0.b32.cont [5/16] %v3048, 128
        %3163 = vxpose.xlu0.b32.cont [6/16] %v3051, 128
        %3164 = vxpose.xlu0.b32.cont [7/16] %v3056, 128
        %3165 = vxpose.xlu0.b32.cont [8/16] %v3059, 128
        %3166 = vxpose.xlu0.b32.cont [9/16] %v3064, 128
        %3167 = vxpose.xlu0.b32.cont [10/16] %v3067, 128
        %3168 = vxpose.xlu0.b32.cont [11/16] %v3072, 128
        %3169 = vxpose.xlu0.b32.cont [12/16] %v3075, 128
        %3170 = vxpose.xlu0.b32.cont [13/16] %v3080, 128
        %3171 = vxpose.xlu0.b32.cont [14/16] %v3083, 128
        %3172 = vxpose.xlu0.b32.cont [15/16] %v3088, 128
        %3173 = vxpose.xlu0.b32.end [16/16] %v3091, 128
        %v3174 = vpop.trf.xlu0
        %v3175 = vpop.trf.xlu0
        %v3176 = vpop.trf.xlu0
        %v3177 = vpop.trf.xlu0
        %v3178 = vpop.trf.xlu0
        %v3179 = vpop.trf.xlu0
        %v3180 = vpop.trf.xlu0
        %v3181 = vpop.trf.xlu0
        %v3182 = vpop.trf.xlu0
        %v3183 = vpop.trf.xlu0
        %v3184 = vpop.trf.xlu0
        %v3185 = vpop.trf.xlu0
        %v3186 = vpop.trf.xlu0
        %v3187 = vpop.trf.xlu0
        %v3188 = vpop.trf.xlu0
        %v3189 = vpop.trf.xlu0
        %3190 = vxpose.xlu0.b32.start [1/16] %v3096, 128
        %3191 = vxpose.xlu0.b32.cont [2/16] %v3099, 128
        %3192 = vxpose.xlu0.b32.cont [3/16] %v3104, 128
        %3193 = vxpose.xlu0.b32.cont [4/16] %v3107, 128
        %3194 = vxpose.xlu0.b32.cont [5/16] %v3112, 128
        %3195 = vxpose.xlu0.b32.cont [6/16] %v3115, 128
        %3196 = vxpose.xlu0.b32.cont [7/16] %v3120, 128
        %3197 = vxpose.xlu0.b32.cont [8/16] %v3123, 128
        %3198 = vxpose.xlu0.b32.cont [9/16] %v3128, 128
        %3199 = vxpose.xlu0.b32.cont [10/16] %v3131, 128
        %3200 = vxpose.xlu0.b32.cont [11/16] %v3136, 128
        %3201 = vxpose.xlu0.b32.cont [12/16] %v3139, 128
        %3202 = vxpose.xlu0.b32.cont [13/16] %v3144, 128
        %3203 = vxpose.xlu0.b32.cont [14/16] %v3147, 128
        %3204 = vxpose.xlu0.b32.cont [15/16] %v3152, 128
        %3205 = vxpose.xlu0.b32.end [16/16] %v3155, 128
        %v3206 = vpop.trf.xlu0
        %v3207 = vpop.trf.xlu0
        %v3208 = vpop.trf.xlu0
        %v3209 = vpop.trf.xlu0
        %v3210 = vpop.trf.xlu0
        %v3211 = vpop.trf.xlu0
        %v3212 = vpop.trf.xlu0
        %v3213 = vpop.trf.xlu0
        %v3214 = vpop.trf.xlu0
        %v3215 = vpop.trf.xlu0
        %v3216 = vpop.trf.xlu0
        %v3217 = vpop.trf.xlu0
        %v3218 = vpop.trf.xlu0
        %v3219 = vpop.trf.xlu0
        %v3220 = vpop.trf.xlu0
        %v3221 = vpop.trf.xlu0
        %3222 = vst [vmem:[%s340] sm:$0xff] %v3174
        %3223 = vst [vmem:[%s340 + $0x8] sm:$0xff] %v3206
        %s3224 = sand.u32 %s186, 1
        %s3225 = scalar_lea.sflag [#allocation4], %s3224
        %s3226 = sand.u32 %s186, 1
        %s3227 = smul.addr %s3226, 16
        %s3228 = scalar_lea.vmem [#allocation10], %s3227
        // Predicated region
        $region65: #{tpu_custom_call.1} parent=47 // pred_check
          %p3229 = pneg %p196
        $region66: #{tpu_custom_call.1} parent=47 // pred_check_branch
          %3231 = sbr.rel (%p3229) target = $region68
        $region67: #{tpu_custom_call.1} parent=47 // pred_region
          %s3232 = smul.u32 2, %s26
          %s3234 = ssub.s32 256, 256
          %3235 = vsyncadd %s3225, %s3234
          %s3236 = smul.addr %s3232, 128
          %s3237 = scalar_lea.hbm %s7, %s3236
          %s3239 = sshll.u32 %s3228, 4
          %s3240 = int_to_ptr.vmem [resolvable:$true] %s3239
          %3242 = dma.vmem_to_hbm [thread:$0]  %s3240, 256, %s3237, %s3225
        $region68: #{tpu_custom_call.1} parent=47 // pred_fallthru
          _
      $region48: #{tpu_custom_call.1} parent=5 // pred_fallthru
        _
      %p3243 = scmp.le.s32.totalorder 2, %s21
      // Predicated region
      $region69: #{tpu_custom_call.1} parent=5 // pred_check
        %p3244 = pneg %p3243
      $region70: #{tpu_custom_call.1} parent=5 // pred_check_branch
        %3246 = sbr.rel (%p3244) target = $region72
      $region71: #{tpu_custom_call.1} parent=5 // pred_region
        %s3247 = ssub.s32 %s21, 2
        // Predicated region
        $region73: #{tpu_custom_call.1} parent=71 // pred_check
          %p3248 = pneg %p202
        $region74: #{tpu_custom_call.1} parent=71 // pred_check_branch
          %3250 = sbr.rel (%p3248) target = $region76
        $region75: #{tpu_custom_call.1} parent=71 // pred_region
          %s3251 = sand.u32 %s187, 1
          %s3252 = scalar_lea.sflag [#allocation4], %s3251
          %s3253 = sand.u32 %s187, 1
          %s3254 = smul.addr %s3253, 16
          %s3255 = scalar_lea.vmem [#allocation10], %s3254
          %3256 = dma.done %s3252, 256
        $region76: #{tpu_custom_call.1} parent=71 // pred_fallthru
          _
      $region72: #{tpu_custom_call.1} parent=5 // pred_fallthru
        _
    $region6: #{tpu_custom_call.1} parent=1 // loop_footer
      %s25 = sadd.s32 1, %s21
    $region7: #{tpu_custom_call.1} parent=1 // loop_footer_branch
      %20 = sbr.rel target = $region3
    $region8: #{tpu_custom_call.1} parent=1 // loop_exit
      _
    %3257 = vsyncpa [#allocation3], 1
    %s3258 = scalar_lea.sflag [#allocation3], 1
    %3259 = vsyncpa %s3258, 1
    %3260 = vsyncpa [#allocation6], 1
    %3261 = vsyncpa [#allocation9], 1
    %3262 = vsyncpa [#allocation4], 1
    %s3263 = scalar_lea.sflag [#allocation4], 1
    %3264 = vsyncpa %s3263, 1

</llo_original>
